<compile_context>
chip_gen: v5e
topology: v5e:2x2
jax: 0.10.0
libtpu: 0.0.40
codegen_flags: <defaults>
</compile_context>

<pallas_src>
import math
import jax
import jax.numpy as jnp
from jax import lax
from jax.experimental import pallas as pl
from jax.experimental.pallas import tpu as pltpu

LN_EPS = 1e-5
MASK_NEG = -2.0 ** 15 + 1.0   # value temporalAttention uses for masked scores
BF16 = jnp.bfloat16


# ----------------------------- in-kernel helpers -----------------------------

def _layernorm(x):
    # nn.LayerNorm(..., elementwise_affine=False), eps=1e-5, biased variance
    mu = jnp.mean(x, axis=-1, keepdims=True)
    var = jnp.mean((x - mu) ** 2, axis=-1, keepdims=True)
    return (x - mu) * lax.rsqrt(var + LN_EPS)


def _softmax(x):
    m = jnp.max(x, axis=-1, keepdims=True)
    e = jnp.exp(x - m)
    s = jnp.sum(e, axis=-1, keepdims=True)
    # exact reciprocal still runs on the EUP -> essentially free, keeps parity.
    return e * pl.reciprocal(s, approx=False)


def _mm(a, w):
    # MXU matmul: bf16 operands, f32 accumulation.
    return jnp.dot(a.astype(BF16), w.astype(BF16),
                   preferred_element_type=jnp.float32)


def _bmm(a, b, dims):
    return lax.dot_general(a.astype(BF16), b.astype(BF16), dims,
                           preferred_element_type=jnp.float32)


def _attn_tail(att, x_res, wo, bo, w1, b1, w2, b2):
    # ofc(att) + residual, LN, FeedForward([D, D, D], res_ln=True).
    v = _mm(att, wo) + bo + x_res
    y = _layernorm(v)
    h = jnp.maximum(_mm(y, w1) + b1, 0.0)
    z = _mm(h, w2) + b2 + y
    return _layernorm(z)


def _temporal_attention(x, mask_bias, wqkv, bqkv, woff, boff, inv_sqrt_d):
    # x: [T, N, D] f32 (already xl + te).  Attention over time, per node.
    T, N, D = x.shape
    x_nt = jnp.transpose(x, (1, 0, 2))               # [N, T, D]
    xr = x_nt.reshape(N * T, D)
    qkv = _mm(xr, wqkv) + bqkv                       # [N*T, 3D] f32
    q = qkv[:, 0 * D:1 * D].reshape(N, T, D)
    k = qkv[:, 1 * D:2 * D].reshape(N, T, D)
    v = qkv[:, 2 * D:3 * D].reshape(N, T, D)
    # scores[n, tq, tk] = <q[n,tq], k[n,tk]> / sqrt(D)   (N is the batch dim)
    s = _bmm(q, k, (((2,), (2,)), ((0,), (0,)))) * inv_sqrt_d     # [N, T, T]
    s = s + mask_bias[None, :, :]                    # additive causal mask
    p = _softmax(s)
    out = _bmm(p, v, (((2,), (1,)), ((0,), (0,))))   # [N, T, D]
    z = _attn_tail(out.reshape(N * T, D), xr,
                   woff[0], boff[0], woff[1], boff[1], woff[2], boff[2])
    return jnp.transpose(z.reshape(N, T, D), (1, 0, 2))           # [T, N, D]


def _spatial_attention_inplace(h_ref, q_ref, k_ref, v_ref, pos,
                               wqkv, bqkv, woff, boff, inv_sqrt_d):
    # Full-GAT spatial attention over nodes, per time step.  h_ref holds the
    # stage-1 output and is overwritten IN PLACE with ssa(h) + h (the
    # dualEncoder residual), one time step at a time so only an [N, N] score
    # tile is ever live.
    T, N, D = h_ref.shape
    x_ = h_ref[...] + pos[None, :, :]                # x + eigvec @ diag(eigval)
    qkv = _mm(x_.reshape(T * N, D), wqkv) + bqkv     # one big projection, f32
    q_ref[...] = qkv[:, 0 * D:1 * D].reshape(T, N, D).astype(BF16)
    k_ref[...] = qkv[:, 1 * D:2 * D].reshape(T, N, D).astype(BF16)
    v_ref[...] = qkv[:, 2 * D:3 * D].reshape(T, N, D).astype(BF16)

    wo, w1, w2 = woff[0], woff[1], woff[2]
    bo, b1, b2 = boff[0], boff[1], boff[2]

    def step(t, carry):
        h_t = h_ref[t]                               # [N, D] pre-attn input
        x_t = h_t + pos
        q = q_ref[t]                                 # [N, D] bf16
        k = k_ref[t]
        v = v_ref[t]
        s = _bmm(q, k, (((1,), (1,)), ((), ()))) * inv_sqrt_d     # [N, N]
        p = _softmax(s)
        o = _bmm(p, v, (((1,), (0,)), ((), ())))                  # [N, D]
        y = _attn_tail(o, x_t, wo, bo, w1, b1, w2, b2)
        h_ref[t] = y + h_t                           # ssa(x) + x
        return carry

    lax.fori_loop(0, T, step, 0)


# --------------------------- fused dualEncoder kernel --------------------------

def _dual_encoder_kernel(xl_ref, xh_ref, te_ref, maskb_ref, pos_ref,
                         wqkv_ref, bqkv_ref, woff_ref, boff_ref,
                         wtcn_ref, btcn_ref,
                         xl_o_ref, xh_o_ref,
                         h_ref, q_ref, k_ref, v_ref):
    T, N, D = h_ref.shape
    inv_sqrt_d = 1.0 / math.sqrt(D)
    path = pl.program_id(1)         # 0 -> xl (tatt + ssal), 1 -> xh (tcn + ssah)
    pos = pos_ref[...]

    # ------------------------- stage 1 (path specific) -------------------------
    @pl.when(path == 0)
    def _():
        h_ref[...] = _temporal_attention(
            xl_ref[0] + te_ref[0], maskb_ref[...],
            wqkv_ref[0], bqkv_ref[0], woff_ref[0], boff_ref[0], inv_sqrt_d)

    @pl.when(path == 1)
    def _():
        # causal TCN: out[t] = relu(xh[t] @ w1 + xh[t-1] @ w0 + b), xh[-1] = 0
        xh = xh_ref[0]
        xh_prev = jnp.concatenate(
            [jnp.zeros((1, N, D), jnp.float32), xh[:T - 1]], axis=0)
        y = _mm(xh.reshape(T * N, D), wtcn_ref[1])
        y = y + _mm(xh_prev.reshape(T * N, D), wtcn_ref[0])
        # TODO(synk): temporalConvNet dropout(0.2) omitted (eval-mode identity).
        h_ref[...] = jnp.maximum(y + btcn_ref[...], 0.0).reshape(T, N, D)

    # ------------- stage 2: sparse spatial attention (use_full_GAT) -------------
    m = 1 + path                    # module index: 1 = ssal, 2 = ssah
    _spatial_attention_inplace(h_ref, q_ref, k_ref, v_ref, pos,
                               wqkv_ref[m], bqkv_ref[m],
                               woff_ref[m], boff_ref[m], inv_sqrt_d)

    # ------------------------ write back the path's output ----------------------
    @pl.when(path == 0)
    def _():
        xl_o_ref[0] = h_ref[...]

    @pl.when(path == 1)
    def _():
        xh_o_ref[0] = h_ref[...]


@jax.jit
def dual_encoder_forward(xl, xh, te, packed):
    B, T, N, D = xl.shape
    tri = jnp.tril(jnp.ones((T, T), jnp.float32))
    mask_bias = jnp.where(tri > 0.0, 0.0, MASK_NEG).astype(jnp.float32)

    blk = pl.BlockSpec((1, T, N, D), lambda b, p: (b, 0, 0, 0))

    def full(shape):
        n = len(shape)
        return pl.BlockSpec(shape, lambda b, p: (0,) * n)

    # Scoped-VMEM budget from block + scratch accounting (with headroom).
    weight_bytes = sum(int(v.size) * v.dtype.itemsize for v in packed.values())
    act_bytes = T * N * D * 4
    score_bytes = 4 * max(N * T * T, N * N)
    vmem_limit = int(min(100 * 1024 * 1024,
                         (8 << 20) + 24 * act_bytes + 8 * score_bytes
                         + 4 * weight_bytes))

    return pl.pallas_call(
        _dual_encoder_kernel,
        out_shape=(jax.ShapeDtypeStruct((B, T, N, D), jnp.float32),
                   jax.ShapeDtypeStruct((B, T, N, D), jnp.float32)),
        grid=(B, 2),
        in_specs=[blk, blk, blk,
                  full((T, T)), full((N, D)),
                  full((3, D, 3 * D)), full((3, 1, 3 * D)),
                  full((3, 3, D, D)), full((3, 3, 1, D)),
                  full((2, D, D)), full((1, D))],
        out_specs=(blk, blk),
        scratch_shapes=[pltpu.VMEM((T, N, D), jnp.float32),   # stage-1 output
                        pltpu.VMEM((T, N, D), BF16),          # Q (spatial)
                        pltpu.VMEM((T, N, D), BF16),          # K (spatial)
                        pltpu.VMEM((T, N, D), BF16)],         # V (spatial)
        compiler_params=pltpu.CompilerParams(
            # path axis revisits the output blocks -> must be "arbitrary"
            dimension_semantics=("parallel", "arbitrary"),
            vmem_limit_bytes=vmem_limit),
    )(xl, xh, te, mask_bias, packed['pos'],
      packed['wqkv'], packed['bqkv'], packed['woff'], packed['boff'],
      packed['wtcn'], packed['btcn'])


# ------------------------------ parameter handling ------------------------------

def make_attn_params(key, D, scale=0.1):
    # PyTorch-convention weights: W [out, in], b [out]
    k = jax.random.split(key, 12)
    p = {}
    for i, name in enumerate(['wq', 'wk', 'wv', 'wo', 'wff1', 'wff2']):
        p[name] = scale * jax.random.normal(k[2 * i], (D, D), jnp.float32)
        p['b' + name[1:]] = scale * jax.random.normal(k[2 * i + 1], (D,), jnp.float32)
    return p


def make_params(key, N, D, scale=0.1):
    k = jax.random.split(key, 7)
    return {
        'tatt': make_attn_params(k[0], D, scale),
        'ssal': make_attn_params(k[1], D, scale),
        'ssah': make_attn_params(k[2], D, scale),
        'tcn': {
            # Conv2d(D, D, (1, 2)) weight [D, D, 1, 2]
            'wconv': scale * jax.random.normal(k[3], (D, D, 1, 2), jnp.float32),
            'b':     scale * jax.random.normal(k[4], (D,), jnp.float32),
        },
        'eigvalue': scale * jax.random.normal(k[5], (D,), jnp.float32),   # graphwave[0]
        'eigvec':   scale * jax.random.normal(k[6], (N, D), jnp.float32), # graphwave[1]
    }


def pack_params(p):
    # Pre-transpose ([in, out]), pack per module, store MXU weights as bf16.
    # TODO(synk): if production D is not a multiple of 128, zero-padding D here
    # (plus masked LayerNorm) would further improve lane/MXU utilization.
    def qkv_w(m):   # [D, 3D] bf16
        return jnp.concatenate([m['wq'].T, m['wk'].T, m['wv'].T], axis=1).astype(BF16)

    def qkv_b(m):   # [1, 3D] f32
        return jnp.concatenate([m['bq'], m['bk'], m['bv']], axis=0)[None, :]

    def off_w(m):   # [3, D, D] bf16  (wo, wff1, wff2)
        return jnp.stack([m['wo'].T, m['wff1'].T, m['wff2'].T], axis=0).astype(BF16)

    def off_b(m):   # [3, 1, D] f32
        return jnp.stack([m['bo'], m['bff1'], m['bff2']], axis=0)[:, None, :]

    mods = [p['tatt'], p['ssal'], p['ssah']]
    wc = p['tcn']['wconv']
    return {
        'wqkv': jnp.stack([qkv_w(m) for m in mods], axis=0),            # [3, D, 3D] bf16
        'bqkv': jnp.stack([qkv_b(m) for m in mods], axis=0),            # [3, 1, 3D] f32
        'woff': jnp.stack([off_w(m) for m in mods], axis=0),            # [3, 3, D, D] bf16
        'boff': jnp.stack([off_b(m) for m in mods], axis=0),            # [3, 3, 1, D] f32
        # causal conv taps: wtcn[0] multiplies x[t-1], wtcn[1] multiplies x[t]
        'wtcn': jnp.stack([wc[:, :, 0, 0].T, wc[:, :, 0, 1].T], axis=0).astype(BF16),
        'btcn': p['tcn']['b'][None, :],                                 # [1, D] f32
        # eigvec.T @ diag(eigvalue) == eigvec * eigvalue[None, :]
        'pos':  p['eigvec'] * p['eigvalue'][None, :],                   # [N, D] f32
    }


# ------------------------- pure-JAX reference (for checking) -------------------------

def _ref_linear(x, w, b):
    return jnp.dot(x, w.T) + b


def _ref_ln(x):
    mu = jnp.mean(x, -1, keepdims=True)
    var = jnp.mean((x - mu) ** 2, -1, keepdims=True)
    return (x - mu) / jnp.sqrt(var + LN_EPS)


def _ref_attn_tail(val, x_res, m):
    v = _ref_linear(val, m['wo'], m['bo']) + x_res
    y = _ref_ln(v)
    h = jax.nn.relu(_ref_linear(y, m['wff1'], m['bff1']))
    z = _ref_linear(h, m['wff2'], m['bff2']) + y
    return _ref_ln(z)


def ref_dual_encoder(xl, xh, te, p):
    B, T, N, D = xl.shape
    scale = 1.0 / math.sqrt(D)

    # temporal attention
    m = p['tatt']
    x = xl + te
    q = _ref_linear(x, m['wq'], m['bq']).transpose(0, 2, 1, 3)   # [B,N,T,D]
    k = _ref_linear(x, m['wk'], m['bk']).transpose(0, 2, 3, 1)   # [B,N,D,T]
    v = _ref_linear(x, m['wv'], m['bv']).transpose(0, 2, 1, 3)
    a = jnp.matmul(q, k) * scale
    tri = jnp.tril(jnp.ones((T, T), bool))
    a = jax.nn.softmax(jnp.where(tri[None, None], a, MASK_NEG), -1)
    val = jnp.matmul(a, v).transpose(0, 2, 1, 3)
    xl1 = _ref_attn_tail(val, x, m)

    # causal TCN
    w0 = p['tcn']['wconv'][:, :, 0, 0]
    w1 = p['tcn']['wconv'][:, :, 0, 1]
    xprev = jnp.concatenate([jnp.zeros_like(xh[:, :1]), xh[:, :-1]], axis=1)
    xh1 = jax.nn.relu(jnp.dot(xprev, w0.T) + jnp.dot(xh, w1.T) + p['tcn']['b'])

    # spatial attention (use_full_GAT) + dualEncoder residual
    pos = p['eigvec'] * p['eigvalue'][None, :]

    def ssa(x_in, m):
        x_ = x_in + pos
        q = _ref_linear(x_, m['wq'], m['bq'])
        k = _ref_linear(x_, m['wk'], m['bk'])
        v = _ref_linear(x_, m['wv'], m['bv'])
        a = jax.nn.softmax(jnp.einsum('btnd,btmd->btnm', q, k) * scale, -1)
        val = jnp.einsum('btnm,btmd->btnd', a, v)
        return _ref_attn_tail(val, x_, m)

    return ssa(xl1, p['ssal']) + xl1, ssa(xh1, p['ssah']) + xh1


if __name__ == "__main__":
    B, T, N, D = 2, 8, 16, 32
    key = jax.random.PRNGKey(0)
    kx, kh, kt, kp = jax.random.split(key, 4)

    xl = jax.random.normal(kx, (B, T, N, D), jnp.float32)
    xh = jax.random.normal(kh, (B, T, N, D), jnp.float32)
    te = jax.random.normal(kt, (B, T, N, D), jnp.float32)
    params = make_params(kp, N, D)
    packed = pack_params(params)

    xl_out, xh_out = dual_encoder_forward(xl, xh, te, packed)
    jax.block_until_ready((xl_out, xh_out))
    assert xl_out.shape == (B, T, N, D) and xh_out.shape == (B, T, N, D)

    # correctness check against a pure-JAX f32 reference (tolerance reflects
    # bf16 MXU operands inside the kernel; outputs are LayerNorm-scale ~O(1)).
    xl_ref, xh_ref = ref_dual_encoder(xl, xh, te, params)
    assert jnp.allclose(xl_out, xl_ref, rtol=1.5e-1, atol=1.5e-1)
    assert jnp.allclose(xh_out, xh_ref, rtol=1.5e-1, atol=1.5e-1)

    print("KERNEL_OK")
</pallas_src>

<mosaic_0001>
module attributes {stable_mosaic.version = 11 : i64} {
  func.func @_dual_encoder_kernel(%arg0: i32, %arg1: i32, %arg2: memref<1x8x16x32xf32, #tpu.memory_space<vmem>>, %arg3: memref<1x8x16x32xf32, #tpu.memory_space<vmem>>, %arg4: memref<1x8x16x32xf32, #tpu.memory_space<vmem>>, %arg5: memref<8x8xf32, #tpu.memory_space<vmem>>, %arg6: memref<16x32xf32, #tpu.memory_space<vmem>>, %arg7: memref<3x32x96xbf16, #tpu.memory_space<vmem>>, %arg8: memref<3x1x96xf32, #tpu.memory_space<vmem>>, %arg9: memref<3x3x32x32xbf16, #tpu.memory_space<vmem>>, %arg10: memref<3x3x1x32xf32, #tpu.memory_space<vmem>>, %arg11: memref<2x32x32xbf16, #tpu.memory_space<vmem>>, %arg12: memref<1x32xf32, #tpu.memory_space<vmem>>, %arg13: memref<1x8x16x32xf32, #tpu.memory_space<vmem>>, %arg14: memref<1x8x16x32xf32, #tpu.memory_space<vmem>>, %arg15: memref<8x16x32xf32, #tpu.memory_space<vmem>>, %arg16: memref<8x16x32xbf16, #tpu.memory_space<vmem>>, %arg17: memref<8x16x32xbf16, #tpu.memory_space<vmem>>, %arg18: memref<8x16x32xbf16, #tpu.memory_space<vmem>>) attributes {dimension_semantics = [#tpu.dimension_semantics<parallel>, #tpu.dimension_semantics<arbitrary>], iteration_bounds = array<i64: 2, 2>, scalar_prefetch = 0 : i64, scratch_operands = 4 : i64, tpu.core_type = #tpu.core_type<tc>, window_params = [{transform_indices = @transform_0, window_bounds = array<i64: 1, 8, 16, 32>}, {transform_indices = @transform_1, window_bounds = array<i64: 1, 8, 16, 32>}, {transform_indices = @transform_2, window_bounds = array<i64: 1, 8, 16, 32>}, {pipeline_mode = #tpu.pipeline_mode<synchronous>, transform_indices = @transform_3, window_bounds = array<i64: 8, 8>}, {pipeline_mode = #tpu.pipeline_mode<synchronous>, transform_indices = @transform_4, window_bounds = array<i64: 16, 32>}, {pipeline_mode = #tpu.pipeline_mode<synchronous>, transform_indices = @transform_5, window_bounds = array<i64: 3, 32, 96>}, {pipeline_mode = #tpu.pipeline_mode<synchronous>, transform_indices = @transform_6, window_bounds = array<i64: 3, 1, 96>}, {pipeline_mode = #tpu.pipeline_mode<synchronous>, transform_indices = @transform_7, window_bounds = array<i64: 3, 3, 32, 32>}, {pipeline_mode = #tpu.pipeline_mode<synchronous>, transform_indices = @transform_8, window_bounds = array<i64: 3, 3, 1, 32>}, {pipeline_mode = #tpu.pipeline_mode<synchronous>, transform_indices = @transform_9, window_bounds = array<i64: 2, 32, 32>}, {pipeline_mode = #tpu.pipeline_mode<synchronous>, transform_indices = @transform_10, window_bounds = array<i64: 1, 32>}, {transform_indices = @transform_11, window_bounds = array<i64: 1, 8, 16, 32>}, {transform_indices = @transform_12, window_bounds = array<i64: 1, 8, 16, 32>}]} {
    %c0 = arith.constant 0 : index
    %c0_0 = arith.constant 0 : index
    %0 = vector.load %arg6[%c0, %c0_0] : memref<16x32xf32, #tpu.memory_space<vmem>>, vector<16x32xf32>
    %c0_i32 = arith.constant 0 : i32
    %1 = arith.cmpi eq, %arg1, %c0_i32 : i32
    %2 = arith.extui %1 : i1 to i32
    %c0_i32_1 = arith.constant 0 : i32
    %3 = arith.cmpi ne, %2, %c0_i32_1 : i32
    scf.if %3 {
      %c0_33 = arith.constant 0 : index
      %c0_34 = arith.constant 0 : index
      %c0_35 = arith.constant 0 : index
      %c0_36 = arith.constant 0 : index
      %60 = vector.load %arg2[%c0_33, %c0_34, %c0_35, %c0_36] : memref<1x8x16x32xf32, #tpu.memory_space<vmem>>, vector<1x8x16x32xf32>
      %61 = vector.shape_cast %60 : vector<1x8x16x32xf32> to vector<8x16x32xf32>
      %c0_37 = arith.constant 0 : index
      %c0_38 = arith.constant 0 : index
      %c0_39 = arith.constant 0 : index
      %c0_40 = arith.constant 0 : index
      %62 = vector.load %arg4[%c0_37, %c0_38, %c0_39, %c0_40] : memref<1x8x16x32xf32, #tpu.memory_space<vmem>>, vector<1x8x16x32xf32>
      %63 = vector.shape_cast %62 : vector<1x8x16x32xf32> to vector<8x16x32xf32>
      %64 = arith.addf %61, %63 : vector<8x16x32xf32>
      %c0_41 = arith.constant 0 : index
      %c0_42 = arith.constant 0 : index
      %65 = vector.load %arg5[%c0_41, %c0_42] : memref<8x8xf32, #tpu.memory_space<vmem>>, vector<8x8xf32>
      %c0_43 = arith.constant 0 : index
      %c0_44 = arith.constant 0 : index
      %c0_45 = arith.constant 0 : index
      %66 = vector.load %arg7[%c0_43, %c0_44, %c0_45] : memref<3x32x96xbf16, #tpu.memory_space<vmem>>, vector<1x32x96xbf16>
      %67 = vector.shape_cast %66 : vector<1x32x96xbf16> to vector<32x96xbf16>
      %c0_46 = arith.constant 0 : index
      %c0_47 = arith.constant 0 : index
      %c0_48 = arith.constant 0 : index
      %68 = vector.load %arg8[%c0_46, %c0_47, %c0_48] : memref<3x1x96xf32, #tpu.memory_space<vmem>>, vector<1x1x96xf32>
      %69 = vector.shape_cast %68 : vector<1x1x96xf32> to vector<1x96xf32>
      %c0_49 = arith.constant 0 : index
      %c0_50 = arith.constant 0 : index
      %c0_51 = arith.constant 0 : index
      %c0_52 = arith.constant 0 : index
      %70 = vector.load %arg9[%c0_49, %c0_50, %c0_51, %c0_52] : memref<3x3x32x32xbf16, #tpu.memory_space<vmem>>, vector<1x3x32x32xbf16>
      %71 = vector.shape_cast %70 : vector<1x3x32x32xbf16> to vector<3x32x32xbf16>
      %c0_53 = arith.constant 0 : index
      %c0_54 = arith.constant 0 : index
      %c0_55 = arith.constant 0 : index
      %c0_56 = arith.constant 0 : index
      %72 = vector.load %arg10[%c0_53, %c0_54, %c0_55, %c0_56] : memref<3x3x1x32xf32, #tpu.memory_space<vmem>>, vector<1x3x1x32xf32>
      %73 = vector.shape_cast %72 : vector<1x3x1x32xf32> to vector<3x1x32xf32>
      %74 = tpu.transpose %64, [1, 0, 2] : vector<8x16x32xf32> -> vector<16x8x32xf32>
      %75 = vector.shape_cast %74 : vector<16x8x32xf32> to vector<128x32xf32>
      %76 = arith.truncf %75 : vector<128x32xf32> to vector<128x32xbf16>
      %cst_57 = arith.constant dense<0.000000e+00> : vector<128x96xf32>
      %77 = tpu.matmul %76, %67, %cst_57 {dimension_numbers = #tpu.dot_dimension_numbers<[1], [0], [0], [1], [0, 0, 1, 1], [], []>} : vector<128x32xbf16>, vector<32x96xbf16>, vector<128x96xf32> -> vector<128x96xf32>
      %78 = vector.broadcast %69 : vector<1x96xf32> to vector<128x96xf32>
      %79 = arith.addf %77, %78 : vector<128x96xf32>
      %80 = vector.extract_strided_slice %79 {offsets = [0, 0], sizes = [128, 32], strides = [1, 1]} : vector<128x96xf32> to vector<128x32xf32>
      %81 = vector.shape_cast %80 : vector<128x32xf32> to vector<16x8x32xf32>
      %82 = vector.extract_strided_slice %79 {offsets = [0, 32], sizes = [128, 32], strides = [1, 1]} : vector<128x96xf32> to vector<128x32xf32>
      %83 = vector.shape_cast %82 : vector<128x32xf32> to vector<16x8x32xf32>
      %84 = vector.extract_strided_slice %79 {offsets = [0, 64], sizes = [128, 32], strides = [1, 1]} : vector<128x96xf32> to vector<128x32xf32>
      %85 = vector.shape_cast %84 : vector<128x32xf32> to vector<16x8x32xf32>
      %86 = arith.truncf %81 : vector<16x8x32xf32> to vector<16x8x32xbf16>
      %87 = arith.truncf %83 : vector<16x8x32xf32> to vector<16x8x32xbf16>
      %cst_58 = arith.constant dense<0.000000e+00> : vector<16x8x8xf32>
      %88 = tpu.matmul %86, %87, %cst_58 {dimension_numbers = #tpu.dot_dimension_numbers<[2], [2], [1], [1], [0, 0, 0, 1, 1, 1], [0], [0]>} : vector<16x8x32xbf16>, vector<16x8x32xbf16>, vector<16x8x8xf32> -> vector<16x8x8xf32>
      %cst_59 = arith.constant 0.176776692 : f32
      %89 = vector.broadcast %cst_59 : f32 to vector<16x8x8xf32>
      %90 = arith.mulf %88, %89 : vector<16x8x8xf32>
      %91 = vector.shape_cast %65 : vector<8x8xf32> to vector<1x8x8xf32>
      %92 = vector.broadcast %91 : vector<1x8x8xf32> to vector<16x8x8xf32>
      %93 = arith.addf %90, %92 : vector<16x8x8xf32>
      %cst_60 = arith.constant dense<0xFF800000> : vector<16x8xf32>
      %94 = vector.multi_reduction <maximumf>, %93, %cst_60 [2] : vector<16x8x8xf32> to vector<16x8xf32>
      %95 = vector.shape_cast %94 : vector<16x8xf32> to vector<16x8x1xf32>
      %96 = vector.broadcast %95 : vector<16x8x1xf32> to vector<16x8x8xf32>
      %97 = arith.subf %93, %96 : vector<16x8x8xf32>
      %98 = math.exp %97 : vector<16x8x8xf32>
      %cst_61 = arith.constant dense<0.000000e+00> : vector<16x8xf32>
      %99 = vector.multi_reduction <add>, %98, %cst_61 [2] : vector<16x8x8xf32> to vector<16x8xf32>
      %100 = vector.shape_cast %99 : vector<16x8xf32> to vector<16x8x1xf32>
      %101 = tpu.reciprocal %100 : vector<16x8x1xf32> -> vector<16x8x1xf32>
      %102 = vector.broadcast %101 : vector<16x8x1xf32> to vector<16x8x8xf32>
      %103 = arith.mulf %98, %102 : vector<16x8x8xf32>
      %104 = arith.truncf %103 : vector<16x8x8xf32> to vector<16x8x8xbf16>
      %105 = arith.truncf %85 : vector<16x8x32xf32> to vector<16x8x32xbf16>
      %cst_62 = arith.constant dense<0.000000e+00> : vector<16x8x32xf32>
      %106 = tpu.matmul %104, %105, %cst_62 {dimension_numbers = #tpu.dot_dimension_numbers<[2], [1], [1], [2], [0, 0, 0, 1, 1, 2], [0], [0]>} : vector<16x8x8xbf16>, vector<16x8x32xbf16>, vector<16x8x32xf32> -> vector<16x8x32xf32>
      %107 = vector.shape_cast %106 : vector<16x8x32xf32> to vector<128x32xf32>
      %108 = vector.extract_strided_slice %71 {offsets = [0, 0, 0], sizes = [1, 32, 32], strides = [1, 1, 1]} : vector<3x32x32xbf16> to vector<1x32x32xbf16>
      %109 = vector.shape_cast %108 : vector<1x32x32xbf16> to vector<32x32xbf16>
      %110 = vector.extract_strided_slice %73 {offsets = [0, 0, 0], sizes = [1, 1, 32], strides = [1, 1, 1]} : vector<3x1x32xf32> to vector<1x1x32xf32>
      %111 = vector.shape_cast %110 : vector<1x1x32xf32> to vector<1x32xf32>
      %112 = vector.extract_strided_slice %71 {offsets = [1, 0, 0], sizes = [1, 32, 32], strides = [1, 1, 1]} : vector<3x32x32xbf16> to vector<1x32x32xbf16>
      %113 = vector.shape_cast %112 : vector<1x32x32xbf16> to vector<32x32xbf16>
      %114 = vector.extract_strided_slice %73 {offsets = [1, 0, 0], sizes = [1, 1, 32], strides = [1, 1, 1]} : vector<3x1x32xf32> to vector<1x1x32xf32>
      %115 = vector.shape_cast %114 : vector<1x1x32xf32> to vector<1x32xf32>
      %116 = vector.extract_strided_slice %71 {offsets = [2, 0, 0], sizes = [1, 32, 32], strides = [1, 1, 1]} : vector<3x32x32xbf16> to vector<1x32x32xbf16>
      %117 = vector.shape_cast %116 : vector<1x32x32xbf16> to vector<32x32xbf16>
      %118 = vector.extract_strided_slice %73 {offsets = [2, 0, 0], sizes = [1, 1, 32], strides = [1, 1, 1]} : vector<3x1x32xf32> to vector<1x1x32xf32>
      %119 = vector.shape_cast %118 : vector<1x1x32xf32> to vector<1x32xf32>
      %120 = arith.truncf %107 : vector<128x32xf32> to vector<128x32xbf16>
      %cst_63 = arith.constant dense<0.000000e+00> : vector<128x32xf32>
      %121 = tpu.matmul %120, %109, %cst_63 {dimension_numbers = #tpu.dot_dimension_numbers<[1], [0], [0], [1], [0, 0, 1, 1], [], []>} : vector<128x32xbf16>, vector<32x32xbf16>, vector<128x32xf32> -> vector<128x32xf32>
      %122 = vector.broadcast %111 : vector<1x32xf32> to vector<128x32xf32>
      %123 = arith.addf %121, %122 : vector<128x32xf32>
      %124 = arith.addf %123, %75 : vector<128x32xf32>
      %cst_64 = arith.constant dense<0.000000e+00> : vector<128xf32>
      %125 = vector.multi_reduction <add>, %124, %cst_64 [1] : vector<128x32xf32> to vector<128xf32>
      %126 = vector.shape_cast %125 : vector<128xf32> to vector<128x1xf32>
      %cst_65 = arith.constant 3.200000e+01 : f32
      %127 = vector.broadcast %cst_65 : f32 to vector<128x1xf32>
      %128 = arith.divf %126, %127 : vector<128x1xf32>
      %129 = vector.broadcast %128 : vector<128x1xf32> to vector<128x32xf32>
      %130 = arith.subf %124, %129 : vector<128x32xf32>
      %131 = arith.mulf %130, %130 : vector<128x32xf32>
      %cst_66 = arith.constant dense<0.000000e+00> : vector<128xf32>
      %132 = vector.multi_reduction <add>, %131, %cst_66 [1] : vector<128x32xf32> to vector<128xf32>
      %133 = vector.shape_cast %132 : vector<128xf32> to vector<128x1xf32>
      %cst_67 = arith.constant 3.200000e+01 : f32
      %134 = vector.broadcast %cst_67 : f32 to vector<128x1xf32>
      %135 = arith.divf %133, %134 : vector<128x1xf32>
      %136 = vector.broadcast %128 : vector<128x1xf32> to vector<128x32xf32>
      %137 = arith.subf %124, %136 : vector<128x32xf32>
      %cst_68 = arith.constant 9.99999974E-6 : f32
      %138 = vector.broadcast %cst_68 : f32 to vector<128x1xf32>
      %139 = arith.addf %135, %138 : vector<128x1xf32>
      %140 = math.rsqrt %139 : vector<128x1xf32>
      %141 = vector.broadcast %140 : vector<128x1xf32> to vector<128x32xf32>
      %142 = arith.mulf %137, %141 : vector<128x32xf32>
      %143 = arith.truncf %142 : vector<128x32xf32> to vector<128x32xbf16>
      %cst_69 = arith.constant dense<0.000000e+00> : vector<128x32xf32>
      %144 = tpu.matmul %143, %113, %cst_69 {dimension_numbers = #tpu.dot_dimension_numbers<[1], [0], [0], [1], [0, 0, 1, 1], [], []>} : vector<128x32xbf16>, vector<32x32xbf16>, vector<128x32xf32> -> vector<128x32xf32>
      %145 = vector.broadcast %115 : vector<1x32xf32> to vector<128x32xf32>
      %146 = arith.addf %144, %145 : vector<128x32xf32>
      %cst_70 = arith.constant 0.000000e+00 : f32
      %147 = vector.broadcast %cst_70 : f32 to vector<128x32xf32>
      %148 = arith.maximumf %146, %147 : vector<128x32xf32>
      %149 = arith.truncf %148 : vector<128x32xf32> to vector<128x32xbf16>
      %cst_71 = arith.constant dense<0.000000e+00> : vector<128x32xf32>
      %150 = tpu.matmul %149, %117, %cst_71 {dimension_numbers = #tpu.dot_dimension_numbers<[1], [0], [0], [1], [0, 0, 1, 1], [], []>} : vector<128x32xbf16>, vector<32x32xbf16>, vector<128x32xf32> -> vector<128x32xf32>
      %151 = vector.broadcast %119 : vector<1x32xf32> to vector<128x32xf32>
      %152 = arith.addf %150, %151 : vector<128x32xf32>
      %153 = arith.addf %152, %142 : vector<128x32xf32>
      %cst_72 = arith.constant dense<0.000000e+00> : vector<128xf32>
      %154 = vector.multi_reduction <add>, %153, %cst_72 [1] : vector<128x32xf32> to vector<128xf32>
      %155 = vector.shape_cast %154 : vector<128xf32> to vector<128x1xf32>
      %cst_73 = arith.constant 3.200000e+01 : f32
      %156 = vector.broadcast %cst_73 : f32 to vector<128x1xf32>
      %157 = arith.divf %155, %156 : vector<128x1xf32>
      %158 = vector.broadcast %157 : vector<128x1xf32> to vector<128x32xf32>
      %159 = arith.subf %153, %158 : vector<128x32xf32>
      %160 = arith.mulf %159, %159 : vector<128x32xf32>
      %cst_74 = arith.constant dense<0.000000e+00> : vector<128xf32>
      %161 = vector.multi_reduction <add>, %160, %cst_74 [1] : vector<128x32xf32> to vector<128xf32>
      %162 = vector.shape_cast %161 : vector<128xf32> to vector<128x1xf32>
      %cst_75 = arith.constant 3.200000e+01 : f32
      %163 = vector.broadcast %cst_75 : f32 to vector<128x1xf32>
      %164 = arith.divf %162, %163 : vector<128x1xf32>
      %165 = vector.broadcast %157 : vector<128x1xf32> to vector<128x32xf32>
      %166 = arith.subf %153, %165 : vector<128x32xf32>
      %cst_76 = arith.constant 9.99999974E-6 : f32
      %167 = vector.broadcast %cst_76 : f32 to vector<128x1xf32>
      %168 = arith.addf %164, %167 : vector<128x1xf32>
      %169 = math.rsqrt %168 : vector<128x1xf32>
      %170 = vector.broadcast %169 : vector<128x1xf32> to vector<128x32xf32>
      %171 = arith.mulf %166, %170 : vector<128x32xf32>
      %172 = vector.shape_cast %171 : vector<128x32xf32> to vector<16x8x32xf32>
      %173 = tpu.transpose %172, [1, 0, 2] : vector<16x8x32xf32> -> vector<8x16x32xf32>
      %c0_77 = arith.constant 0 : index
      %c0_78 = arith.constant 0 : index
      %c0_79 = arith.constant 0 : index
      %174 = vector.load %arg15[%c0_77, %c0_78, %c0_79] : memref<8x16x32xf32, #tpu.memory_space<vmem>>, vector<8x16x32xf32>
      tpu.vector_store %arg15[%c0_77, %c0_78, %c0_79], %173 {strides = array<i32>} : memref<8x16x32xf32, #tpu.memory_space<vmem>>, vector<8x16x32xf32>,
    } else {
    }
    %c1_i32 = arith.constant 1 : i32
    %4 = arith.cmpi eq, %arg1, %c1_i32 : i32
    %5 = arith.extui %4 : i1 to i32
    %c0_i32_2 = arith.constant 0 : i32
    %6 = arith.cmpi ne, %5, %c0_i32_2 : i32
    scf.if %6 {
      %c0_33 = arith.constant 0 : index
      %c0_34 = arith.constant 0 : index
      %c0_35 = arith.constant 0 : index
      %c0_36 = arith.constant 0 : index
      %60 = vector.load %arg3[%c0_33, %c0_34, %c0_35, %c0_36] : memref<1x8x16x32xf32, #tpu.memory_space<vmem>>, vector<1x8x16x32xf32>
      %61 = vector.shape_cast %60 : vector<1x8x16x32xf32> to vector<8x16x32xf32>
      %cst_37 = arith.constant 0.000000e+00 : f32
      %62 = vector.broadcast %cst_37 : f32 to vector<1x16x32xf32>
      %63 = vector.extract_strided_slice %61 {offsets = [0, 0, 0], sizes = [7, 16, 32], strides = [1, 1, 1]} : vector<8x16x32xf32> to vector<7x16x32xf32>
      %64 = tpu.concatenate %62, %63 in 0 : vector<1x16x32xf32>, vector<7x16x32xf32> -> vector<8x16x32xf32>
      %65 = vector.shape_cast %61 : vector<8x16x32xf32> to vector<128x32xf32>
      %c1 = arith.constant 1 : index
      %c0_38 = arith.constant 0 : index
      %c0_39 = arith.constant 0 : index
      %66 = vector.load %arg11[%c1, %c0_38, %c0_39] : memref<2x32x32xbf16, #tpu.memory_space<vmem>>, vector<1x32x32xbf16>
      %67 = vector.shape_cast %66 : vector<1x32x32xbf16> to vector<32x32xbf16>
      %68 = arith.truncf %65 : vector<128x32xf32> to vector<128x32xbf16>
      %cst_40 = arith.constant dense<0.000000e+00> : vector<128x32xf32>
      %69 = tpu.matmul %68, %67, %cst_40 {dimension_numbers = #tpu.dot_dimension_numbers<[1], [0], [0], [1], [0, 0, 1, 1], [], []>} : vector<128x32xbf16>, vector<32x32xbf16>, vector<128x32xf32> -> vector<128x32xf32>
      %70 = vector.shape_cast %64 : vector<8x16x32xf32> to vector<128x32xf32>
      %c0_41 = arith.constant 0 : index
      %c0_42 = arith.constant 0 : index
      %c0_43 = arith.constant 0 : index
      %71 = vector.load %arg11[%c0_41, %c0_42, %c0_43] : memref<2x32x32xbf16, #tpu.memory_space<vmem>>, vector<1x32x32xbf16>
      %72 = vector.shape_cast %71 : vector<1x32x32xbf16> to vector<32x32xbf16>
      %73 = arith.truncf %70 : vector<128x32xf32> to vector<128x32xbf16>
      %cst_44 = arith.constant dense<0.000000e+00> : vector<128x32xf32>
      %74 = tpu.matmul %73, %72, %cst_44 {dimension_numbers = #tpu.dot_dimension_numbers<[1], [0], [0], [1], [0, 0, 1, 1], [], []>} : vector<128x32xbf16>, vector<32x32xbf16>, vector<128x32xf32> -> vector<128x32xf32>
      %75 = arith.addf %69, %74 : vector<128x32xf32>
      %c0_45 = arith.constant 0 : index
      %c0_46 = arith.constant 0 : index
      %76 = vector.load %arg12[%c0_45, %c0_46] : memref<1x32xf32, #tpu.memory_space<vmem>>, vector<1x32xf32>
      %77 = vector.broadcast %76 : vector<1x32xf32> to vector<128x32xf32>
      %78 = arith.addf %75, %77 : vector<128x32xf32>
      %cst_47 = arith.constant 0.000000e+00 : f32
      %79 = vector.broadcast %cst_47 : f32 to vector<128x32xf32>
      %80 = arith.maximumf %78, %79 : vector<128x32xf32>
      %81 = vector.shape_cast %80 : vector<128x32xf32> to vector<8x16x32xf32>
      %c0_48 = arith.constant 0 : index
      %c0_49 = arith.constant 0 : index
      %c0_50 = arith.constant 0 : index
      %82 = vector.load %arg15[%c0_48, %c0_49, %c0_50] : memref<8x16x32xf32, #tpu.memory_space<vmem>>, vector<8x16x32xf32>
      tpu.vector_store %arg15[%c0_48, %c0_49, %c0_50], %81 {strides = array<i32>} : memref<8x16x32xf32, #tpu.memory_space<vmem>>, vector<8x16x32xf32>,
    } else {
    }
    %c1_i32_3 = arith.constant 1 : i32
    %7 = arith.addi %c1_i32_3, %arg1 : i32
    %8 = arith.index_cast %7 : i32 to index
    %c0_4 = arith.constant 0 : index
    %c0_5 = arith.constant 0 : index
    %9 = vector.load %arg7[%8, %c0_4, %c0_5] : memref<3x32x96xbf16, #tpu.memory_space<vmem>>, vector<1x32x96xbf16>
    %10 = vector.shape_cast %9 : vector<1x32x96xbf16> to vector<32x96xbf16>
    %11 = arith.index_cast %7 : i32 to index
    %c0_6 = arith.constant 0 : index
    %c0_7 = arith.constant 0 : index
    %12 = vector.load %arg8[%11, %c0_6, %c0_7] : memref<3x1x96xf32, #tpu.memory_space<vmem>>, vector<1x1x96xf32>
    %13 = vector.shape_cast %12 : vector<1x1x96xf32> to vector<1x96xf32>
    %14 = arith.index_cast %7 : i32 to index
    %c0_8 = arith.constant 0 : index
    %c0_9 = arith.constant 0 : index
    %c0_10 = arith.constant 0 : index
    %15 = vector.load %arg9[%14, %c0_8, %c0_9, %c0_10] : memref<3x3x32x32xbf16, #tpu.memory_space<vmem>>, vector<1x3x32x32xbf16>
    %16 = vector.shape_cast %15 : vector<1x3x32x32xbf16> to vector<3x32x32xbf16>
    %17 = arith.index_cast %7 : i32 to index
    %c0_11 = arith.constant 0 : index
    %c0_12 = arith.constant 0 : index
    %c0_13 = arith.constant 0 : index
    %18 = vector.load %arg10[%17, %c0_11, %c0_12, %c0_13] : memref<3x3x1x32xf32, #tpu.memory_space<vmem>>, vector<1x3x1x32xf32>
    %19 = vector.shape_cast %18 : vector<1x3x1x32xf32> to vector<3x1x32xf32>
    %c0_14 = arith.constant 0 : index
    %c0_15 = arith.constant 0 : index
    %c0_16 = arith.constant 0 : index
    %20 = vector.load %arg15[%c0_14, %c0_15, %c0_16] : memref<8x16x32xf32, #tpu.memory_space<vmem>>, vector<8x16x32xf32>
    %21 = vector.shape_cast %0 : vector<16x32xf32> to vector<1x16x32xf32>
    %22 = vector.broadcast %21 : vector<1x16x32xf32> to vector<8x16x32xf32>
    %23 = arith.addf %20, %22 : vector<8x16x32xf32>
    %24 = vector.shape_cast %23 : vector<8x16x32xf32> to vector<128x32xf32>
    %25 = arith.truncf %24 : vector<128x32xf32> to vector<128x32xbf16>
    %cst = arith.constant dense<0.000000e+00> : vector<128x96xf32>
    %26 = tpu.matmul %25, %10, %cst {dimension_numbers = #tpu.dot_dimension_numbers<[1], [0], [0], [1], [0, 0, 1, 1], [], []>} : vector<128x32xbf16>, vector<32x96xbf16>, vector<128x96xf32> -> vector<128x96xf32>
    %27 = vector.broadcast %13 : vector<1x96xf32> to vector<128x96xf32>
    %28 = arith.addf %26, %27 : vector<128x96xf32>
    %29 = vector.extract_strided_slice %28 {offsets = [0, 0], sizes = [128, 32], strides = [1, 1]} : vector<128x96xf32> to vector<128x32xf32>
    %30 = vector.shape_cast %29 : vector<128x32xf32> to vector<8x16x32xf32>
    %31 = arith.truncf %30 : vector<8x16x32xf32> to vector<8x16x32xbf16>
    %c0_17 = arith.constant 0 : index
    %c0_18 = arith.constant 0 : index
    %c0_19 = arith.constant 0 : index
    %32 = vector.load %arg16[%c0_17, %c0_18, %c0_19] : memref<8x16x32xbf16, #tpu.memory_space<vmem>>, vector<8x16x32xbf16>
    tpu.vector_store %arg16[%c0_17, %c0_18, %c0_19], %31 {strides = array<i32>} : memref<8x16x32xbf16, #tpu.memory_space<vmem>>, vector<8x16x32xbf16>,
    %33 = vector.extract_strided_slice %28 {offsets = [0, 32], sizes = [128, 32], strides = [1, 1]} : vector<128x96xf32> to vector<128x32xf32>
    %34 = vector.shape_cast %33 : vector<128x32xf32> to vector<8x16x32xf32>
    %35 = arith.truncf %34 : vector<8x16x32xf32> to vector<8x16x32xbf16>
    %c0_20 = arith.constant 0 : index
    %c0_21 = arith.constant 0 : index
    %c0_22 = arith.constant 0 : index
    %36 = vector.load %arg17[%c0_20, %c0_21, %c0_22] : memref<8x16x32xbf16, #tpu.memory_space<vmem>>, vector<8x16x32xbf16>
    tpu.vector_store %arg17[%c0_20, %c0_21, %c0_22], %35 {strides = array<i32>} : memref<8x16x32xbf16, #tpu.memory_space<vmem>>, vector<8x16x32xbf16>,
    %37 = vector.extract_strided_slice %28 {offsets = [0, 64], sizes = [128, 32], strides = [1, 1]} : vector<128x96xf32> to vector<128x32xf32>
    %38 = vector.shape_cast %37 : vector<128x32xf32> to vector<8x16x32xf32>
    %39 = arith.truncf %38 : vector<8x16x32xf32> to vector<8x16x32xbf16>
    %c0_23 = arith.constant 0 : index
    %c0_24 = arith.constant 0 : index
    %c0_25 = arith.constant 0 : index
    %40 = vector.load %arg18[%c0_23, %c0_24, %c0_25] : memref<8x16x32xbf16, #tpu.memory_space<vmem>>, vector<8x16x32xbf16>
    tpu.vector_store %arg18[%c0_23, %c0_24, %c0_25], %39 {strides = array<i32>} : memref<8x16x32xbf16, #tpu.memory_space<vmem>>, vector<8x16x32xbf16>,
    %41 = vector.extract_strided_slice %16 {offsets = [0, 0, 0], sizes = [1, 32, 32], strides = [1, 1, 1]} : vector<3x32x32xbf16> to vector<1x32x32xbf16>
    %42 = vector.shape_cast %41 : vector<1x32x32xbf16> to vector<32x32xbf16>
    %43 = vector.extract_strided_slice %16 {offsets = [1, 0, 0], sizes = [1, 32, 32], strides = [1, 1, 1]} : vector<3x32x32xbf16> to vector<1x32x32xbf16>
    %44 = vector.shape_cast %43 : vector<1x32x32xbf16> to vector<32x32xbf16>
    %45 = vector.extract_strided_slice %16 {offsets = [2, 0, 0], sizes = [1, 32, 32], strides = [1, 1, 1]} : vector<3x32x32xbf16> to vector<1x32x32xbf16>
    %46 = vector.shape_cast %45 : vector<1x32x32xbf16> to vector<32x32xbf16>
    %47 = vector.extract_strided_slice %19 {offsets = [0, 0, 0], sizes = [1, 1, 32], strides = [1, 1, 1]} : vector<3x1x32xf32> to vector<1x1x32xf32>
    %48 = vector.shape_cast %47 : vector<1x1x32xf32> to vector<1x32xf32>
    %49 = vector.extract_strided_slice %19 {offsets = [1, 0, 0], sizes = [1, 1, 32], strides = [1, 1, 1]} : vector<3x1x32xf32> to vector<1x1x32xf32>
    %50 = vector.shape_cast %49 : vector<1x1x32xf32> to vector<1x32xf32>
    %51 = vector.extract_strided_slice %19 {offsets = [2, 0, 0], sizes = [1, 1, 32], strides = [1, 1, 1]} : vector<3x1x32xf32> to vector<1x1x32xf32>
    %52 = vector.shape_cast %51 : vector<1x1x32xf32> to vector<1x32xf32>
    %c0_i32_26 = arith.constant 0 : i32
    %c8_i32 = arith.constant 8 : i32
    %53 = arith.addi %c0_i32_26, %c8_i32 : i32
    %c1_i32_27 = arith.constant 1 : i32
    scf.for %arg19 = %c0_i32_26 to %53 step %c1_i32_27  : i32 {
      %60 = arith.index_cast %arg19 : i32 to index
      %c0_33 = arith.constant 0 : index
      %c0_34 = arith.constant 0 : index
      %61 = vector.load %arg15[%60, %c0_33, %c0_34] : memref<8x16x32xf32, #tpu.memory_space<vmem>>, vector<1x16x32xf32>
      %62 = vector.shape_cast %61 : vector<1x16x32xf32> to vector<16x32xf32>
      %63 = arith.addf %62, %0 : vector<16x32xf32>
      %64 = arith.index_cast %arg19 : i32 to index
      %c0_35 = arith.constant 0 : index
      %c0_36 = arith.constant 0 : index
      %65 = vector.load %arg16[%64, %c0_35, %c0_36] : memref<8x16x32xbf16, #tpu.memory_space<vmem>>, vector<1x16x32xbf16>
      %66 = vector.shape_cast %65 : vector<1x16x32xbf16> to vector<16x32xbf16>
      %67 = arith.index_cast %arg19 : i32 to index
      %c0_37 = arith.constant 0 : index
      %c0_38 = arith.constant 0 : index
      %68 = vector.load %arg17[%67, %c0_37, %c0_38] : memref<8x16x32xbf16, #tpu.memory_space<vmem>>, vector<1x16x32xbf16>
      %69 = vector.shape_cast %68 : vector<1x16x32xbf16> to vector<16x32xbf16>
      %70 = arith.index_cast %arg19 : i32 to index
      %c0_39 = arith.constant 0 : index
      %c0_40 = arith.constant 0 : index
      %71 = vector.load %arg18[%70, %c0_39, %c0_40] : memref<8x16x32xbf16, #tpu.memory_space<vmem>>, vector<1x16x32xbf16>
      %72 = vector.shape_cast %71 : vector<1x16x32xbf16> to vector<16x32xbf16>
      %cst_41 = arith.constant dense<0.000000e+00> : vector<16x16xf32>
      %73 = tpu.matmul %66, %69, %cst_41 {dimension_numbers = #tpu.dot_dimension_numbers<[1], [1], [0], [0], [0, 0, 1, 0], [], []>} : vector<16x32xbf16>, vector<16x32xbf16>, vector<16x16xf32> -> vector<16x16xf32>
      %cst_42 = arith.constant 0.176776692 : f32
      %74 = vector.broadcast %cst_42 : f32 to vector<16x16xf32>
      %75 = arith.mulf %73, %74 : vector<16x16xf32>
      %cst_43 = arith.constant dense<0xFF800000> : vector<16xf32>
      %76 = vector.multi_reduction <maximumf>, %75, %cst_43 [1] : vector<16x16xf32> to vector<16xf32>
      %77 = vector.shape_cast %76 : vector<16xf32> to vector<16x1xf32>
      %78 = vector.broadcast %77 : vector<16x1xf32> to vector<16x16xf32>
      %79 = arith.subf %75, %78 : vector<16x16xf32>
      %80 = math.exp %79 : vector<16x16xf32>
      %cst_44 = arith.constant dense<0.000000e+00> : vector<16xf32>
      %81 = vector.multi_reduction <add>, %80, %cst_44 [1] : vector<16x16xf32> to vector<16xf32>
      %82 = vector.shape_cast %81 : vector<16xf32> to vector<16x1xf32>
      %83 = tpu.reciprocal %82 : vector<16x1xf32> -> vector<16x1xf32>
      %84 = vector.broadcast %83 : vector<16x1xf32> to vector<16x16xf32>
      %85 = arith.mulf %80, %84 : vector<16x16xf32>
      %86 = arith.truncf %85 : vector<16x16xf32> to vector<16x16xbf16>
      %cst_45 = arith.constant dense<0.000000e+00> : vector<16x32xf32>
      %87 = tpu.matmul %86, %72, %cst_45 {dimension_numbers = #tpu.dot_dimension_numbers<[1], [0], [0], [1], [0, 0, 1, 1], [], []>} : vector<16x16xbf16>, vector<16x32xbf16>, vector<16x32xf32> -> vector<16x32xf32>
      %88 = arith.truncf %87 : vector<16x32xf32> to vector<16x32xbf16>
      %cst_46 = arith.constant dense<0.000000e+00> : vector<16x32xf32>
      %89 = tpu.matmul %88, %42, %cst_46 {dimension_numbers = #tpu.dot_dimension_numbers<[1], [0], [0], [1], [0, 0, 1, 1], [], []>} : vector<16x32xbf16>, vector<32x32xbf16>, vector<16x32xf32> -> vector<16x32xf32>
      %90 = vector.broadcast %48 : vector<1x32xf32> to vector<16x32xf32>
      %91 = arith.addf %89, %90 : vector<16x32xf32>
      %92 = arith.addf %91, %63 : vector<16x32xf32>
      %cst_47 = arith.constant dense<0.000000e+00> : vector<16xf32>
      %93 = vector.multi_reduction <add>, %92, %cst_47 [1] : vector<16x32xf32> to vector<16xf32>
      %94 = vector.shape_cast %93 : vector<16xf32> to vector<16x1xf32>
      %cst_48 = arith.constant 3.200000e+01 : f32
      %95 = vector.broadcast %cst_48 : f32 to vector<16x1xf32>
      %96 = arith.divf %94, %95 : vector<16x1xf32>
      %97 = vector.broadcast %96 : vector<16x1xf32> to vector<16x32xf32>
      %98 = arith.subf %92, %97 : vector<16x32xf32>
      %99 = arith.mulf %98, %98 : vector<16x32xf32>
      %cst_49 = arith.constant dense<0.000000e+00> : vector<16xf32>
      %100 = vector.multi_reduction <add>, %99, %cst_49 [1] : vector<16x32xf32> to vector<16xf32>
      %101 = vector.shape_cast %100 : vector<16xf32> to vector<16x1xf32>
      %cst_50 = arith.constant 3.200000e+01 : f32
      %102 = vector.broadcast %cst_50 : f32 to vector<16x1xf32>
      %103 = arith.divf %101, %102 : vector<16x1xf32>
      %104 = vector.broadcast %96 : vector<16x1xf32> to vector<16x32xf32>
      %105 = arith.subf %92, %104 : vector<16x32xf32>
      %cst_51 = arith.constant 9.99999974E-6 : f32
      %106 = vector.broadcast %cst_51 : f32 to vector<16x1xf32>
      %107 = arith.addf %103, %106 : vector<16x1xf32>
      %108 = math.rsqrt %107 : vector<16x1xf32>
      %109 = vector.broadcast %108 : vector<16x1xf32> to vector<16x32xf32>
      %110 = arith.mulf %105, %109 : vector<16x32xf32>
      %111 = arith.truncf %110 : vector<16x32xf32> to vector<16x32xbf16>
      %cst_52 = arith.constant dense<0.000000e+00> : vector<16x32xf32>
      %112 = tpu.matmul %111, %44, %cst_52 {dimension_numbers = #tpu.dot_dimension_numbers<[1], [0], [0], [1], [0, 0, 1, 1], [], []>} : vector<16x32xbf16>, vector<32x32xbf16>, vector<16x32xf32> -> vector<16x32xf32>
      %113 = vector.broadcast %50 : vector<1x32xf32> to vector<16x32xf32>
      %114 = arith.addf %112, %113 : vector<16x32xf32>
      %cst_53 = arith.constant 0.000000e+00 : f32
      %115 = vector.broadcast %cst_53 : f32 to vector<16x32xf32>
      %116 = arith.maximumf %114, %115 : vector<16x32xf32>
      %117 = arith.truncf %116 : vector<16x32xf32> to vector<16x32xbf16>
      %cst_54 = arith.constant dense<0.000000e+00> : vector<16x32xf32>
      %118 = tpu.matmul %117, %46, %cst_54 {dimension_numbers = #tpu.dot_dimension_numbers<[1], [0], [0], [1], [0, 0, 1, 1], [], []>} : vector<16x32xbf16>, vector<32x32xbf16>, vector<16x32xf32> -> vector<16x32xf32>
      %119 = vector.broadcast %52 : vector<1x32xf32> to vector<16x32xf32>
      %120 = arith.addf %118, %119 : vector<16x32xf32>
      %121 = arith.addf %120, %110 : vector<16x32xf32>
      %cst_55 = arith.constant dense<0.000000e+00> : vector<16xf32>
      %122 = vector.multi_reduction <add>, %121, %cst_55 [1] : vector<16x32xf32> to vector<16xf32>
      %123 = vector.shape_cast %122 : vector<16xf32> to vector<16x1xf32>
      %cst_56 = arith.constant 3.200000e+01 : f32
      %124 = vector.broadcast %cst_56 : f32 to vector<16x1xf32>
      %125 = arith.divf %123, %124 : vector<16x1xf32>
      %126 = vector.broadcast %125 : vector<16x1xf32> to vector<16x32xf32>
      %127 = arith.subf %121, %126 : vector<16x32xf32>
      %128 = arith.mulf %127, %127 : vector<16x32xf32>
      %cst_57 = arith.constant dense<0.000000e+00> : vector<16xf32>
      %129 = vector.multi_reduction <add>, %128, %cst_57 [1] : vector<16x32xf32> to vector<16xf32>
      %130 = vector.shape_cast %129 : vector<16xf32> to vector<16x1xf32>
      %cst_58 = arith.constant 3.200000e+01 : f32
      %131 = vector.broadcast %cst_58 : f32 to vector<16x1xf32>
      %132 = arith.divf %130, %131 : vector<16x1xf32>
      %133 = vector.broadcast %125 : vector<16x1xf32> to vector<16x32xf32>
      %134 = arith.subf %121, %133 : vector<16x32xf32>
      %cst_59 = arith.constant 9.99999974E-6 : f32
      %135 = vector.broadcast %cst_59 : f32 to vector<16x1xf32>
      %136 = arith.addf %132, %135 : vector<16x1xf32>
      %137 = math.rsqrt %136 : vector<16x1xf32>
      %138 = vector.broadcast %137 : vector<16x1xf32> to vector<16x32xf32>
      %139 = arith.mulf %134, %138 : vector<16x32xf32>
      %140 = arith.addf %139, %62 : vector<16x32xf32>
      %141 = arith.index_cast %arg19 : i32 to index
      %c0_60 = arith.constant 0 : index
      %c0_61 = arith.constant 0 : index
      %142 = vector.load %arg15[%141, %c0_60, %c0_61] : memref<8x16x32xf32, #tpu.memory_space<vmem>>, vector<1x16x32xf32>
      %143 = vector.shape_cast %142 : vector<1x16x32xf32> to vector<16x32xf32>
      %144 = vector.shape_cast %140 : vector<16x32xf32> to vector<1x16x32xf32>
      tpu.vector_store %arg15[%141, %c0_60, %c0_61], %144 {strides = array<i32>} : memref<8x16x32xf32, #tpu.memory_space<vmem>>, vector<1x16x32xf32>,
    }
    %c8_i32_28 = arith.constant 8 : i32
    %c0_i32_29 = arith.constant 0 : i32
    %54 = arith.cmpi eq, %arg1, %c0_i32_29 : i32
    %55 = arith.extui %54 : i1 to i32
    %c0_i32_30 = arith.constant 0 : i32
    %56 = arith.cmpi ne, %55, %c0_i32_30 : i32
    scf.if %56 {
      %c0_33 = arith.constant 0 : index
      %c0_34 = arith.constant 0 : index
      %c0_35 = arith.constant 0 : index
      %60 = vector.load %arg15[%c0_33, %c0_34, %c0_35] : memref<8x16x32xf32, #tpu.memory_space<vmem>>, vector<8x16x32xf32>
      %c0_36 = arith.constant 0 : index
      %c0_37 = arith.constant 0 : index
      %c0_38 = arith.constant 0 : index
      %c0_39 = arith.constant 0 : index
      %61 = vector.load %arg13[%c0_36, %c0_37, %c0_38, %c0_39] : memref<1x8x16x32xf32, #tpu.memory_space<vmem>>, vector<1x8x16x32xf32>
      %62 = vector.shape_cast %61 : vector<1x8x16x32xf32> to vector<8x16x32xf32>
      %63 = vector.shape_cast %60 : vector<8x16x32xf32> to vector<1x8x16x32xf32>
      tpu.vector_store %arg13[%c0_36, %c0_37, %c0_38, %c0_39], %63 {strides = array<i32>} : memref<1x8x16x32xf32, #tpu.memory_space<vmem>>, vector<1x8x16x32xf32>,
    } else {
    }
    %c1_i32_31 = arith.constant 1 : i32
    %57 = arith.cmpi eq, %arg1, %c1_i32_31 : i32
    %58 = arith.extui %57 : i1 to i32
    %c0_i32_32 = arith.constant 0 : i32
    %59 = arith.cmpi ne, %58, %c0_i32_32 : i32
    scf.if %59 {
      %c0_33 = arith.constant 0 : index
      %c0_34 = arith.constant 0 : index
      %c0_35 = arith.constant 0 : index
      %60 = vector.load %arg15[%c0_33, %c0_34, %c0_35] : memref<8x16x32xf32, #tpu.memory_space<vmem>>, vector<8x16x32xf32>
      %c0_36 = arith.constant 0 : index
      %c0_37 = arith.constant 0 : index
      %c0_38 = arith.constant 0 : index
      %c0_39 = arith.constant 0 : index
      %61 = vector.load %arg14[%c0_36, %c0_37, %c0_38, %c0_39] : memref<1x8x16x32xf32, #tpu.memory_space<vmem>>, vector<1x8x16x32xf32>
      %62 = vector.shape_cast %61 : vector<1x8x16x32xf32> to vector<8x16x32xf32>
      %63 = vector.shape_cast %60 : vector<8x16x32xf32> to vector<1x8x16x32xf32>
      tpu.vector_store %arg14[%c0_36, %c0_37, %c0_38, %c0_39], %63 {strides = array<i32>} : memref<1x8x16x32xf32, #tpu.memory_space<vmem>>, vector<1x8x16x32xf32>,
    } else {
    }
    return
  }
  func.func @transform_0(%arg0: i32, %arg1: i32) -> (i32, i32, i32, i32) {
    %c0_i32 = arith.constant 0 : i32
    %c0_i32_0 = arith.constant 0 : i32
    %c0_i32_1 = arith.constant 0 : i32
    %c0_i32_2 = arith.constant 0 : i32
    return %arg0, %c0_i32, %c0_i32_0, %c0_i32_1 : i32, i32, i32, i32
  }
  func.func @transform_1(%arg0: i32, %arg1: i32) -> (i32, i32, i32, i32) {
    %c0_i32 = arith.constant 0 : i32
    %c0_i32_0 = arith.constant 0 : i32
    %c0_i32_1 = arith.constant 0 : i32
    %c0_i32_2 = arith.constant 0 : i32
    return %arg0, %c0_i32, %c0_i32_0, %c0_i32_1 : i32, i32, i32, i32
  }
  func.func @transform_2(%arg0: i32, %arg1: i32) -> (i32, i32, i32, i32) {
    %c0_i32 = arith.constant 0 : i32
    %c0_i32_0 = arith.constant 0 : i32
    %c0_i32_1 = arith.constant 0 : i32
    %c0_i32_2 = arith.constant 0 : i32
    return %arg0, %c0_i32, %c0_i32_0, %c0_i32_1 : i32, i32, i32, i32
  }
  func.func @transform_3(%arg0: i32, %arg1: i32) -> (i32, i32) {
    %c0_i32 = arith.constant 0 : i32
    %c0_i32_0 = arith.constant 0 : i32
    %c0_i32_1 = arith.constant 0 : i32
    return %c0_i32, %c0_i32_0 : i32, i32
  }
  func.func @transform_4(%arg0: i32, %arg1: i32) -> (i32, i32) {
    %c0_i32 = arith.constant 0 : i32
    %c0_i32_0 = arith.constant 0 : i32
    %c0_i32_1 = arith.constant 0 : i32
    return %c0_i32, %c0_i32_0 : i32, i32
  }
  func.func @transform_5(%arg0: i32, %arg1: i32) -> (i32, i32, i32) {
    %c0_i32 = arith.constant 0 : i32
    %c0_i32_0 = arith.constant 0 : i32
    %c0_i32_1 = arith.constant 0 : i32
    %c0_i32_2 = arith.constant 0 : i32
    return %c0_i32, %c0_i32_0, %c0_i32_1 : i32, i32, i32
  }
  func.func @transform_6(%arg0: i32, %arg1: i32) -> (i32, i32, i32) {
    %c0_i32 = arith.constant 0 : i32
    %c0_i32_0 = arith.constant 0 : i32
    %c0_i32_1 = arith.constant 0 : i32
    %c0_i32_2 = arith.constant 0 : i32
    return %c0_i32, %c0_i32_0, %c0_i32_1 : i32, i32, i32
  }
  func.func @transform_7(%arg0: i32, %arg1: i32) -> (i32, i32, i32, i32) {
    %c0_i32 = arith.constant 0 : i32
    %c0_i32_0 = arith.constant 0 : i32
    %c0_i32_1 = arith.constant 0 : i32
    %c0_i32_2 = arith.constant 0 : i32
    %c0_i32_3 = arith.constant 0 : i32
    return %c0_i32, %c0_i32_0, %c0_i32_1, %c0_i32_2 : i32, i32, i32, i32
  }
  func.func @transform_8(%arg0: i32, %arg1: i32) -> (i32, i32, i32, i32) {
    %c0_i32 = arith.constant 0 : i32
    %c0_i32_0 = arith.constant 0 : i32
    %c0_i32_1 = arith.constant 0 : i32
    %c0_i32_2 = arith.constant 0 : i32
    %c0_i32_3 = arith.constant 0 : i32
    return %c0_i32, %c0_i32_0, %c0_i32_1, %c0_i32_2 : i32, i32, i32, i32
  }
  func.func @transform_9(%arg0: i32, %arg1: i32) -> (i32, i32, i32) {
    %c0_i32 = arith.constant 0 : i32
    %c0_i32_0 = arith.constant 0 : i32
    %c0_i32_1 = arith.constant 0 : i32
    %c0_i32_2 = arith.constant 0 : i32
    return %c0_i32, %c0_i32_0, %c0_i32_1 : i32, i32, i32
  }
  func.func @transform_10(%arg0: i32, %arg1: i32) -> (i32, i32) {
    %c0_i32 = arith.constant 0 : i32
    %c0_i32_0 = arith.constant 0 : i32
    %c0_i32_1 = arith.constant 0 : i32
    return %c0_i32, %c0_i32_0 : i32, i32
  }
  func.func @transform_11(%arg0: i32, %arg1: i32) -> (i32, i32, i32, i32) {
    %c0_i32 = arith.constant 0 : i32
    %c0_i32_0 = arith.constant 0 : i32
    %c0_i32_1 = arith.constant 0 : i32
    %c0_i32_2 = arith.constant 0 : i32
    return %arg0, %c0_i32, %c0_i32_0, %c0_i32_1 : i32, i32, i32, i32
  }
  func.func @transform_12(%arg0: i32, %arg1: i32) -> (i32, i32, i32, i32) {
    %c0_i32 = arith.constant 0 : i32
    %c0_i32_0 = arith.constant 0 : i32
    %c0_i32_1 = arith.constant 0 : i32
    %c0_i32_2 = arith.constant 0 : i32
    return %arg0, %c0_i32, %c0_i32_0, %c0_i32_1 : i32, i32, i32, i32
  }
}

</mosaic_0001>

<llo_original>
// kernel: dual_encoder_forward.1
$region0: #{dual_encoder_forward.1}
  #allocation0 [shape = 'u32[]', space=smem, size = 0x4, offset = 0x4, fixed_abs, tag = 'smem constant byte address 0x4 - core index']
  #allocation1 [shape = 'u32[72,128]{1,0:T(1,128)}', space=vmem, size = 0x9000, scoped, tag = 'internal scratch']
  #allocation2 [shape = 'f32[8,16,32]{2,1,0:T(8,128)}', space=vmem, size = 0x10000, scoped, tag = 'scratch operand']
  #allocation3 [shape = 'bf16[8,16,32]{2,1,0:T(8,128)(2,1)}', space=vmem, size = 0x8000, scoped, tag = 'scratch operand']
  #allocation4 [shape = 'bf16[8,16,32]{2,1,0:T(8,128)(2,1)}', space=vmem, size = 0x8000, scoped, tag = 'scratch operand']
  #allocation5 [shape = 'bf16[8,16,32]{2,1,0:T(8,128)(2,1)}', space=vmem, size = 0x8000, scoped, tag = 'scratch operand']
  %s0 = inlined_call_operand.hbm [shape: f32[2,8,16,32], index: 0, kind: input, shape index: {}]
  %s1 = inlined_call_operand.hbm [shape: f32[2,8,16,32], index: 1, kind: input, shape index: {}]
  %s2 = inlined_call_operand.hbm [shape: f32[2,8,16,32], index: 2, kind: input, shape index: {}]
  %s3 = inlined_call_operand.vmem [shape: f32[8,8], index: 3, kind: input, shape index: {}]
  %s4 = inlined_call_operand.hbm [shape: f32[16,32], index: 4, kind: input, shape index: {}]
  %s5 = inlined_call_operand.hbm [shape: bf16[3,32,96], index: 5, kind: input, shape index: {}]
  %s6 = inlined_call_operand.hbm [shape: f32[3,1,96], index: 6, kind: input, shape index: {}]
  %s7 = inlined_call_operand.hbm [shape: bf16[3,3,32,32], index: 7, kind: input, shape index: {}]
  %s8 = inlined_call_operand.vmem [shape: f32[3,3,1,32], index: 8, kind: input, shape index: {}]
  %s9 = inlined_call_operand.hbm [shape: bf16[2,32,32], index: 9, kind: input, shape index: {}]
  %s10 = inlined_call_operand.vmem [shape: f32[1,32], index: 10, kind: input, shape index: {}]
  %s11 = inlined_call_operand.hbm [shape: f32[2,8,16,32], index: 11, kind: output, shape index: {0}]
  %s12 = inlined_call_operand.hbm [shape: f32[2,8,16,32], index: 12, kind: output, shape index: {1}]
  %13 = xla_tuple %s11, %s12
  %s14 = sld [smem:[#allocation0]]
  $region140: #{dual_encoder_forward.1} parent=0
    _
  %s16 = ssub.s32 1, %s14
  %s17 = scalar_select 0, %s16, %s14
  $region1: #{dual_encoder_forward.1} parent=0
    #allocation6 [shape = 'u8[131072]{0}', space=vmem, size = 0x20000, scoped, tag = 'input window, operand 0']
    #allocation7 [shape = 's32[2]{0}', space=sflag, size = 0x8, scoped, tag = 'scoped memory for dual_encoder_forward.1']
    #allocation8 [shape = 's32[2]{0}', space=sflag, size = 0x8, scoped, tag = 'scoped memory for dual_encoder_forward.1']
    #allocation9 [shape = 'u8[131072]{0}', space=vmem, size = 0x20000, scoped, tag = 'input window, operand 1']
    #allocation10 [shape = 's32[2]{0}', space=sflag, size = 0x8, scoped, tag = 'scoped memory for dual_encoder_forward.1']
    #allocation11 [shape = 'u8[131072]{0}', space=vmem, size = 0x20000, scoped, tag = 'input window, operand 2']
    #allocation12 [shape = 'u8[8192]{0}', space=vmem, size = 0x2000, scoped, tag = 'input window, operand 4, single buffered']
    #allocation13 [shape = 's32[1]{0}', space=sflag, size = 0x4, scoped, tag = 'scoped memory for dual_encoder_forward.1']
    #allocation14 [shape = 'u8[24576]{0}', space=vmem, size = 0x6000, scoped, tag = 'input window, operand 5, single buffered']
    #allocation15 [shape = 'u8[1536]{0}', space=vmem, size = 0x800, scoped, tag = 'input window, operand 6, single buffered']
    #allocation16 [shape = 's32[1]{0}', space=sflag, size = 0x4, scoped, tag = 'scoped memory for dual_encoder_forward.1']
    #allocation17 [shape = 'u8[73728]{0}', space=vmem, size = 0x12000, scoped, tag = 'input window, operand 7, single buffered']
    #allocation18 [shape = 'u8[16384]{0}', space=vmem, size = 0x4000, scoped, tag = 'input window, operand 9, single buffered']
    #allocation19 [shape = 's32[1]{0}', space=sflag, size = 0x4, scoped, tag = 'scoped memory for dual_encoder_forward.1']
    #allocation20 [shape = 'u8[131072]{0}', space=vmem, size = 0x20000, scoped, tag = 'output window, operand 0']
    #allocation21 [shape = 'u8[131072]{0}', space=vmem, size = 0x20000, scoped, tag = 'output window, operand 1']
    #allocation22 [shape = 's32[2]{0}', space=sflag, size = 0x8, scoped, tag = 'scoped memory for dual_encoder_forward.1']
    %18 = vsyncpa [#allocation7], 0
    %s19 = scalar_lea.sflag [#allocation7], 1
    %20 = vsyncpa %s19, 0
    %21 = vsyncpa [#allocation10], 0
    %s22 = scalar_lea.sflag [#allocation10], 1
    %23 = vsyncpa %s22, 0
    %24 = vsyncpa [#allocation13], 0
    %25 = vsyncpa [#allocation16], 0
    %26 = vsyncpa [#allocation19], 0
    %27 = vsyncpa [#allocation8], 0
    %s28 = scalar_lea.sflag [#allocation8], 1
    %29 = vsyncpa %s28, 0
    %30 = vsyncpa [#allocation22], 0
    %s31 = scalar_lea.sflag [#allocation22], 1
    %32 = vsyncpa %s31, 0
    loop: start=0, step=1, limit=6
    $region2: #{dual_encoder_forward.1} parent=1 // loop_pre_header
      _
    $region3: #{dual_encoder_forward.1} parent=1 // loop_header
      %s34 = sphi 0, %s38
      %p35 = scmp.ge.s32.totalorder %s34, 6
      %s41 = sphi 0, %s53
      %s42 = sphi 0, %s49
      %s43 = sphi 0, %s41
      %s44 = sphi 0, %s42
      %s45 = sphi 0, %s43
      %s46 = sphi 0, %s44
      %s56 = sphi 0, %s58
      %s59 = sphi 0, %s56
      %s60 = sphi 0, %s59
      %s76 = sphi 0, %s60
      %s82 = sphi 0, %s84
      %s85 = sphi 0, %s82
      %s86 = sphi 0, %s85
      %s102 = sphi 0, %s86
      %s108 = sphi 0, %s110
      %s111 = sphi 0, %s108
      %s112 = sphi 0, %s111
      %s128 = sphi 0, %s112
      %s132 = sphi 0, %s132
      %s134 = sphi 0, %s132
      %s135 = sphi 0, %s134
      %s149 = sphi 0, %s135
      %s153 = sphi 0, %s153
      %s155 = sphi 0, %s153
      %s156 = sphi 0, %s155
      %s170 = sphi 0, %s156
      %s174 = sphi 0, %s174
      %s176 = sphi 0, %s174
      %s177 = sphi 0, %s176
      %s191 = sphi 0, %s177
      %s195 = sphi 0, %s195
      %s197 = sphi 0, %s195
      %s198 = sphi 0, %s197
      %s212 = sphi 0, %s198
      %s216 = sphi 0, %s216
      %s218 = sphi 0, %s216
      %s219 = sphi 0, %s218
      %s233 = sphi 0, %s219
      %s237 = sphi 0, %s237
      %s239 = sphi 0, %s237
      %s240 = sphi 0, %s239
      %s254 = sphi 0, %s240
      %s258 = sphi 0, %s258
      %s260 = sphi 0, %s258
      %s261 = sphi 0, %s260
      %s275 = sphi 0, %s261
      %s279 = sphi 0, %s279
      %s281 = sphi 0, %s279
      %s282 = sphi 0, %s281
      %s296 = sphi 0, %s282
      %s302 = sphi 0, %s304
      %s305 = sphi 0, %s302
      %s306 = sphi 0, %s305
      %s322 = sphi 0, %s306
      %s328 = sphi 0, %s330
      %s331 = sphi 0, %s328
      %s332 = sphi 0, %s331
      %s348 = sphi 0, %s332
    $region4: #{dual_encoder_forward.1} parent=1 // loop_header_branch
      %37 = sbr.rel (%p35) target = $region8
    $region5: #{dual_encoder_forward.1} parent=1 // loop_body
      %s39 = ssub.s32 %s34, 1
      %s40 = ssub.s32 %s34, 2
      %s47 = sadd.s32 1, %s42
      %p48 = scmp.ge.s32.totalorder %s47, 2
      %s49 = scalar_select %p48, 0, %s47
      %s50 = sadd.s32 1, %s41
      %s51 = scalar_select %p48, %s50, %s41
      %p52 = scmp.ge.s32.totalorder %s51, 2
      %s53 = scalar_select %p52, 0, %s51
      %s54 = ssub.s32 %s41, %s53
      %p55 = scmp.eq.s32.totalorder %s54, 0
      %s57 = sadd.s32 %s56, 1
      %s58 = scalar_select %p55, %s56, %s57
      %p61 = pneg %p55
      %p62 = scmp.eq.s32.totalorder %s34, 3
      %p63 = por %p61, %p62
      %p64 = scmp.ne.s32.totalorder %s56, %s59
      %p65 = scmp.eq.s32.totalorder %s34, 0
      %p66 = por %p64, %p65
      %p67 = scmp.ne.s32.totalorder %s56, %s59
      %p68 = scmp.eq.s32.totalorder %s39, 3
      %p69 = por %p67, %p68
      %p70 = scmp.ne.s32.totalorder %s59, %s60
      %p71 = scmp.eq.s32.totalorder %s39, 0
      %p72 = por %p70, %p71
      %p73 = scmp.ne.s32.totalorder %s59, %s60
      %p74 = scmp.eq.s32.totalorder %s40, 3
      %p75 = por %p73, %p74
      %p77 = scmp.ne.s32.totalorder %s60, %s76
      %p78 = scmp.eq.s32.totalorder %s40, 0
      %p79 = por %p77, %p78
      %s80 = ssub.s32 %s41, %s53
      %p81 = scmp.eq.s32.totalorder %s80, 0
      %s83 = sadd.s32 %s82, 1
      %s84 = scalar_select %p81, %s82, %s83
      %p87 = pneg %p81
      %p88 = scmp.eq.s32.totalorder %s34, 3
      %p89 = por %p87, %p88
      %p90 = scmp.ne.s32.totalorder %s82, %s85
      %p91 = scmp.eq.s32.totalorder %s34, 0
      %p92 = por %p90, %p91
      %p93 = scmp.ne.s32.totalorder %s82, %s85
      %p94 = scmp.eq.s32.totalorder %s39, 3
      %p95 = por %p93, %p94
      %p96 = scmp.ne.s32.totalorder %s85, %s86
      %p97 = scmp.eq.s32.totalorder %s39, 0
      %p98 = por %p96, %p97
      %p99 = scmp.ne.s32.totalorder %s85, %s86
      %p100 = scmp.eq.s32.totalorder %s40, 3
      %p101 = por %p99, %p100
      %p103 = scmp.ne.s32.totalorder %s86, %s102
      %p104 = scmp.eq.s32.totalorder %s40, 0
      %p105 = por %p103, %p104
      %s106 = ssub.s32 %s41, %s53
      %p107 = scmp.eq.s32.totalorder %s106, 0
      %s109 = sadd.s32 %s108, 1
      %s110 = scalar_select %p107, %s108, %s109
      %p113 = pneg %p107
      %p114 = scmp.eq.s32.totalorder %s34, 3
      %p115 = por %p113, %p114
      %p116 = scmp.ne.s32.totalorder %s108, %s111
      %p117 = scmp.eq.s32.totalorder %s34, 0
      %p118 = por %p116, %p117
      %p119 = scmp.ne.s32.totalorder %s108, %s111
      %p120 = scmp.eq.s32.totalorder %s39, 3
      %p121 = por %p119, %p120
      %p122 = scmp.ne.s32.totalorder %s111, %s112
      %p123 = scmp.eq.s32.totalorder %s39, 0
      %p124 = por %p122, %p123
      %p125 = scmp.ne.s32.totalorder %s111, %s112
      %p126 = scmp.eq.s32.totalorder %s40, 3
      %p127 = por %p125, %p126
      %p129 = scmp.ne.s32.totalorder %s112, %s128
      %p130 = scmp.eq.s32.totalorder %s40, 0
      %p131 = por %p129, %p130
      %s133 = sadd.s32 %s132, 1
      %p136 = scmp.eq.s32.totalorder %s34, 3
      %p137 = scmp.ne.s32.totalorder %s132, %s134
      %p138 = scmp.eq.s32.totalorder %s34, 0
      %p139 = por %p137, %p138
      %p140 = scmp.ne.s32.totalorder %s132, %s134
      %p141 = scmp.eq.s32.totalorder %s39, 3
      %p142 = por %p140, %p141
      %p143 = scmp.ne.s32.totalorder %s134, %s135
      %p144 = scmp.eq.s32.totalorder %s39, 0
      %p145 = por %p143, %p144
      %p146 = scmp.ne.s32.totalorder %s134, %s135
      %p147 = scmp.eq.s32.totalorder %s40, 3
      %p148 = por %p146, %p147
      %p150 = scmp.ne.s32.totalorder %s135, %s149
      %p151 = scmp.eq.s32.totalorder %s40, 0
      %p152 = por %p150, %p151
      %s154 = sadd.s32 %s153, 1
      %p157 = scmp.eq.s32.totalorder %s34, 3
      %p158 = scmp.ne.s32.totalorder %s153, %s155
      %p159 = scmp.eq.s32.totalorder %s34, 0
      %p160 = por %p158, %p159
      %p161 = scmp.ne.s32.totalorder %s153, %s155
      %p162 = scmp.eq.s32.totalorder %s39, 3
      %p163 = por %p161, %p162
      %p164 = scmp.ne.s32.totalorder %s155, %s156
      %p165 = scmp.eq.s32.totalorder %s39, 0
      %p166 = por %p164, %p165
      %p167 = scmp.ne.s32.totalorder %s155, %s156
      %p168 = scmp.eq.s32.totalorder %s40, 3
      %p169 = por %p167, %p168
      %p171 = scmp.ne.s32.totalorder %s156, %s170
      %p172 = scmp.eq.s32.totalorder %s40, 0
      %p173 = por %p171, %p172
      %s175 = sadd.s32 %s174, 1
      %p178 = scmp.eq.s32.totalorder %s34, 3
      %p179 = scmp.ne.s32.totalorder %s174, %s176
      %p180 = scmp.eq.s32.totalorder %s34, 0
      %p181 = por %p179, %p180
      %p182 = scmp.ne.s32.totalorder %s174, %s176
      %p183 = scmp.eq.s32.totalorder %s39, 3
      %p184 = por %p182, %p183
      %p185 = scmp.ne.s32.totalorder %s176, %s177
      %p186 = scmp.eq.s32.totalorder %s39, 0
      %p187 = por %p185, %p186
      %p188 = scmp.ne.s32.totalorder %s176, %s177
      %p189 = scmp.eq.s32.totalorder %s40, 3
      %p190 = por %p188, %p189
      %p192 = scmp.ne.s32.totalorder %s177, %s191
      %p193 = scmp.eq.s32.totalorder %s40, 0
      %p194 = por %p192, %p193
      %s196 = sadd.s32 %s195, 1
      %p199 = scmp.eq.s32.totalorder %s34, 3
      %p200 = scmp.ne.s32.totalorder %s195, %s197
      %p201 = scmp.eq.s32.totalorder %s34, 0
      %p202 = por %p200, %p201
      %p203 = scmp.ne.s32.totalorder %s195, %s197
      %p204 = scmp.eq.s32.totalorder %s39, 3
      %p205 = por %p203, %p204
      %p206 = scmp.ne.s32.totalorder %s197, %s198
      %p207 = scmp.eq.s32.totalorder %s39, 0
      %p208 = por %p206, %p207
      %p209 = scmp.ne.s32.totalorder %s197, %s198
      %p210 = scmp.eq.s32.totalorder %s40, 3
      %p211 = por %p209, %p210
      %p213 = scmp.ne.s32.totalorder %s198, %s212
      %p214 = scmp.eq.s32.totalorder %s40, 0
      %p215 = por %p213, %p214
      %s217 = sadd.s32 %s216, 1
      %p220 = scmp.eq.s32.totalorder %s34, 3
      %p221 = scmp.ne.s32.totalorder %s216, %s218
      %p222 = scmp.eq.s32.totalorder %s34, 0
      %p223 = por %p221, %p222
      %p224 = scmp.ne.s32.totalorder %s216, %s218
      %p225 = scmp.eq.s32.totalorder %s39, 3
      %p226 = por %p224, %p225
      %p227 = scmp.ne.s32.totalorder %s218, %s219
      %p228 = scmp.eq.s32.totalorder %s39, 0
      %p229 = por %p227, %p228
      %p230 = scmp.ne.s32.totalorder %s218, %s219
      %p231 = scmp.eq.s32.totalorder %s40, 3
      %p232 = por %p230, %p231
      %p234 = scmp.ne.s32.totalorder %s219, %s233
      %p235 = scmp.eq.s32.totalorder %s40, 0
      %p236 = por %p234, %p235
      %s238 = sadd.s32 %s237, 1
      %p241 = scmp.eq.s32.totalorder %s34, 3
      %p242 = scmp.ne.s32.totalorder %s237, %s239
      %p243 = scmp.eq.s32.totalorder %s34, 0
      %p244 = por %p242, %p243
      %p245 = scmp.ne.s32.totalorder %s237, %s239
      %p246 = scmp.eq.s32.totalorder %s39, 3
      %p247 = por %p245, %p246
      %p248 = scmp.ne.s32.totalorder %s239, %s240
      %p249 = scmp.eq.s32.totalorder %s39, 0
      %p250 = por %p248, %p249
      %p251 = scmp.ne.s32.totalorder %s239, %s240
      %p252 = scmp.eq.s32.totalorder %s40, 3
      %p253 = por %p251, %p252
      %p255 = scmp.ne.s32.totalorder %s240, %s254
      %p256 = scmp.eq.s32.totalorder %s40, 0
      %p257 = por %p255, %p256
      %s259 = sadd.s32 %s258, 1
      %p262 = scmp.eq.s32.totalorder %s34, 3
      %p263 = scmp.ne.s32.totalorder %s258, %s260
      %p264 = scmp.eq.s32.totalorder %s34, 0
      %p265 = por %p263, %p264
      %p266 = scmp.ne.s32.totalorder %s258, %s260
      %p267 = scmp.eq.s32.totalorder %s39, 3
      %p268 = por %p266, %p267
      %p269 = scmp.ne.s32.totalorder %s260, %s261
      %p270 = scmp.eq.s32.totalorder %s39, 0
      %p271 = por %p269, %p270
      %p272 = scmp.ne.s32.totalorder %s260, %s261
      %p273 = scmp.eq.s32.totalorder %s40, 3
      %p274 = por %p272, %p273
      %p276 = scmp.ne.s32.totalorder %s261, %s275
      %p277 = scmp.eq.s32.totalorder %s40, 0
      %p278 = por %p276, %p277
      %s280 = sadd.s32 %s279, 1
      %p283 = scmp.eq.s32.totalorder %s34, 3
      %p284 = scmp.ne.s32.totalorder %s279, %s281
      %p285 = scmp.eq.s32.totalorder %s34, 0
      %p286 = por %p284, %p285
      %p287 = scmp.ne.s32.totalorder %s279, %s281
      %p288 = scmp.eq.s32.totalorder %s39, 3
      %p289 = por %p287, %p288
      %p290 = scmp.ne.s32.totalorder %s281, %s282
      %p291 = scmp.eq.s32.totalorder %s39, 0
      %p292 = por %p290, %p291
      %p293 = scmp.ne.s32.totalorder %s281, %s282
      %p294 = scmp.eq.s32.totalorder %s40, 3
      %p295 = por %p293, %p294
      %p297 = scmp.ne.s32.totalorder %s282, %s296
      %p298 = scmp.eq.s32.totalorder %s40, 0
      %p299 = por %p297, %p298
      %s300 = ssub.s32 %s41, %s53
      %p301 = scmp.eq.s32.totalorder %s300, 0
      %s303 = sadd.s32 %s302, 1
      %s304 = scalar_select %p301, %s302, %s303
      %p307 = pneg %p301
      %p308 = scmp.eq.s32.totalorder %s34, 3
      %p309 = por %p307, %p308
      %p310 = scmp.ne.s32.totalorder %s302, %s305
      %p311 = scmp.eq.s32.totalorder %s34, 0
      %p312 = por %p310, %p311
      %p313 = scmp.ne.s32.totalorder %s302, %s305
      %p314 = scmp.eq.s32.totalorder %s39, 3
      %p315 = por %p313, %p314
      %p316 = scmp.ne.s32.totalorder %s305, %s306
      %p317 = scmp.eq.s32.totalorder %s39, 0
      %p318 = por %p316, %p317
      %p319 = scmp.ne.s32.totalorder %s305, %s306
      %p320 = scmp.eq.s32.totalorder %s40, 3
      %p321 = por %p319, %p320
      %p323 = scmp.ne.s32.totalorder %s306, %s322
      %p324 = scmp.eq.s32.totalorder %s40, 0
      %p325 = por %p323, %p324
      %s326 = ssub.s32 %s41, %s53
      %p327 = scmp.eq.s32.totalorder %s326, 0
      %s329 = sadd.s32 %s328, 1
      %s330 = scalar_select %p327, %s328, %s329
      %p333 = pneg %p327
      %p334 = scmp.eq.s32.totalorder %s34, 3
      %p335 = por %p333, %p334
      %p336 = scmp.ne.s32.totalorder %s328, %s331
      %p337 = scmp.eq.s32.totalorder %s34, 0
      %p338 = por %p336, %p337
      %p339 = scmp.ne.s32.totalorder %s328, %s331
      %p340 = scmp.eq.s32.totalorder %s39, 3
      %p341 = por %p339, %p340
      %p342 = scmp.ne.s32.totalorder %s331, %s332
      %p343 = scmp.eq.s32.totalorder %s39, 0
      %p344 = por %p342, %p343
      %p345 = scmp.ne.s32.totalorder %s331, %s332
      %p346 = scmp.eq.s32.totalorder %s40, 3
      %p347 = por %p345, %p346
      %p349 = scmp.ne.s32.totalorder %s332, %s348
      %p350 = scmp.eq.s32.totalorder %s40, 0
      %p351 = por %p349, %p350
      %p352 = scmp.le.s32.totalorder 1, %s34
      %p353 = scmp.lt.s32.totalorder %s34, 5
      %p354 = pnand %p352, %p353
      %p355 = pneg %p354
      // Predicated region
      $region9: #{dual_encoder_forward.1} parent=5 // pred_check
        _
      $region10: #{dual_encoder_forward.1} parent=5 // pred_check_branch
        %357 = sbr.rel (%p354) target = $region12
      $region11: #{dual_encoder_forward.1} parent=5 // pred_region
        %s358 = ssub.s32 %s34, 1
        // Predicated region
        $region13: #{dual_encoder_forward.1} parent=11 // pred_check
          %p359 = pneg %p145
        $region14: #{dual_encoder_forward.1} parent=11 // pred_check_branch
          %361 = sbr.rel (%p359) target = $region16
        $region15: #{dual_encoder_forward.1} parent=11 // pred_region
          _
        $region16: #{dual_encoder_forward.1} parent=11 // pred_fallthru
          _
        // Predicated region
        $region17: #{dual_encoder_forward.1} parent=11 // pred_check
          %p362 = pneg %p166
        $region18: #{dual_encoder_forward.1} parent=11 // pred_check_branch
          %364 = sbr.rel (%p362) target = $region20
        $region19: #{dual_encoder_forward.1} parent=11 // pred_region
          %366 = vsyncadd [#allocation13], 0
          %s367 = sshll.u32 %s4, 4
          %s368 = int_to_ptr.hbm [resolvable:$true] %s367
          %s369 = sshll.u32 [#allocation12], 4
          %s370 = int_to_ptr.vmem [resolvable:$true] %s369
          %375 = dma.hbm_to_vmem [thread:$0]  %s368, 256, %s370, [#allocation13], 128, 128, 8
        $region20: #{dual_encoder_forward.1} parent=11 // pred_fallthru
          _
        // Predicated region
        $region21: #{dual_encoder_forward.1} parent=11 // pred_check
          %p376 = pneg %p187
        $region22: #{dual_encoder_forward.1} parent=11 // pred_check_branch
          %378 = sbr.rel (%p376) target = $region24
        $region23: #{dual_encoder_forward.1} parent=11 // pred_region
          %380 = vsyncadd [#allocation13], 0
          %s381 = sshll.u32 %s5, 4
          %s382 = int_to_ptr.hbm [resolvable:$true] %s381
          %s383 = sshll.u32 [#allocation14], 4
          %s384 = int_to_ptr.vmem [resolvable:$true] %s383
          %389 = dma.hbm_to_vmem [thread:$0]  %s382, 768, %s384, [#allocation13], 64, 64, 4
        $region24: #{dual_encoder_forward.1} parent=11 // pred_fallthru
          _
        // Predicated region
        $region25: #{dual_encoder_forward.1} parent=11 // pred_check
          %p390 = pneg %p208
        $region26: #{dual_encoder_forward.1} parent=11 // pred_check_branch
          %392 = sbr.rel (%p390) target = $region28
        $region27: #{dual_encoder_forward.1} parent=11 // pred_region
          %394 = vsyncadd [#allocation16], 0
          %s395 = sshll.u32 %s6, 4
          %s396 = int_to_ptr.hbm [resolvable:$true] %s395
          %s397 = sshll.u32 [#allocation15], 4
          %s398 = int_to_ptr.vmem [resolvable:$true] %s397
          %403 = dma.hbm_to_vmem [thread:$0]  %s396, 48, %s398, [#allocation16], 16, 16, 1
        $region28: #{dual_encoder_forward.1} parent=11 // pred_fallthru
          _
        // Predicated region
        $region29: #{dual_encoder_forward.1} parent=11 // pred_check
          %p404 = pneg %p229
        $region30: #{dual_encoder_forward.1} parent=11 // pred_check_branch
          %406 = sbr.rel (%p404) target = $region32
        $region31: #{dual_encoder_forward.1} parent=11 // pred_region
          %408 = vsyncadd [#allocation16], 0
          %s409 = sshll.u32 %s7, 4
          %s410 = int_to_ptr.hbm [resolvable:$true] %s409
          %s411 = sshll.u32 [#allocation17], 4
          %s412 = int_to_ptr.vmem [resolvable:$true] %s411
          %417 = dma.hbm_to_vmem [thread:$0]  %s410, 2304, %s412, [#allocation16], 64, 64, 4
        $region32: #{dual_encoder_forward.1} parent=11 // pred_fallthru
          _
        // Predicated region
        $region33: #{dual_encoder_forward.1} parent=11 // pred_check
          %p418 = pneg %p250
        $region34: #{dual_encoder_forward.1} parent=11 // pred_check_branch
          %420 = sbr.rel (%p418) target = $region36
        $region35: #{dual_encoder_forward.1} parent=11 // pred_region
          _
        $region36: #{dual_encoder_forward.1} parent=11 // pred_fallthru
          _
        // Predicated region
        $region37: #{dual_encoder_forward.1} parent=11 // pred_check
          %p421 = pneg %p271
        $region38: #{dual_encoder_forward.1} parent=11 // pred_check_branch
          %423 = sbr.rel (%p421) target = $region40
        $region39: #{dual_encoder_forward.1} parent=11 // pred_region
          %425 = vsyncadd [#allocation19], 0
          %s426 = sshll.u32 %s9, 4
          %s427 = int_to_ptr.hbm [resolvable:$true] %s426
          %s428 = sshll.u32 [#allocation18], 4
          %s429 = int_to_ptr.vmem [resolvable:$true] %s428
          %434 = dma.hbm_to_vmem [thread:$0]  %s427, 512, %s429, [#allocation19], 64, 64, 4
        $region40: #{dual_encoder_forward.1} parent=11 // pred_fallthru
          _
        // Predicated region
        $region41: #{dual_encoder_forward.1} parent=11 // pred_check
          %p435 = pneg %p292
        $region42: #{dual_encoder_forward.1} parent=11 // pred_check_branch
          %437 = sbr.rel (%p435) target = $region44
        $region43: #{dual_encoder_forward.1} parent=11 // pred_region
          _
        $region44: #{dual_encoder_forward.1} parent=11 // pred_fallthru
          _
      $region12: #{dual_encoder_forward.1} parent=5 // pred_fallthru
        _
      %p438 = scmp.lt.s32.totalorder %s34, 4
      // Predicated region
      $region45: #{dual_encoder_forward.1} parent=5 // pred_check
        %p439 = pneg %p438
      $region46: #{dual_encoder_forward.1} parent=5 // pred_check_branch
        %441 = sbr.rel (%p439) target = $region48
      $region47: #{dual_encoder_forward.1} parent=5 // pred_region
        // Predicated region
        $region49: #{dual_encoder_forward.1} parent=47 // pred_check
          %p442 = pneg %p66
        $region50: #{dual_encoder_forward.1} parent=47 // pred_check_branch
          %444 = sbr.rel (%p442) target = $region52
        $region51: #{dual_encoder_forward.1} parent=47 // pred_region
          %s445 = sand.u32 %s56, 1
          %s446 = scalar_lea.sflag [#allocation7], %s445
          %s447 = sand.u32 %s56, 1
          %s448 = smul.addr %s447, 128
          %s449 = scalar_lea.vmem [#allocation6], %s448
          %451 = vsyncadd %s446, 0
          %s452 = smul.addr %s41, 16
          %s453 = smul.addr %s452, 8
          %s454 = scalar_lea.hbm %s0, %s453
          %s455 = sshll.u32 %s454, 4
          %s456 = int_to_ptr.hbm [resolvable:$true] %s455
          %s457 = sshll.u32 %s449, 4
          %s458 = int_to_ptr.vmem [resolvable:$true] %s457
          %463 = dma.hbm_to_vmem [thread:$0]  %s456, 2048, %s458, %s446, 128, 128, 8
        $region52: #{dual_encoder_forward.1} parent=47 // pred_fallthru
          _
        // Predicated region
        $region53: #{dual_encoder_forward.1} parent=47 // pred_check
          %p464 = pneg %p92
        $region54: #{dual_encoder_forward.1} parent=47 // pred_check_branch
          %466 = sbr.rel (%p464) target = $region56
        $region55: #{dual_encoder_forward.1} parent=47 // pred_region
          %s467 = sand.u32 %s34, 1
          %s468 = scalar_lea.sflag [#allocation10], %s467
          %s469 = sand.u32 %s82, 1
          %s470 = smul.addr %s469, 128
          %s471 = scalar_lea.vmem [#allocation9], %s470
          %473 = vsyncadd %s468, 0
          %s474 = smul.addr %s41, 16
          %s475 = smul.addr %s474, 8
          %s476 = scalar_lea.hbm %s1, %s475
          %s477 = sshll.u32 %s476, 4
          %s478 = int_to_ptr.hbm [resolvable:$true] %s477
          %s479 = sshll.u32 %s471, 4
          %s480 = int_to_ptr.vmem [resolvable:$true] %s479
          %485 = dma.hbm_to_vmem [thread:$0]  %s478, 2048, %s480, %s468, 128, 128, 8
        $region56: #{dual_encoder_forward.1} parent=47 // pred_fallthru
          _
        // Predicated region
        $region57: #{dual_encoder_forward.1} parent=47 // pred_check
          %p486 = pneg %p118
        $region58: #{dual_encoder_forward.1} parent=47 // pred_check_branch
          %488 = sbr.rel (%p486) target = $region60
        $region59: #{dual_encoder_forward.1} parent=47 // pred_region
          %s489 = sand.u32 %s34, 1
          %s490 = scalar_lea.sflag [#allocation10], %s489
          %s491 = sand.u32 %s108, 1
          %s492 = smul.addr %s491, 128
          %s493 = scalar_lea.vmem [#allocation11], %s492
          %495 = vsyncadd %s490, 0
          %s496 = smul.addr %s41, 16
          %s497 = smul.addr %s496, 8
          %s498 = scalar_lea.hbm %s2, %s497
          %s499 = sshll.u32 %s498, 4
          %s500 = int_to_ptr.hbm [resolvable:$true] %s499
          %s501 = sshll.u32 %s493, 4
          %s502 = int_to_ptr.vmem [resolvable:$true] %s501
          %507 = dma.hbm_to_vmem [thread:$0]  %s500, 2048, %s502, %s490, 128, 128, 8
        $region60: #{dual_encoder_forward.1} parent=47 // pred_fallthru
          _
      $region48: #{dual_encoder_forward.1} parent=5 // pred_fallthru
        _
      %p508 = scmp.le.s32.totalorder 1, %s34
      %p509 = scmp.lt.s32.totalorder %s34, 5
      %p510 = pnand %p508, %p509
      %p511 = pneg %p510
      // Predicated region
      $region61: #{dual_encoder_forward.1} parent=5 // pred_check
        _
      $region62: #{dual_encoder_forward.1} parent=5 // pred_check_branch
        %513 = sbr.rel (%p510) target = $region64
      $region63: #{dual_encoder_forward.1} parent=5 // pred_region
        %s514 = ssub.s32 %s34, 1
        %s515 = sand.u32 %s59, 1
        %s516 = scalar_lea.sflag [#allocation7], %s515
        %s517 = sand.u32 %s59, 1
        %s518 = smul.addr %s517, 128
        %s519 = scalar_lea.vmem [#allocation6], %s518
        // Predicated region
        $region65: #{dual_encoder_forward.1} parent=63 // pred_check
          %p520 = pneg %p72
        $region66: #{dual_encoder_forward.1} parent=63 // pred_check_branch
          %522 = sbr.rel (%p520) target = $region68
        $region67: #{dual_encoder_forward.1} parent=63 // pred_region
          %524 = dma.done %s516, 2048
        $region68: #{dual_encoder_forward.1} parent=63 // pred_fallthru
          _
        %s525 = sand.u32 %s39, 1
        %s526 = scalar_lea.sflag [#allocation10], %s525
        %s527 = sand.u32 %s85, 1
        %s528 = smul.addr %s527, 128
        %s529 = scalar_lea.vmem [#allocation9], %s528
        // Predicated region
        $region69: #{dual_encoder_forward.1} parent=63 // pred_check
          %p530 = pneg %p98
        $region70: #{dual_encoder_forward.1} parent=63 // pred_check_branch
          %532 = sbr.rel (%p530) target = $region72
        $region71: #{dual_encoder_forward.1} parent=63 // pred_region
          %534 = dma.done %s526, 2048
        $region72: #{dual_encoder_forward.1} parent=63 // pred_fallthru
          _
        %s535 = sand.u32 %s39, 1
        %s536 = scalar_lea.sflag [#allocation10], %s535
        %s537 = sand.u32 %s111, 1
        %s538 = smul.addr %s537, 128
        %s539 = scalar_lea.vmem [#allocation11], %s538
        // Predicated region
        $region73: #{dual_encoder_forward.1} parent=63 // pred_check
          %p540 = pneg %p124
        $region74: #{dual_encoder_forward.1} parent=63 // pred_check_branch
          %542 = sbr.rel (%p540) target = $region76
        $region75: #{dual_encoder_forward.1} parent=63 // pred_region
          %544 = dma.done %s536, 2048
        $region76: #{dual_encoder_forward.1} parent=63 // pred_fallthru
          _
        // Predicated region
        $region77: #{dual_encoder_forward.1} parent=63 // pred_check
          %p545 = pneg %p166
        $region78: #{dual_encoder_forward.1} parent=63 // pred_check_branch
          %547 = sbr.rel (%p545) target = $region80
        $region79: #{dual_encoder_forward.1} parent=63 // pred_region
          %549 = dma.done [#allocation13], 256
        $region80: #{dual_encoder_forward.1} parent=63 // pred_fallthru
          _
        // Predicated region
        $region81: #{dual_encoder_forward.1} parent=63 // pred_check
          %p550 = pneg %p187
        $region82: #{dual_encoder_forward.1} parent=63 // pred_check_branch
          %552 = sbr.rel (%p550) target = $region84
        $region83: #{dual_encoder_forward.1} parent=63 // pred_region
          %554 = dma.done [#allocation13], 768
        $region84: #{dual_encoder_forward.1} parent=63 // pred_fallthru
          _
        // Predicated region
        $region85: #{dual_encoder_forward.1} parent=63 // pred_check
          %p555 = pneg %p208
        $region86: #{dual_encoder_forward.1} parent=63 // pred_check_branch
          %557 = sbr.rel (%p555) target = $region88
        $region87: #{dual_encoder_forward.1} parent=63 // pred_region
          %559 = dma.done [#allocation16], 48
        $region88: #{dual_encoder_forward.1} parent=63 // pred_fallthru
          _
        // Predicated region
        $region89: #{dual_encoder_forward.1} parent=63 // pred_check
          %p560 = pneg %p229
        $region90: #{dual_encoder_forward.1} parent=63 // pred_check_branch
          %562 = sbr.rel (%p560) target = $region92
        $region91: #{dual_encoder_forward.1} parent=63 // pred_region
          %564 = dma.done [#allocation16], 2304
        $region92: #{dual_encoder_forward.1} parent=63 // pred_fallthru
          _
        // Predicated region
        $region93: #{dual_encoder_forward.1} parent=63 // pred_check
          %p565 = pneg %p271
        $region94: #{dual_encoder_forward.1} parent=63 // pred_check_branch
          %567 = sbr.rel (%p565) target = $region96
        $region95: #{dual_encoder_forward.1} parent=63 // pred_region
          %569 = dma.done [#allocation19], 512
        $region96: #{dual_encoder_forward.1} parent=63 // pred_fallthru
          _
        %s570 = sand.u32 %s59, 1
        %s571 = scalar_lea.sflag [#allocation7], %s570
        %s572 = sand.u32 %s59, 1
        %s573 = smul.addr %s572, 128
        %s574 = scalar_lea.vmem [#allocation6], %s573
        %p575 = pneg %p72
        %p576 = pneg %p69
        %s577 = sand.u32 %s39, 1
        %s578 = scalar_lea.sflag [#allocation10], %s577
        %s579 = sand.u32 %s85, 1
        %s580 = smul.addr %s579, 128
        %s581 = scalar_lea.vmem [#allocation9], %s580
        %p582 = pneg %p98
        %p583 = pneg %p95
        %s584 = sand.u32 %s39, 1
        %s585 = scalar_lea.sflag [#allocation10], %s584
        %s586 = sand.u32 %s111, 1
        %s587 = smul.addr %s586, 128
        %s588 = scalar_lea.vmem [#allocation11], %s587
        %p589 = pneg %p124
        %p590 = pneg %p121
        %p591 = pneg %p145
        %p592 = pneg %p142
        %p593 = pneg %p166
        %p594 = pneg %p163
        %p595 = pneg %p187
        %p596 = pneg %p184
        %p597 = pneg %p208
        %p598 = pneg %p205
        %p599 = pneg %p229
        %p600 = pneg %p226
        %p601 = pneg %p250
        %p602 = pneg %p247
        %p603 = pneg %p271
        %p604 = pneg %p268
        %p605 = pneg %p292
        %p606 = pneg %p289
        %p607 = pneg %p318
        %p608 = pneg %p315
        %s609 = sand.u32 %s305, 1
        %s610 = scalar_lea.sflag [#allocation8], %s609
        %s611 = sand.u32 %s305, 1
        %s612 = smul.addr %s611, 128
        %s613 = scalar_lea.vmem [#allocation20], %s612
        %p614 = pneg %p344
        %p615 = pneg %p341
        %s616 = sand.u32 %s331, 1
        %s617 = scalar_lea.sflag [#allocation22], %s616
        %s618 = sand.u32 %s331, 1
        %s619 = smul.addr %s618, 128
        %s620 = scalar_lea.vmem [#allocation21], %s619
        %v622 = vld [vmem:[#allocation12] sm:$0xff]
        %v623 = vld [vmem:[#allocation12 + $0x8] sm:$0xff]
        %p624 = scmp.eq.s32.totalorder %s44, 0
        // Predicated region
        $region97: #{dual_encoder_forward.1} parent=63 // pred_check
          %p625 = pneg %p624
        $region98: #{dual_encoder_forward.1} parent=63 // pred_check_branch
          %627 = sbr.rel (%p625) target = $region100
        $region99: #{dual_encoder_forward.1} parent=63 // pred_region
          %v628 = vld [vmem:[%s519] sm:$0xff]
          %v629 = vld [vmem:[%s519 + $0x8] sm:$0xff]
          %v630 = vld [vmem:[%s519 + $0x10] sm:$0xff]
          %v631 = vld [vmem:[%s519 + $0x18] sm:$0xff]
          %v632 = vld [vmem:[%s519 + $0x20] sm:$0xff]
          %v633 = vld [vmem:[%s519 + $0x28] sm:$0xff]
          %v634 = vld [vmem:[%s519 + $0x30] sm:$0xff]
          %v635 = vld [vmem:[%s519 + $0x38] sm:$0xff]
          %v636 = vld [vmem:[%s519 + $0x40] sm:$0xff]
          %v637 = vld [vmem:[%s519 + $0x48] sm:$0xff]
          %v638 = vld [vmem:[%s519 + $0x50] sm:$0xff]
          %v639 = vld [vmem:[%s519 + $0x58] sm:$0xff]
          %v640 = vld [vmem:[%s519 + $0x60] sm:$0xff]
          %v641 = vld [vmem:[%s519 + $0x68] sm:$0xff]
          %v642 = vld [vmem:[%s519 + $0x70] sm:$0xff]
          %v643 = vld [vmem:[%s519 + $0x78] sm:$0xff]
          %v644 = vld [vmem:[%s539] sm:$0xff]
          %v645 = vld [vmem:[%s539 + $0x8] sm:$0xff]
          %v646 = vld [vmem:[%s539 + $0x10] sm:$0xff]
          %v647 = vld [vmem:[%s539 + $0x18] sm:$0xff]
          %v648 = vld [vmem:[%s539 + $0x20] sm:$0xff]
          %v649 = vld [vmem:[%s539 + $0x28] sm:$0xff]
          %v650 = vld [vmem:[%s539 + $0x30] sm:$0xff]
          %v651 = vld [vmem:[%s539 + $0x38] sm:$0xff]
          %v652 = vld [vmem:[%s539 + $0x40] sm:$0xff]
          %v653 = vld [vmem:[%s539 + $0x48] sm:$0xff]
          %v654 = vld [vmem:[%s539 + $0x50] sm:$0xff]
          %v655 = vld [vmem:[%s539 + $0x58] sm:$0xff]
          %v656 = vld [vmem:[%s539 + $0x60] sm:$0xff]
          %v657 = vld [vmem:[%s539 + $0x68] sm:$0xff]
          %v658 = vld [vmem:[%s539 + $0x70] sm:$0xff]
          %v659 = vld [vmem:[%s539 + $0x78] sm:$0xff]
          %v660 = vadd.f32 %v628, %v644
          %v661 = vadd.f32 %v629, %v645
          %v662 = vadd.f32 %v630, %v646
          %v663 = vadd.f32 %v631, %v647
          %v664 = vadd.f32 %v632, %v648
          %v665 = vadd.f32 %v633, %v649
          %v666 = vadd.f32 %v634, %v650
          %v667 = vadd.f32 %v635, %v651
          %v668 = vadd.f32 %v636, %v652
          %v669 = vadd.f32 %v637, %v653
          %v670 = vadd.f32 %v638, %v654
          %v671 = vadd.f32 %v639, %v655
          %v672 = vadd.f32 %v640, %v656
          %v673 = vadd.f32 %v641, %v657
          %v674 = vadd.f32 %v642, %v658
          %v675 = vadd.f32 %v643, %v659
          %v676 = vld [vmem:[%s3] sm:$0xff]
          %v677 = vld [vmem:[#allocation14] sm:$0xf]
          %v678 = vld [vmem:[#allocation14 + $0x4] sm:$0xf]
          %v679 = vld [vmem:[#allocation14 + $0x8] sm:$0xf]
          %v680 = vld [vmem:[#allocation14 + $0xc] sm:$0xf]
          %v681 = vld [vmem:[#allocation15] sm:$0x1]
          %v682 = vld [vmem:[#allocation17] sm:$0xf]
          %v683 = vld [vmem:[#allocation17 + $0x4] sm:$0xf]
          %v684 = vld [vmem:[#allocation17 + $0x8] sm:$0xf]
          %v685 = vld [vmem:[#allocation17 + $0xc] sm:$0xf]
          %v686 = vld [vmem:[#allocation17 + $0x10] sm:$0xf]
          %v687 = vld [vmem:[#allocation17 + $0x14] sm:$0xf]
          %v688 = vld [vmem:[#allocation17 + $0x18] sm:$0xf]
          %v689 = vld [vmem:[#allocation17 + $0x1c] sm:$0xf]
          %v690 = vld [vmem:[#allocation17 + $0x20] sm:$0xf]
          %v691 = vld [vmem:[#allocation17 + $0x24] sm:$0xf]
          %v692 = vld [vmem:[#allocation17 + $0x28] sm:$0xf]
          %v693 = vld [vmem:[#allocation17 + $0x2c] sm:$0xf]
          %v694 = vld [vmem:[%s8] sm:$0x1]
          %v695 = vld [vmem:[%s8 + $0x1] sm:$0x1]
          %v696 = vld [vmem:[%s8 + $0x2] sm:$0x1]
          %v697 = vrot.slane %v664, 4
          %vm698 = vcmask 1047556
          %v699 = vsel %vm698, %v697, %v660
          %v700 = vrot.slane %v660, 4
          %v701 = vsel %vm698, %v664, %v700
          %v703 = vunpack.c.l.s4 1983009808
          %v704 = vunpack.c.0.s8 %v703
          %v705 = vperm.slane %v699, %v704
          %v707 = vunpack.c.l.s4 1983009808
          %v708 = vunpack.c.0.s8 %v707
          %v709 = vperm.slane %v701, %v708
          %v710 = vrot.slane %v666, 4
          %v711 = vsel %vm698, %v710, %v662
          %v712 = vrot.slane %v662, 4
          %v713 = vsel %vm698, %v666, %v712
          %v715 = vunpack.c.l.s4 1983009808
          %v716 = vunpack.c.0.s8 %v715
          %v717 = vperm.slane %v711, %v716
          %v719 = vunpack.c.l.s4 1983009808
          %v720 = vunpack.c.0.s8 %v719
          %v721 = vperm.slane %v713, %v720
          %v722 = vrot.slane %v672, 4
          %v723 = vsel %vm698, %v722, %v668
          %v724 = vrot.slane %v668, 4
          %v725 = vsel %vm698, %v672, %v724
          %v727 = vunpack.c.l.s4 1983009808
          %v728 = vunpack.c.0.s8 %v727
          %v729 = vperm.slane %v723, %v728
          %v731 = vunpack.c.l.s4 1983009808
          %v732 = vunpack.c.0.s8 %v731
          %v733 = vperm.slane %v725, %v732
          %v734 = vrot.slane %v674, 4
          %v735 = vsel %vm698, %v734, %v670
          %v736 = vrot.slane %v670, 4
          %v737 = vsel %vm698, %v674, %v736
          %v739 = vunpack.c.l.s4 1983009808
          %v740 = vunpack.c.0.s8 %v739
          %v741 = vperm.slane %v735, %v740
          %v743 = vunpack.c.l.s4 1983009808
          %v744 = vunpack.c.0.s8 %v743
          %v745 = vperm.slane %v737, %v744
          %v746 = vrot.slane %v717, 4
          %v747 = vsel %vm698, %v746, %v705
          %v748 = vrot.slane %v705, 4
          %v749 = vsel %vm698, %v717, %v748
          %v751 = vunpack.c.l.s4 1934713408
          %v752 = vunpack.c.0.s8 %v751
          %v753 = vperm.slane %v747, %v752
          %v755 = vunpack.c.l.s4 1934713408
          %v756 = vunpack.c.0.s8 %v755
          %v757 = vperm.slane %v749, %v756
          %v758 = vrot.slane %v721, 4
          %v759 = vsel %vm698, %v758, %v709
          %v760 = vrot.slane %v709, 4
          %v761 = vsel %vm698, %v721, %v760
          %v763 = vunpack.c.l.s4 1934713408
          %v764 = vunpack.c.0.s8 %v763
          %v765 = vperm.slane %v759, %v764
          %v767 = vunpack.c.l.s4 1934713408
          %v768 = vunpack.c.0.s8 %v767
          %v769 = vperm.slane %v761, %v768
          %v770 = vrot.slane %v741, 4
          %v771 = vsel %vm698, %v770, %v729
          %v772 = vrot.slane %v729, 4
          %v773 = vsel %vm698, %v741, %v772
          %v775 = vunpack.c.l.s4 1934713408
          %v776 = vunpack.c.0.s8 %v775
          %v777 = vperm.slane %v771, %v776
          %v779 = vunpack.c.l.s4 1934713408
          %v780 = vunpack.c.0.s8 %v779
          %v781 = vperm.slane %v773, %v780
          %v782 = vrot.slane %v745, 4
          %v783 = vsel %vm698, %v782, %v733
          %v784 = vrot.slane %v733, 4
          %v785 = vsel %vm698, %v745, %v784
          %v787 = vunpack.c.l.s4 1934713408
          %v788 = vunpack.c.0.s8 %v787
          %v789 = vperm.slane %v783, %v788
          %v791 = vunpack.c.l.s4 1934713408
          %v792 = vunpack.c.0.s8 %v791
          %v793 = vperm.slane %v785, %v792
          %v794 = vrot.slane %v777, 4
          %v795 = vsel %vm698, %v794, %v753
          %v796 = vrot.slane %v753, 4
          %v797 = vsel %vm698, %v777, %v796
          %v798 = vrot.slane %v781, 4
          %v799 = vsel %vm698, %v798, %v757
          %v800 = vrot.slane %v757, 4
          %v801 = vsel %vm698, %v781, %v800
          %v802 = vrot.slane %v789, 4
          %v803 = vsel %vm698, %v802, %v765
          %v804 = vrot.slane %v765, 4
          %v805 = vsel %vm698, %v789, %v804
          %v806 = vrot.slane %v793, 4
          %v807 = vsel %vm698, %v806, %v769
          %v808 = vrot.slane %v769, 4
          %v809 = vsel %vm698, %v793, %v808
          %v810 = vrot.slane %v665, 4
          %v811 = vsel %vm698, %v810, %v661
          %v812 = vrot.slane %v661, 4
          %v813 = vsel %vm698, %v665, %v812
          %v815 = vunpack.c.l.s4 1983009808
          %v816 = vunpack.c.0.s8 %v815
          %v817 = vperm.slane %v811, %v816
          %v819 = vunpack.c.l.s4 1983009808
          %v820 = vunpack.c.0.s8 %v819
          %v821 = vperm.slane %v813, %v820
          %v822 = vrot.slane %v667, 4
          %v823 = vsel %vm698, %v822, %v663
          %v824 = vrot.slane %v663, 4
          %v825 = vsel %vm698, %v667, %v824
          %v827 = vunpack.c.l.s4 1983009808
          %v828 = vunpack.c.0.s8 %v827
          %v829 = vperm.slane %v823, %v828
          %v831 = vunpack.c.l.s4 1983009808
          %v832 = vunpack.c.0.s8 %v831
          %v833 = vperm.slane %v825, %v832
          %v834 = vrot.slane %v673, 4
          %v835 = vsel %vm698, %v834, %v669
          %v836 = vrot.slane %v669, 4
          %v837 = vsel %vm698, %v673, %v836
          %v839 = vunpack.c.l.s4 1983009808
          %v840 = vunpack.c.0.s8 %v839
          %v841 = vperm.slane %v835, %v840
          %v843 = vunpack.c.l.s4 1983009808
          %v844 = vunpack.c.0.s8 %v843
          %v845 = vperm.slane %v837, %v844
          %v846 = vrot.slane %v675, 4
          %v847 = vsel %vm698, %v846, %v671
          %v848 = vrot.slane %v671, 4
          %v849 = vsel %vm698, %v675, %v848
          %v851 = vunpack.c.l.s4 1983009808
          %v852 = vunpack.c.0.s8 %v851
          %v853 = vperm.slane %v847, %v852
          %v855 = vunpack.c.l.s4 1983009808
          %v856 = vunpack.c.0.s8 %v855
          %v857 = vperm.slane %v849, %v856
          %v858 = vrot.slane %v829, 4
          %v859 = vsel %vm698, %v858, %v817
          %v860 = vrot.slane %v817, 4
          %v861 = vsel %vm698, %v829, %v860
          %v863 = vunpack.c.l.s4 1934713408
          %v864 = vunpack.c.0.s8 %v863
          %v865 = vperm.slane %v859, %v864
          %v867 = vunpack.c.l.s4 1934713408
          %v868 = vunpack.c.0.s8 %v867
          %v869 = vperm.slane %v861, %v868
          %v870 = vrot.slane %v833, 4
          %v871 = vsel %vm698, %v870, %v821
          %v872 = vrot.slane %v821, 4
          %v873 = vsel %vm698, %v833, %v872
          %v875 = vunpack.c.l.s4 1934713408
          %v876 = vunpack.c.0.s8 %v875
          %v877 = vperm.slane %v871, %v876
          %v879 = vunpack.c.l.s4 1934713408
          %v880 = vunpack.c.0.s8 %v879
          %v881 = vperm.slane %v873, %v880
          %v882 = vrot.slane %v853, 4
          %v883 = vsel %vm698, %v882, %v841
          %v884 = vrot.slane %v841, 4
          %v885 = vsel %vm698, %v853, %v884
          %v887 = vunpack.c.l.s4 1934713408
          %v888 = vunpack.c.0.s8 %v887
          %v889 = vperm.slane %v883, %v888
          %v891 = vunpack.c.l.s4 1934713408
          %v892 = vunpack.c.0.s8 %v891
          %v893 = vperm.slane %v885, %v892
          %v894 = vrot.slane %v857, 4
          %v895 = vsel %vm698, %v894, %v845
          %v896 = vrot.slane %v845, 4
          %v897 = vsel %vm698, %v857, %v896
          %v899 = vunpack.c.l.s4 1934713408
          %v900 = vunpack.c.0.s8 %v899
          %v901 = vperm.slane %v895, %v900
          %v903 = vunpack.c.l.s4 1934713408
          %v904 = vunpack.c.0.s8 %v903
          %v905 = vperm.slane %v897, %v904
          %v906 = vrot.slane %v889, 4
          %v907 = vsel %vm698, %v906, %v865
          %v908 = vrot.slane %v865, 4
          %v909 = vsel %vm698, %v889, %v908
          %v910 = vrot.slane %v893, 4
          %v911 = vsel %vm698, %v910, %v869
          %v912 = vrot.slane %v869, 4
          %v913 = vsel %vm698, %v893, %v912
          %v914 = vrot.slane %v901, 4
          %v915 = vsel %vm698, %v914, %v877
          %v916 = vrot.slane %v877, 4
          %v917 = vsel %vm698, %v901, %v916
          %v918 = vrot.slane %v905, 4
          %v919 = vsel %vm698, %v918, %v881
          %v920 = vrot.slane %v881, 4
          %v921 = vsel %vm698, %v905, %v920
          %v922 = vpack.c.bf16 %v797, %v795
          %v923 = vpack.c.bf16 %v801, %v799
          %v924 = vpack.c.bf16 %v805, %v803
          %v925 = vpack.c.bf16 %v809, %v807
          %v926 = vpack.c.bf16 %v909, %v907
          %v927 = vpack.c.bf16 %v913, %v911
          %v928 = vpack.c.bf16 %v917, %v915
          %v929 = vpack.c.bf16 %v921, %v919
          %v931 = vperm.slane %v681, 0
          %v937 = vunpack.c.l.b16 %v677
          %v938 = vunpack.c.l.b16 %v678
          %v939 = vunpack.c.l.b16 %v679
          %v940 = vunpack.c.l.b16 %v680
          %v941 = vpack.c.b16 %v938, %v937
          %v942 = vpack.c.b16 %v940, %v939
          %vm945 = vcmask 261120
          %v947 = vsel %vm945, %v922, 0
          %v950 = vsel %vm945, %v923, 0
          %v953 = vsel %vm945, %v924, 0
          %v956 = vsel %vm945, %v925, 0
          %v959 = vsel %vm945, %v926, 0
          %v962 = vsel %vm945, %v927, 0
          %v965 = vsel %vm945, %v928, 0
          %v968 = vsel %vm945, %v929, 0
          %970 = vmatpush.bf16.msra.mxu0 0
          %971 = vmatpush.bf16.msra.mxu0 0
          %972 = vmatpush.bf16.msra.mxu0 0
          %973 = vmatpush.bf16.msra.mxu0 0
          %974 = vmatpush.bf16.msra.mxu0 0
          %975 = vmatpush.bf16.msra.mxu0 0
          %976 = vmatpush.bf16.msra.mxu0 %v942
          %977 = vmatpush.bf16.msra.mxu0 %v941
          %978 = vmatmul.bf16.gmra.mxu0 %v947
          %v979 = vpop.f32.mrf.mxu0
          %v980 = vadd.f32 %v931, %v979
          %v981 = vpop.f32.mrf.mxu0
          %v982 = vadd.f32 %v931, %v981
          %983 = vmatmul.bf16.gmra.mxu0 %v950
          %v984 = vpop.f32.mrf.mxu0
          %v985 = vadd.f32 %v931, %v984
          %v986 = vpop.f32.mrf.mxu0
          %v987 = vadd.f32 %v931, %v986
          %988 = vmatmul.bf16.gmra.mxu0 %v953
          %v989 = vpop.f32.mrf.mxu0
          %v990 = vadd.f32 %v931, %v989
          %v991 = vpop.f32.mrf.mxu0
          %v992 = vadd.f32 %v931, %v991
          %993 = vmatmul.bf16.gmra.mxu0 %v956
          %v994 = vpop.f32.mrf.mxu0
          %v995 = vadd.f32 %v931, %v994
          %v996 = vpop.f32.mrf.mxu0
          %v997 = vadd.f32 %v931, %v996
          %998 = vmatmul.bf16.gmra.mxu0 %v959
          %v999 = vpop.f32.mrf.mxu0
          %v1000 = vadd.f32 %v931, %v999
          %v1001 = vpop.f32.mrf.mxu0
          %v1002 = vadd.f32 %v931, %v1001
          %1003 = vmatmul.bf16.gmra.mxu0 %v962
          %v1004 = vpop.f32.mrf.mxu0
          %v1005 = vadd.f32 %v931, %v1004
          %v1006 = vpop.f32.mrf.mxu0
          %v1007 = vadd.f32 %v931, %v1006
          %1008 = vmatmul.bf16.gmra.mxu0 %v965
          %v1009 = vpop.f32.mrf.mxu0
          %v1010 = vadd.f32 %v931, %v1009
          %v1011 = vpop.f32.mrf.mxu0
          %v1012 = vadd.f32 %v931, %v1011
          %1013 = vmatmul.bf16.gmra.mxu0 %v968
          %v1014 = vpop.f32.mrf.mxu0
          %v1015 = vadd.f32 %v931, %v1014
          %v1016 = vpop.f32.mrf.mxu0
          %v1017 = vadd.f32 %v931, %v1016
          %1018 = vdwg.mxu0
          %v1019 = vpack.c.bf16 %v980, %v980
          %v1020 = vpack.c.bf16 %v982, %v982
          %v1021 = vpack.c.bf16 %v985, %v985
          %v1022 = vpack.c.bf16 %v987, %v987
          %v1023 = vpack.c.bf16 %v990, %v990
          %v1024 = vpack.c.bf16 %v992, %v992
          %v1025 = vpack.c.bf16 %v995, %v995
          %v1026 = vpack.c.bf16 %v997, %v997
          %v1027 = vpack.c.bf16 %v1000, %v1000
          %v1028 = vpack.c.bf16 %v1002, %v1002
          %v1029 = vpack.c.bf16 %v1005, %v1005
          %v1030 = vpack.c.bf16 %v1007, %v1007
          %v1031 = vpack.c.bf16 %v1010, %v1010
          %v1032 = vpack.c.bf16 %v1012, %v1012
          %v1033 = vpack.c.bf16 %v1015, %v1015
          %v1034 = vpack.c.bf16 %v1017, %v1017
          %v1036 = vunpack.c.l.b16 %v1019
          %v1037 = vpack.c.b16 %v1036, %v1036
          %1038 = vrot.lane.b32.xlu0 %v1037, 96
          %v1039 = vpop.permute.xlu0 %1038
          %v1041 = vsel %vm945, %v1019, 0
          %v1044 = vsel %vm945, %v1039, 0
          %1046 = vmatpush.bf16.xpose.msra.mxu0 0
          %1047 = vmatpush.bf16.xpose.msra.mxu0 0
          %1048 = vmatpush.bf16.xpose.msra.mxu0 0
          %1049 = vmatpush.bf16.xpose.msra.mxu0 0
          %1050 = vmatpush.bf16.xpose.msra.mxu0 0
          %1051 = vmatpush.bf16.xpose.msra.mxu0 0
          %1052 = vmatpush.bf16.xpose.msra.mxu0 0
          %1053 = vmatpush.bf16.xpose.msra.mxu0 %v1044
          %1054 = vmatmul.bf16.gmra.mxu0 %v1041
          %v1055 = vpop.f32.mrf.mxu0
          %v1056 = vadd.f32 0.0, %v1055
          %v1057 = vpop.f32.mrf.mxu0
          %1058 = vdwg.mxu0
          %v1060 = vunpack.c.l.b16 %v1020
          %v1061 = vpack.c.b16 %v1060, %v1060
          %1062 = vrot.lane.b32.xlu0 %v1061, 96
          %v1063 = vpop.permute.xlu0 %1062
          %v1065 = vsel %vm945, %v1020, 0
          %v1068 = vsel %vm945, %v1063, 0
          %1070 = vmatpush.bf16.xpose.msra.mxu0 0
          %1071 = vmatpush.bf16.xpose.msra.mxu0 0
          %1072 = vmatpush.bf16.xpose.msra.mxu0 0
          %1073 = vmatpush.bf16.xpose.msra.mxu0 0
          %1074 = vmatpush.bf16.xpose.msra.mxu0 0
          %1075 = vmatpush.bf16.xpose.msra.mxu0 0
          %1076 = vmatpush.bf16.xpose.msra.mxu0 0
          %1077 = vmatpush.bf16.xpose.msra.mxu0 %v1068
          %1078 = vmatmul.bf16.gmra.mxu0 %v1065
          %v1079 = vpop.f32.mrf.mxu0
          %v1080 = vadd.f32 0.0, %v1079
          %v1081 = vpop.f32.mrf.mxu0
          %1082 = vdwg.mxu0
          %v1084 = vunpack.c.l.b16 %v1021
          %v1085 = vpack.c.b16 %v1084, %v1084
          %1086 = vrot.lane.b32.xlu0 %v1085, 96
          %v1087 = vpop.permute.xlu0 %1086
          %v1089 = vsel %vm945, %v1021, 0
          %v1092 = vsel %vm945, %v1087, 0
          %1094 = vmatpush.bf16.xpose.msra.mxu0 0
          %1095 = vmatpush.bf16.xpose.msra.mxu0 0
          %1096 = vmatpush.bf16.xpose.msra.mxu0 0
          %1097 = vmatpush.bf16.xpose.msra.mxu0 0
          %1098 = vmatpush.bf16.xpose.msra.mxu0 0
          %1099 = vmatpush.bf16.xpose.msra.mxu0 0
          %1100 = vmatpush.bf16.xpose.msra.mxu0 0
          %1101 = vmatpush.bf16.xpose.msra.mxu0 %v1092
          %1102 = vmatmul.bf16.gmra.mxu0 %v1089
          %v1103 = vpop.f32.mrf.mxu0
          %v1104 = vadd.f32 0.0, %v1103
          %v1105 = vpop.f32.mrf.mxu0
          %1106 = vdwg.mxu0
          %v1108 = vunpack.c.l.b16 %v1022
          %v1109 = vpack.c.b16 %v1108, %v1108
          %1110 = vrot.lane.b32.xlu0 %v1109, 96
          %v1111 = vpop.permute.xlu0 %1110
          %v1113 = vsel %vm945, %v1022, 0
          %v1116 = vsel %vm945, %v1111, 0
          %1118 = vmatpush.bf16.xpose.msra.mxu0 0
          %1119 = vmatpush.bf16.xpose.msra.mxu0 0
          %1120 = vmatpush.bf16.xpose.msra.mxu0 0
          %1121 = vmatpush.bf16.xpose.msra.mxu0 0
          %1122 = vmatpush.bf16.xpose.msra.mxu0 0
          %1123 = vmatpush.bf16.xpose.msra.mxu0 0
          %1124 = vmatpush.bf16.xpose.msra.mxu0 0
          %1125 = vmatpush.bf16.xpose.msra.mxu0 %v1116
          %1126 = vmatmul.bf16.gmra.mxu0 %v1113
          %v1127 = vpop.f32.mrf.mxu0
          %v1128 = vadd.f32 0.0, %v1127
          %v1129 = vpop.f32.mrf.mxu0
          %1130 = vdwg.mxu0
          %v1132 = vunpack.c.l.b16 %v1023
          %v1133 = vpack.c.b16 %v1132, %v1132
          %1134 = vrot.lane.b32.xlu0 %v1133, 96
          %v1135 = vpop.permute.xlu0 %1134
          %v1137 = vsel %vm945, %v1023, 0
          %v1140 = vsel %vm945, %v1135, 0
          %1142 = vmatpush.bf16.xpose.msra.mxu0 0
          %1143 = vmatpush.bf16.xpose.msra.mxu0 0
          %1144 = vmatpush.bf16.xpose.msra.mxu0 0
          %1145 = vmatpush.bf16.xpose.msra.mxu0 0
          %1146 = vmatpush.bf16.xpose.msra.mxu0 0
          %1147 = vmatpush.bf16.xpose.msra.mxu0 0
          %1148 = vmatpush.bf16.xpose.msra.mxu0 0
          %1149 = vmatpush.bf16.xpose.msra.mxu0 %v1140
          %1150 = vmatmul.bf16.gmra.mxu0 %v1137
          %v1151 = vpop.f32.mrf.mxu0
          %v1152 = vadd.f32 0.0, %v1151
          %v1153 = vpop.f32.mrf.mxu0
          %1154 = vdwg.mxu0
          %v1156 = vunpack.c.l.b16 %v1024
          %v1157 = vpack.c.b16 %v1156, %v1156
          %1158 = vrot.lane.b32.xlu0 %v1157, 96
          %v1159 = vpop.permute.xlu0 %1158
          %v1161 = vsel %vm945, %v1024, 0
          %v1164 = vsel %vm945, %v1159, 0
          %1166 = vmatpush.bf16.xpose.msra.mxu0 0
          %1167 = vmatpush.bf16.xpose.msra.mxu0 0
          %1168 = vmatpush.bf16.xpose.msra.mxu0 0
          %1169 = vmatpush.bf16.xpose.msra.mxu0 0
          %1170 = vmatpush.bf16.xpose.msra.mxu0 0
          %1171 = vmatpush.bf16.xpose.msra.mxu0 0
          %1172 = vmatpush.bf16.xpose.msra.mxu0 0
          %1173 = vmatpush.bf16.xpose.msra.mxu0 %v1164
          %1174 = vmatmul.bf16.gmra.mxu0 %v1161
          %v1175 = vpop.f32.mrf.mxu0
          %v1176 = vadd.f32 0.0, %v1175
          %v1177 = vpop.f32.mrf.mxu0
          %1178 = vdwg.mxu0
          %v1180 = vunpack.c.l.b16 %v1025
          %v1181 = vpack.c.b16 %v1180, %v1180
          %1182 = vrot.lane.b32.xlu0 %v1181, 96
          %v1183 = vpop.permute.xlu0 %1182
          %v1185 = vsel %vm945, %v1025, 0
          %v1188 = vsel %vm945, %v1183, 0
          %1190 = vmatpush.bf16.xpose.msra.mxu0 0
          %1191 = vmatpush.bf16.xpose.msra.mxu0 0
          %1192 = vmatpush.bf16.xpose.msra.mxu0 0
          %1193 = vmatpush.bf16.xpose.msra.mxu0 0
          %1194 = vmatpush.bf16.xpose.msra.mxu0 0
          %1195 = vmatpush.bf16.xpose.msra.mxu0 0
          %1196 = vmatpush.bf16.xpose.msra.mxu0 0
          %1197 = vmatpush.bf16.xpose.msra.mxu0 %v1188
          %1198 = vmatmul.bf16.gmra.mxu0 %v1185
          %v1199 = vpop.f32.mrf.mxu0
          %v1200 = vadd.f32 0.0, %v1199
          %v1201 = vpop.f32.mrf.mxu0
          %1202 = vdwg.mxu0
          %v1204 = vunpack.c.l.b16 %v1026
          %v1205 = vpack.c.b16 %v1204, %v1204
          %1206 = vrot.lane.b32.xlu0 %v1205, 96
          %v1207 = vpop.permute.xlu0 %1206
          %v1209 = vsel %vm945, %v1026, 0
          %v1212 = vsel %vm945, %v1207, 0
          %1214 = vmatpush.bf16.xpose.msra.mxu0 0
          %1215 = vmatpush.bf16.xpose.msra.mxu0 0
          %1216 = vmatpush.bf16.xpose.msra.mxu0 0
          %1217 = vmatpush.bf16.xpose.msra.mxu0 0
          %1218 = vmatpush.bf16.xpose.msra.mxu0 0
          %1219 = vmatpush.bf16.xpose.msra.mxu0 0
          %1220 = vmatpush.bf16.xpose.msra.mxu0 0
          %1221 = vmatpush.bf16.xpose.msra.mxu0 %v1212
          %1222 = vmatmul.bf16.gmra.mxu0 %v1209
          %v1223 = vpop.f32.mrf.mxu0
          %v1224 = vadd.f32 0.0, %v1223
          %v1225 = vpop.f32.mrf.mxu0
          %1226 = vdwg.mxu0
          %v1228 = vunpack.c.l.b16 %v1027
          %v1229 = vpack.c.b16 %v1228, %v1228
          %1230 = vrot.lane.b32.xlu0 %v1229, 96
          %v1231 = vpop.permute.xlu0 %1230
          %v1233 = vsel %vm945, %v1027, 0
          %v1236 = vsel %vm945, %v1231, 0
          %1238 = vmatpush.bf16.xpose.msra.mxu0 0
          %1239 = vmatpush.bf16.xpose.msra.mxu0 0
          %1240 = vmatpush.bf16.xpose.msra.mxu0 0
          %1241 = vmatpush.bf16.xpose.msra.mxu0 0
          %1242 = vmatpush.bf16.xpose.msra.mxu0 0
          %1243 = vmatpush.bf16.xpose.msra.mxu0 0
          %1244 = vmatpush.bf16.xpose.msra.mxu0 0
          %1245 = vmatpush.bf16.xpose.msra.mxu0 %v1236
          %1246 = vmatmul.bf16.gmra.mxu0 %v1233
          %v1247 = vpop.f32.mrf.mxu0
          %v1248 = vadd.f32 0.0, %v1247
          %v1249 = vpop.f32.mrf.mxu0
          %1250 = vdwg.mxu0
          %v1252 = vunpack.c.l.b16 %v1028
          %v1253 = vpack.c.b16 %v1252, %v1252
          %1254 = vrot.lane.b32.xlu0 %v1253, 96
          %v1255 = vpop.permute.xlu0 %1254
          %v1257 = vsel %vm945, %v1028, 0
          %v1260 = vsel %vm945, %v1255, 0
          %1262 = vmatpush.bf16.xpose.msra.mxu0 0
          %1263 = vmatpush.bf16.xpose.msra.mxu0 0
          %1264 = vmatpush.bf16.xpose.msra.mxu0 0
          %1265 = vmatpush.bf16.xpose.msra.mxu0 0
          %1266 = vmatpush.bf16.xpose.msra.mxu0 0
          %1267 = vmatpush.bf16.xpose.msra.mxu0 0
          %1268 = vmatpush.bf16.xpose.msra.mxu0 0
          %1269 = vmatpush.bf16.xpose.msra.mxu0 %v1260
          %1270 = vmatmul.bf16.gmra.mxu0 %v1257
          %v1271 = vpop.f32.mrf.mxu0
          %v1272 = vadd.f32 0.0, %v1271
          %v1273 = vpop.f32.mrf.mxu0
          %1274 = vdwg.mxu0
          %v1276 = vunpack.c.l.b16 %v1029
          %v1277 = vpack.c.b16 %v1276, %v1276
          %1278 = vrot.lane.b32.xlu0 %v1277, 96
          %v1279 = vpop.permute.xlu0 %1278
          %v1281 = vsel %vm945, %v1029, 0
          %v1284 = vsel %vm945, %v1279, 0
          %1286 = vmatpush.bf16.xpose.msra.mxu0 0
          %1287 = vmatpush.bf16.xpose.msra.mxu0 0
          %1288 = vmatpush.bf16.xpose.msra.mxu0 0
          %1289 = vmatpush.bf16.xpose.msra.mxu0 0
          %1290 = vmatpush.bf16.xpose.msra.mxu0 0
          %1291 = vmatpush.bf16.xpose.msra.mxu0 0
          %1292 = vmatpush.bf16.xpose.msra.mxu0 0
          %1293 = vmatpush.bf16.xpose.msra.mxu0 %v1284
          %1294 = vmatmul.bf16.gmra.mxu0 %v1281
          %v1295 = vpop.f32.mrf.mxu0
          %v1296 = vadd.f32 0.0, %v1295
          %v1297 = vpop.f32.mrf.mxu0
          %1298 = vdwg.mxu0
          %v1300 = vunpack.c.l.b16 %v1030
          %v1301 = vpack.c.b16 %v1300, %v1300
          %1302 = vrot.lane.b32.xlu0 %v1301, 96
          %v1303 = vpop.permute.xlu0 %1302
          %v1305 = vsel %vm945, %v1030, 0
          %v1308 = vsel %vm945, %v1303, 0
          %1310 = vmatpush.bf16.xpose.msra.mxu0 0
          %1311 = vmatpush.bf16.xpose.msra.mxu0 0
          %1312 = vmatpush.bf16.xpose.msra.mxu0 0
          %1313 = vmatpush.bf16.xpose.msra.mxu0 0
          %1314 = vmatpush.bf16.xpose.msra.mxu0 0
          %1315 = vmatpush.bf16.xpose.msra.mxu0 0
          %1316 = vmatpush.bf16.xpose.msra.mxu0 0
          %1317 = vmatpush.bf16.xpose.msra.mxu0 %v1308
          %1318 = vmatmul.bf16.gmra.mxu0 %v1305
          %v1319 = vpop.f32.mrf.mxu0
          %v1320 = vadd.f32 0.0, %v1319
          %v1321 = vpop.f32.mrf.mxu0
          %1322 = vdwg.mxu0
          %v1324 = vunpack.c.l.b16 %v1031
          %v1325 = vpack.c.b16 %v1324, %v1324
          %1326 = vrot.lane.b32.xlu0 %v1325, 96
          %v1327 = vpop.permute.xlu0 %1326
          %v1329 = vsel %vm945, %v1031, 0
          %v1332 = vsel %vm945, %v1327, 0
          %1334 = vmatpush.bf16.xpose.msra.mxu0 0
          %1335 = vmatpush.bf16.xpose.msra.mxu0 0
          %1336 = vmatpush.bf16.xpose.msra.mxu0 0
          %1337 = vmatpush.bf16.xpose.msra.mxu0 0
          %1338 = vmatpush.bf16.xpose.msra.mxu0 0
          %1339 = vmatpush.bf16.xpose.msra.mxu0 0
          %1340 = vmatpush.bf16.xpose.msra.mxu0 0
          %1341 = vmatpush.bf16.xpose.msra.mxu0 %v1332
          %1342 = vmatmul.bf16.gmra.mxu0 %v1329
          %v1343 = vpop.f32.mrf.mxu0
          %v1344 = vadd.f32 0.0, %v1343
          %v1345 = vpop.f32.mrf.mxu0
          %1346 = vdwg.mxu0
          %v1348 = vunpack.c.l.b16 %v1032
          %v1349 = vpack.c.b16 %v1348, %v1348
          %1350 = vrot.lane.b32.xlu0 %v1349, 96
          %v1351 = vpop.permute.xlu0 %1350
          %v1353 = vsel %vm945, %v1032, 0
          %v1356 = vsel %vm945, %v1351, 0
          %1358 = vmatpush.bf16.xpose.msra.mxu0 0
          %1359 = vmatpush.bf16.xpose.msra.mxu0 0
          %1360 = vmatpush.bf16.xpose.msra.mxu0 0
          %1361 = vmatpush.bf16.xpose.msra.mxu0 0
          %1362 = vmatpush.bf16.xpose.msra.mxu0 0
          %1363 = vmatpush.bf16.xpose.msra.mxu0 0
          %1364 = vmatpush.bf16.xpose.msra.mxu0 0
          %1365 = vmatpush.bf16.xpose.msra.mxu0 %v1356
          %1366 = vmatmul.bf16.gmra.mxu0 %v1353
          %v1367 = vpop.f32.mrf.mxu0
          %v1368 = vadd.f32 0.0, %v1367
          %v1369 = vpop.f32.mrf.mxu0
          %1370 = vdwg.mxu0
          %v1372 = vunpack.c.l.b16 %v1033
          %v1373 = vpack.c.b16 %v1372, %v1372
          %1374 = vrot.lane.b32.xlu0 %v1373, 96
          %v1375 = vpop.permute.xlu0 %1374
          %v1377 = vsel %vm945, %v1033, 0
          %v1380 = vsel %vm945, %v1375, 0
          %1382 = vmatpush.bf16.xpose.msra.mxu0 0
          %1383 = vmatpush.bf16.xpose.msra.mxu0 0
          %1384 = vmatpush.bf16.xpose.msra.mxu0 0
          %1385 = vmatpush.bf16.xpose.msra.mxu0 0
          %1386 = vmatpush.bf16.xpose.msra.mxu0 0
          %1387 = vmatpush.bf16.xpose.msra.mxu0 0
          %1388 = vmatpush.bf16.xpose.msra.mxu0 0
          %1389 = vmatpush.bf16.xpose.msra.mxu0 %v1380
          %1390 = vmatmul.bf16.gmra.mxu0 %v1377
          %v1391 = vpop.f32.mrf.mxu0
          %v1392 = vadd.f32 0.0, %v1391
          %v1393 = vpop.f32.mrf.mxu0
          %1394 = vdwg.mxu0
          %v1396 = vunpack.c.l.b16 %v1034
          %v1397 = vpack.c.b16 %v1396, %v1396
          %1398 = vrot.lane.b32.xlu0 %v1397, 96
          %v1399 = vpop.permute.xlu0 %1398
          %v1401 = vsel %vm945, %v1034, 0
          %v1404 = vsel %vm945, %v1399, 0
          %1406 = vmatpush.bf16.xpose.msra.mxu0 0
          %1407 = vmatpush.bf16.xpose.msra.mxu0 0
          %1408 = vmatpush.bf16.xpose.msra.mxu0 0
          %1409 = vmatpush.bf16.xpose.msra.mxu0 0
          %1410 = vmatpush.bf16.xpose.msra.mxu0 0
          %1411 = vmatpush.bf16.xpose.msra.mxu0 0
          %1412 = vmatpush.bf16.xpose.msra.mxu0 0
          %1413 = vmatpush.bf16.xpose.msra.mxu0 %v1404
          %1414 = vmatmul.bf16.gmra.mxu0 %v1401
          %v1415 = vpop.f32.mrf.mxu0
          %v1416 = vadd.f32 0.0, %v1415
          %v1417 = vpop.f32.mrf.mxu0
          %1418 = vdwg.mxu0
          %v1419 = vmul.f32 %v1056, 0.17677669
          %v1420 = vmul.f32 %v1080, 0.17677669
          %v1421 = vmul.f32 %v1104, 0.17677669
          %v1422 = vmul.f32 %v1128, 0.17677669
          %v1423 = vmul.f32 %v1152, 0.17677669
          %v1424 = vmul.f32 %v1176, 0.17677669
          %v1425 = vmul.f32 %v1200, 0.17677669
          %v1426 = vmul.f32 %v1224, 0.17677669
          %v1427 = vmul.f32 %v1248, 0.17677669
          %v1428 = vmul.f32 %v1272, 0.17677669
          %v1429 = vmul.f32 %v1296, 0.17677669
          %v1430 = vmul.f32 %v1320, 0.17677669
          %v1431 = vmul.f32 %v1344, 0.17677669
          %v1432 = vmul.f32 %v1368, 0.17677669
          %v1433 = vmul.f32 %v1392, 0.17677669
          %v1434 = vmul.f32 %v1416, 0.17677669
          %v1435 = vadd.f32 %v1419, %v676
          %v1436 = vadd.f32 %v1420, %v676
          %v1437 = vadd.f32 %v1421, %v676
          %v1438 = vadd.f32 %v1422, %v676
          %v1439 = vadd.f32 %v1423, %v676
          %v1440 = vadd.f32 %v1424, %v676
          %v1441 = vadd.f32 %v1425, %v676
          %v1442 = vadd.f32 %v1426, %v676
          %v1443 = vadd.f32 %v1427, %v676
          %v1444 = vadd.f32 %v1428, %v676
          %v1445 = vadd.f32 %v1429, %v676
          %v1446 = vadd.f32 %v1430, %v676
          %v1447 = vadd.f32 %v1431, %v676
          %v1448 = vadd.f32 %v1432, %v676
          %v1449 = vadd.f32 %v1433, %v676
          %v1450 = vadd.f32 %v1434, %v676
          %vm1451 = vcmask 64512
          %v1452 = vsel %vm1451, %v1435, -inf
          %1453 = vmax.xlane.f32.xlu0 %v1452
          %v1454 = vpop.xlane.xlu0 %1453
          %v1455 = vsel %vm1451, %v1436, -inf
          %1456 = vmax.xlane.f32.xlu0 %v1455
          %v1457 = vpop.xlane.xlu0 %1456
          %v1458 = vsel %vm1451, %v1437, -inf
          %1459 = vmax.xlane.f32.xlu0 %v1458
          %v1460 = vpop.xlane.xlu0 %1459
          %v1461 = vsel %vm1451, %v1438, -inf
          %1462 = vmax.xlane.f32.xlu0 %v1461
          %v1463 = vpop.xlane.xlu0 %1462
          %v1464 = vsel %vm1451, %v1439, -inf
          %1465 = vmax.xlane.f32.xlu0 %v1464
          %v1466 = vpop.xlane.xlu0 %1465
          %v1467 = vsel %vm1451, %v1440, -inf
          %1468 = vmax.xlane.f32.xlu0 %v1467
          %v1469 = vpop.xlane.xlu0 %1468
          %v1470 = vsel %vm1451, %v1441, -inf
          %1471 = vmax.xlane.f32.xlu0 %v1470
          %v1472 = vpop.xlane.xlu0 %1471
          %v1473 = vsel %vm1451, %v1442, -inf
          %1474 = vmax.xlane.f32.xlu0 %v1473
          %v1475 = vpop.xlane.xlu0 %1474
          %v1476 = vsel %vm1451, %v1443, -inf
          %1477 = vmax.xlane.f32.xlu0 %v1476
          %v1478 = vpop.xlane.xlu0 %1477
          %v1479 = vsel %vm1451, %v1444, -inf
          %1480 = vmax.xlane.f32.xlu0 %v1479
          %v1481 = vpop.xlane.xlu0 %1480
          %v1482 = vsel %vm1451, %v1445, -inf
          %1483 = vmax.xlane.f32.xlu0 %v1482
          %v1484 = vpop.xlane.xlu0 %1483
          %v1485 = vsel %vm1451, %v1446, -inf
          %1486 = vmax.xlane.f32.xlu0 %v1485
          %v1487 = vpop.xlane.xlu0 %1486
          %v1488 = vsel %vm1451, %v1447, -inf
          %1489 = vmax.xlane.f32.xlu0 %v1488
          %v1490 = vpop.xlane.xlu0 %1489
          %v1491 = vsel %vm1451, %v1448, -inf
          %1492 = vmax.xlane.f32.xlu0 %v1491
          %v1493 = vpop.xlane.xlu0 %1492
          %v1494 = vsel %vm1451, %v1449, -inf
          %1495 = vmax.xlane.f32.xlu0 %v1494
          %v1496 = vpop.xlane.xlu0 %1495
          %v1497 = vsel %vm1451, %v1450, -inf
          %1498 = vmax.xlane.f32.xlu0 %v1497
          %v1499 = vpop.xlane.xlu0 %1498
          %v1500 = vsub.f32 %v1435, %v1454
          %v1501 = vsub.f32 %v1436, %v1457
          %v1502 = vsub.f32 %v1437, %v1460
          %v1503 = vsub.f32 %v1438, %v1463
          %v1504 = vsub.f32 %v1439, %v1466
          %v1505 = vsub.f32 %v1440, %v1469
          %v1506 = vsub.f32 %v1441, %v1472
          %v1507 = vsub.f32 %v1442, %v1475
          %v1508 = vsub.f32 %v1443, %v1478
          %v1509 = vsub.f32 %v1444, %v1481
          %v1510 = vsub.f32 %v1445, %v1484
          %v1511 = vsub.f32 %v1446, %v1487
          %v1512 = vsub.f32 %v1447, %v1490
          %v1513 = vsub.f32 %v1448, %v1493
          %v1514 = vsub.f32 %v1449, %v1496
          %v1515 = vsub.f32 %v1450, %v1499
          %v1516 = vmul.f32 %v1500, 1.442695
          %v1517 = vpow.pop %v1516
          %v1518 = vmul.f32 %v1501, 1.442695
          %v1519 = vpow.pop %v1518
          %v1520 = vmul.f32 %v1502, 1.442695
          %v1521 = vpow.pop %v1520
          %v1522 = vmul.f32 %v1503, 1.442695
          %v1523 = vpow.pop %v1522
          %v1524 = vmul.f32 %v1504, 1.442695
          %v1525 = vpow.pop %v1524
          %v1526 = vmul.f32 %v1505, 1.442695
          %v1527 = vpow.pop %v1526
          %v1528 = vmul.f32 %v1506, 1.442695
          %v1529 = vpow.pop %v1528
          %v1530 = vmul.f32 %v1507, 1.442695
          %v1531 = vpow.pop %v1530
          %v1532 = vmul.f32 %v1508, 1.442695
          %v1533 = vpow.pop %v1532
          %v1534 = vmul.f32 %v1509, 1.442695
          %v1535 = vpow.pop %v1534
          %v1536 = vmul.f32 %v1510, 1.442695
          %v1537 = vpow.pop %v1536
          %v1538 = vmul.f32 %v1511, 1.442695
          %v1539 = vpow.pop %v1538
          %v1540 = vmul.f32 %v1512, 1.442695
          %v1541 = vpow.pop %v1540
          %v1542 = vmul.f32 %v1513, 1.442695
          %v1543 = vpow.pop %v1542
          %v1544 = vmul.f32 %v1514, 1.442695
          %v1545 = vpow.pop %v1544
          %v1546 = vmul.f32 %v1515, 1.442695
          %v1547 = vpow.pop %v1546
          %v1548 = vsel %vm1451, %v1517, 0.0
          %1549 = vadd.xlane.f32.xlu0 %v1548
          %v1550 = vpop.xlane.xlu0 %1549
          %v1551 = vsel %vm1451, %v1519, 0.0
          %1552 = vadd.xlane.f32.xlu0 %v1551
          %v1553 = vpop.xlane.xlu0 %1552
          %v1554 = vsel %vm1451, %v1521, 0.0
          %1555 = vadd.xlane.f32.xlu0 %v1554
          %v1556 = vpop.xlane.xlu0 %1555
          %v1557 = vsel %vm1451, %v1523, 0.0
          %1558 = vadd.xlane.f32.xlu0 %v1557
          %v1559 = vpop.xlane.xlu0 %1558
          %v1560 = vsel %vm1451, %v1525, 0.0
          %1561 = vadd.xlane.f32.xlu0 %v1560
          %v1562 = vpop.xlane.xlu0 %1561
          %v1563 = vsel %vm1451, %v1527, 0.0
          %1564 = vadd.xlane.f32.xlu0 %v1563
          %v1565 = vpop.xlane.xlu0 %1564
          %v1566 = vsel %vm1451, %v1529, 0.0
          %1567 = vadd.xlane.f32.xlu0 %v1566
          %v1568 = vpop.xlane.xlu0 %1567
          %v1569 = vsel %vm1451, %v1531, 0.0
          %1570 = vadd.xlane.f32.xlu0 %v1569
          %v1571 = vpop.xlane.xlu0 %1570
          %v1572 = vsel %vm1451, %v1533, 0.0
          %1573 = vadd.xlane.f32.xlu0 %v1572
          %v1574 = vpop.xlane.xlu0 %1573
          %v1575 = vsel %vm1451, %v1535, 0.0
          %1576 = vadd.xlane.f32.xlu0 %v1575
          %v1577 = vpop.xlane.xlu0 %1576
          %v1578 = vsel %vm1451, %v1537, 0.0
          %1579 = vadd.xlane.f32.xlu0 %v1578
          %v1580 = vpop.xlane.xlu0 %1579
          %v1581 = vsel %vm1451, %v1539, 0.0
          %1582 = vadd.xlane.f32.xlu0 %v1581
          %v1583 = vpop.xlane.xlu0 %1582
          %v1584 = vsel %vm1451, %v1541, 0.0
          %1585 = vadd.xlane.f32.xlu0 %v1584
          %v1586 = vpop.xlane.xlu0 %1585
          %v1587 = vsel %vm1451, %v1543, 0.0
          %1588 = vadd.xlane.f32.xlu0 %v1587
          %v1589 = vpop.xlane.xlu0 %1588
          %v1590 = vsel %vm1451, %v1545, 0.0
          %1591 = vadd.xlane.f32.xlu0 %v1590
          %v1592 = vpop.xlane.xlu0 %1591
          %v1593 = vsel %vm1451, %v1547, 0.0
          %1594 = vadd.xlane.f32.xlu0 %v1593
          %v1595 = vpop.xlane.xlu0 %1594
          %v1596 = vrcp.pop %v1550
          %v1597 = vmul.f32 %v1550, %v1596
          %v1598 = vsub.f32 1.0, %v1597
          %v1599 = vmul.f32 %v1596, %v1598
          %v1600 = vadd.f32 %v1596, %v1599
          %vm1601 = vweird.f32 %v1550
          %vm1602 = vweird.f32 %v1596
          %vm1603 = vmor %vm1601, %vm1602
          %v1604 = vsel %vm1603, %v1596, %v1600
          %v1605 = vand.u32 2147483647, %v1550
          %vm1606 = vcmp.eq.f32.partialorder %v1605, 8.507059e+37
          %v1607 = vand.u32 %v1550, 2147483648
          %v1608 = vor.u32 1.1754944e-38, %v1607
          %v1609 = vsel %vm1606, %v1608, %v1604
          %v1610 = vrcp.pop %v1553
          %v1611 = vmul.f32 %v1553, %v1610
          %v1612 = vsub.f32 1.0, %v1611
          %v1613 = vmul.f32 %v1610, %v1612
          %v1614 = vadd.f32 %v1610, %v1613
          %vm1615 = vweird.f32 %v1553
          %vm1616 = vweird.f32 %v1610
          %vm1617 = vmor %vm1615, %vm1616
          %v1618 = vsel %vm1617, %v1610, %v1614
          %v1619 = vand.u32 2147483647, %v1553
          %vm1620 = vcmp.eq.f32.partialorder %v1619, 8.507059e+37
          %v1621 = vand.u32 %v1553, 2147483648
          %v1622 = vor.u32 1.1754944e-38, %v1621
          %v1623 = vsel %vm1620, %v1622, %v1618
          %v1624 = vrcp.pop %v1556
          %v1625 = vmul.f32 %v1556, %v1624
          %v1626 = vsub.f32 1.0, %v1625
          %v1627 = vmul.f32 %v1624, %v1626
          %v1628 = vadd.f32 %v1624, %v1627
          %vm1629 = vweird.f32 %v1556
          %vm1630 = vweird.f32 %v1624
          %vm1631 = vmor %vm1629, %vm1630
          %v1632 = vsel %vm1631, %v1624, %v1628
          %v1633 = vand.u32 2147483647, %v1556
          %vm1634 = vcmp.eq.f32.partialorder %v1633, 8.507059e+37
          %v1635 = vand.u32 %v1556, 2147483648
          %v1636 = vor.u32 1.1754944e-38, %v1635
          %v1637 = vsel %vm1634, %v1636, %v1632
          %v1638 = vrcp.pop %v1559
          %v1639 = vmul.f32 %v1559, %v1638
          %v1640 = vsub.f32 1.0, %v1639
          %v1641 = vmul.f32 %v1638, %v1640
          %v1642 = vadd.f32 %v1638, %v1641
          %vm1643 = vweird.f32 %v1559
          %vm1644 = vweird.f32 %v1638
          %vm1645 = vmor %vm1643, %vm1644
          %v1646 = vsel %vm1645, %v1638, %v1642
          %v1647 = vand.u32 2147483647, %v1559
          %vm1648 = vcmp.eq.f32.partialorder %v1647, 8.507059e+37
          %v1649 = vand.u32 %v1559, 2147483648
          %v1650 = vor.u32 1.1754944e-38, %v1649
          %v1651 = vsel %vm1648, %v1650, %v1646
          %v1652 = vrcp.pop %v1562
          %v1653 = vmul.f32 %v1562, %v1652
          %v1654 = vsub.f32 1.0, %v1653
          %v1655 = vmul.f32 %v1652, %v1654
          %v1656 = vadd.f32 %v1652, %v1655
          %vm1657 = vweird.f32 %v1562
          %vm1658 = vweird.f32 %v1652
          %vm1659 = vmor %vm1657, %vm1658
          %v1660 = vsel %vm1659, %v1652, %v1656
          %v1661 = vand.u32 2147483647, %v1562
          %vm1662 = vcmp.eq.f32.partialorder %v1661, 8.507059e+37
          %v1663 = vand.u32 %v1562, 2147483648
          %v1664 = vor.u32 1.1754944e-38, %v1663
          %v1665 = vsel %vm1662, %v1664, %v1660
          %v1666 = vrcp.pop %v1565
          %v1667 = vmul.f32 %v1565, %v1666
          %v1668 = vsub.f32 1.0, %v1667
          %v1669 = vmul.f32 %v1666, %v1668
          %v1670 = vadd.f32 %v1666, %v1669
          %vm1671 = vweird.f32 %v1565
          %vm1672 = vweird.f32 %v1666
          %vm1673 = vmor %vm1671, %vm1672
          %v1674 = vsel %vm1673, %v1666, %v1670
          %v1675 = vand.u32 2147483647, %v1565
          %vm1676 = vcmp.eq.f32.partialorder %v1675, 8.507059e+37
          %v1677 = vand.u32 %v1565, 2147483648
          %v1678 = vor.u32 1.1754944e-38, %v1677
          %v1679 = vsel %vm1676, %v1678, %v1674
          %v1680 = vrcp.pop %v1568
          %v1681 = vmul.f32 %v1568, %v1680
          %v1682 = vsub.f32 1.0, %v1681
          %v1683 = vmul.f32 %v1680, %v1682
          %v1684 = vadd.f32 %v1680, %v1683
          %vm1685 = vweird.f32 %v1568
          %vm1686 = vweird.f32 %v1680
          %vm1687 = vmor %vm1685, %vm1686
          %v1688 = vsel %vm1687, %v1680, %v1684
          %v1689 = vand.u32 2147483647, %v1568
          %vm1690 = vcmp.eq.f32.partialorder %v1689, 8.507059e+37
          %v1691 = vand.u32 %v1568, 2147483648
          %v1692 = vor.u32 1.1754944e-38, %v1691
          %v1693 = vsel %vm1690, %v1692, %v1688
          %v1694 = vrcp.pop %v1571
          %v1695 = vmul.f32 %v1571, %v1694
          %v1696 = vsub.f32 1.0, %v1695
          %v1697 = vmul.f32 %v1694, %v1696
          %v1698 = vadd.f32 %v1694, %v1697
          %vm1699 = vweird.f32 %v1571
          %vm1700 = vweird.f32 %v1694
          %vm1701 = vmor %vm1699, %vm1700
          %v1702 = vsel %vm1701, %v1694, %v1698
          %v1703 = vand.u32 2147483647, %v1571
          %vm1704 = vcmp.eq.f32.partialorder %v1703, 8.507059e+37
          %v1705 = vand.u32 %v1571, 2147483648
          %v1706 = vor.u32 1.1754944e-38, %v1705
          %v1707 = vsel %vm1704, %v1706, %v1702
          %v1708 = vrcp.pop %v1574
          %v1709 = vmul.f32 %v1574, %v1708
          %v1710 = vsub.f32 1.0, %v1709
          %v1711 = vmul.f32 %v1708, %v1710
          %v1712 = vadd.f32 %v1708, %v1711
          %vm1713 = vweird.f32 %v1574
          %vm1714 = vweird.f32 %v1708
          %vm1715 = vmor %vm1713, %vm1714
          %v1716 = vsel %vm1715, %v1708, %v1712
          %v1717 = vand.u32 2147483647, %v1574
          %vm1718 = vcmp.eq.f32.partialorder %v1717, 8.507059e+37
          %v1719 = vand.u32 %v1574, 2147483648
          %v1720 = vor.u32 1.1754944e-38, %v1719
          %v1721 = vsel %vm1718, %v1720, %v1716
          %v1722 = vrcp.pop %v1577
          %v1723 = vmul.f32 %v1577, %v1722
          %v1724 = vsub.f32 1.0, %v1723
          %v1725 = vmul.f32 %v1722, %v1724
          %v1726 = vadd.f32 %v1722, %v1725
          %vm1727 = vweird.f32 %v1577
          %vm1728 = vweird.f32 %v1722
          %vm1729 = vmor %vm1727, %vm1728
          %v1730 = vsel %vm1729, %v1722, %v1726
          %v1731 = vand.u32 2147483647, %v1577
          %vm1732 = vcmp.eq.f32.partialorder %v1731, 8.507059e+37
          %v1733 = vand.u32 %v1577, 2147483648
          %v1734 = vor.u32 1.1754944e-38, %v1733
          %v1735 = vsel %vm1732, %v1734, %v1730
          %v1736 = vrcp.pop %v1580
          %v1737 = vmul.f32 %v1580, %v1736
          %v1738 = vsub.f32 1.0, %v1737
          %v1739 = vmul.f32 %v1736, %v1738
          %v1740 = vadd.f32 %v1736, %v1739
          %vm1741 = vweird.f32 %v1580
          %vm1742 = vweird.f32 %v1736
          %vm1743 = vmor %vm1741, %vm1742
          %v1744 = vsel %vm1743, %v1736, %v1740
          %v1745 = vand.u32 2147483647, %v1580
          %vm1746 = vcmp.eq.f32.partialorder %v1745, 8.507059e+37
          %v1747 = vand.u32 %v1580, 2147483648
          %v1748 = vor.u32 1.1754944e-38, %v1747
          %v1749 = vsel %vm1746, %v1748, %v1744
          %v1750 = vrcp.pop %v1583
          %v1751 = vmul.f32 %v1583, %v1750
          %v1752 = vsub.f32 1.0, %v1751
          %v1753 = vmul.f32 %v1750, %v1752
          %v1754 = vadd.f32 %v1750, %v1753
          %vm1755 = vweird.f32 %v1583
          %vm1756 = vweird.f32 %v1750
          %vm1757 = vmor %vm1755, %vm1756
          %v1758 = vsel %vm1757, %v1750, %v1754
          %v1759 = vand.u32 2147483647, %v1583
          %vm1760 = vcmp.eq.f32.partialorder %v1759, 8.507059e+37
          %v1761 = vand.u32 %v1583, 2147483648
          %v1762 = vor.u32 1.1754944e-38, %v1761
          %v1763 = vsel %vm1760, %v1762, %v1758
          %v1764 = vrcp.pop %v1586
          %v1765 = vmul.f32 %v1586, %v1764
          %v1766 = vsub.f32 1.0, %v1765
          %v1767 = vmul.f32 %v1764, %v1766
          %v1768 = vadd.f32 %v1764, %v1767
          %vm1769 = vweird.f32 %v1586
          %vm1770 = vweird.f32 %v1764
          %vm1771 = vmor %vm1769, %vm1770
          %v1772 = vsel %vm1771, %v1764, %v1768
          %v1773 = vand.u32 2147483647, %v1586
          %vm1774 = vcmp.eq.f32.partialorder %v1773, 8.507059e+37
          %v1775 = vand.u32 %v1586, 2147483648
          %v1776 = vor.u32 1.1754944e-38, %v1775
          %v1777 = vsel %vm1774, %v1776, %v1772
          %v1778 = vrcp.pop %v1589
          %v1779 = vmul.f32 %v1589, %v1778
          %v1780 = vsub.f32 1.0, %v1779
          %v1781 = vmul.f32 %v1778, %v1780
          %v1782 = vadd.f32 %v1778, %v1781
          %vm1783 = vweird.f32 %v1589
          %vm1784 = vweird.f32 %v1778
          %vm1785 = vmor %vm1783, %vm1784
          %v1786 = vsel %vm1785, %v1778, %v1782
          %v1787 = vand.u32 2147483647, %v1589
          %vm1788 = vcmp.eq.f32.partialorder %v1787, 8.507059e+37
          %v1789 = vand.u32 %v1589, 2147483648
          %v1790 = vor.u32 1.1754944e-38, %v1789
          %v1791 = vsel %vm1788, %v1790, %v1786
          %v1792 = vrcp.pop %v1592
          %v1793 = vmul.f32 %v1592, %v1792
          %v1794 = vsub.f32 1.0, %v1793
          %v1795 = vmul.f32 %v1792, %v1794
          %v1796 = vadd.f32 %v1792, %v1795
          %vm1797 = vweird.f32 %v1592
          %vm1798 = vweird.f32 %v1792
          %vm1799 = vmor %vm1797, %vm1798
          %v1800 = vsel %vm1799, %v1792, %v1796
          %v1801 = vand.u32 2147483647, %v1592
          %vm1802 = vcmp.eq.f32.partialorder %v1801, 8.507059e+37
          %v1803 = vand.u32 %v1592, 2147483648
          %v1804 = vor.u32 1.1754944e-38, %v1803
          %v1805 = vsel %vm1802, %v1804, %v1800
          %v1806 = vrcp.pop %v1595
          %v1807 = vmul.f32 %v1595, %v1806
          %v1808 = vsub.f32 1.0, %v1807
          %v1809 = vmul.f32 %v1806, %v1808
          %v1810 = vadd.f32 %v1806, %v1809
          %vm1811 = vweird.f32 %v1595
          %vm1812 = vweird.f32 %v1806
          %vm1813 = vmor %vm1811, %vm1812
          %v1814 = vsel %vm1813, %v1806, %v1810
          %v1815 = vand.u32 2147483647, %v1595
          %vm1816 = vcmp.eq.f32.partialorder %v1815, 8.507059e+37
          %v1817 = vand.u32 %v1595, 2147483648
          %v1818 = vor.u32 1.1754944e-38, %v1817
          %v1819 = vsel %vm1816, %v1818, %v1814
          %v1820 = vmul.f32 %v1517, %v1609
          %v1821 = vmul.f32 %v1519, %v1623
          %v1822 = vmul.f32 %v1521, %v1637
          %v1823 = vmul.f32 %v1523, %v1651
          %v1824 = vmul.f32 %v1525, %v1665
          %v1825 = vmul.f32 %v1527, %v1679
          %v1826 = vmul.f32 %v1529, %v1693
          %v1827 = vmul.f32 %v1531, %v1707
          %v1828 = vmul.f32 %v1533, %v1721
          %v1829 = vmul.f32 %v1535, %v1735
          %v1830 = vmul.f32 %v1537, %v1749
          %v1831 = vmul.f32 %v1539, %v1763
          %v1832 = vmul.f32 %v1541, %v1777
          %v1833 = vmul.f32 %v1543, %v1791
          %v1834 = vmul.f32 %v1545, %v1805
          %v1835 = vmul.f32 %v1547, %v1819
          %v1836 = vpack.c.bf16 %v1820, %v1820
          %v1837 = vpack.c.bf16 %v1821, %v1821
          %v1838 = vpack.c.bf16 %v1822, %v1822
          %v1839 = vpack.c.bf16 %v1823, %v1823
          %v1840 = vpack.c.bf16 %v1824, %v1824
          %v1841 = vpack.c.bf16 %v1825, %v1825
          %v1842 = vpack.c.bf16 %v1826, %v1826
          %v1843 = vpack.c.bf16 %v1827, %v1827
          %v1844 = vpack.c.bf16 %v1828, %v1828
          %v1845 = vpack.c.bf16 %v1829, %v1829
          %v1846 = vpack.c.bf16 %v1830, %v1830
          %v1847 = vpack.c.bf16 %v1831, %v1831
          %v1848 = vpack.c.bf16 %v1832, %v1832
          %v1849 = vpack.c.bf16 %v1833, %v1833
          %v1850 = vpack.c.bf16 %v1834, %v1834
          %v1851 = vpack.c.bf16 %v1835, %v1835
          %1852 = vrot.lane.b32.xlu0 %v1037, 64
          %v1853 = vpop.permute.xlu0 %1852
          %v1855 = vsel %vm1451, %v1836, 0
          %vm1857 = vcmask 1043456
          %v1859 = vsel %vm1857, %v1853, 0
          %1861 = vmatpush.bf16.msra.mxu0 0
          %1862 = vmatpush.bf16.msra.mxu0 0
          %1863 = vmatpush.bf16.msra.mxu0 0
          %1864 = vmatpush.bf16.msra.mxu0 0
          %1865 = vmatpush.bf16.msra.mxu0 0
          %1866 = vmatpush.bf16.msra.mxu0 0
          %1867 = vmatpush.bf16.msra.mxu0 0
          %1868 = vmatpush.bf16.msra.mxu0 %v1859
          %1869 = vmatmul.bf16.gmra.mxu0 %v1855
          %v1870 = vpop.f32.mrf.mxu0
          %v1871 = vadd.f32 0.0, %v1870
          %v1872 = vpop.f32.mrf.mxu0
          %1873 = vdwg.mxu0
          %1874 = vrot.lane.b32.xlu0 %v1061, 64
          %v1875 = vpop.permute.xlu0 %1874
          %v1877 = vsel %vm1451, %v1837, 0
          %v1880 = vsel %vm1857, %v1875, 0
          %1882 = vmatpush.bf16.msra.mxu0 0
          %1883 = vmatpush.bf16.msra.mxu0 0
          %1884 = vmatpush.bf16.msra.mxu0 0
          %1885 = vmatpush.bf16.msra.mxu0 0
          %1886 = vmatpush.bf16.msra.mxu0 0
          %1887 = vmatpush.bf16.msra.mxu0 0
          %1888 = vmatpush.bf16.msra.mxu0 0
          %1889 = vmatpush.bf16.msra.mxu0 %v1880
          %1890 = vmatmul.bf16.gmra.mxu0 %v1877
          %v1891 = vpop.f32.mrf.mxu0
          %v1892 = vadd.f32 0.0, %v1891
          %v1893 = vpop.f32.mrf.mxu0
          %1894 = vdwg.mxu0
          %1895 = vrot.lane.b32.xlu0 %v1085, 64
          %v1896 = vpop.permute.xlu0 %1895
          %v1898 = vsel %vm1451, %v1838, 0
          %v1901 = vsel %vm1857, %v1896, 0
          %1903 = vmatpush.bf16.msra.mxu0 0
          %1904 = vmatpush.bf16.msra.mxu0 0
          %1905 = vmatpush.bf16.msra.mxu0 0
          %1906 = vmatpush.bf16.msra.mxu0 0
          %1907 = vmatpush.bf16.msra.mxu0 0
          %1908 = vmatpush.bf16.msra.mxu0 0
          %1909 = vmatpush.bf16.msra.mxu0 0
          %1910 = vmatpush.bf16.msra.mxu0 %v1901
          %1911 = vmatmul.bf16.gmra.mxu0 %v1898
          %v1912 = vpop.f32.mrf.mxu0
          %v1913 = vadd.f32 0.0, %v1912
          %v1914 = vpop.f32.mrf.mxu0
          %1915 = vdwg.mxu0
          %1916 = vrot.lane.b32.xlu0 %v1109, 64
          %v1917 = vpop.permute.xlu0 %1916
          %v1919 = vsel %vm1451, %v1839, 0
          %v1922 = vsel %vm1857, %v1917, 0
          %1924 = vmatpush.bf16.msra.mxu0 0
          %1925 = vmatpush.bf16.msra.mxu0 0
          %1926 = vmatpush.bf16.msra.mxu0 0
          %1927 = vmatpush.bf16.msra.mxu0 0
          %1928 = vmatpush.bf16.msra.mxu0 0
          %1929 = vmatpush.bf16.msra.mxu0 0
          %1930 = vmatpush.bf16.msra.mxu0 0
          %1931 = vmatpush.bf16.msra.mxu0 %v1922
          %1932 = vmatmul.bf16.gmra.mxu0 %v1919
          %v1933 = vpop.f32.mrf.mxu0
          %v1934 = vadd.f32 0.0, %v1933
          %v1935 = vpop.f32.mrf.mxu0
          %1936 = vdwg.mxu0
          %1937 = vrot.lane.b32.xlu0 %v1133, 64
          %v1938 = vpop.permute.xlu0 %1937
          %v1940 = vsel %vm1451, %v1840, 0
          %v1943 = vsel %vm1857, %v1938, 0
          %1945 = vmatpush.bf16.msra.mxu0 0
          %1946 = vmatpush.bf16.msra.mxu0 0
          %1947 = vmatpush.bf16.msra.mxu0 0
          %1948 = vmatpush.bf16.msra.mxu0 0
          %1949 = vmatpush.bf16.msra.mxu0 0
          %1950 = vmatpush.bf16.msra.mxu0 0
          %1951 = vmatpush.bf16.msra.mxu0 0
          %1952 = vmatpush.bf16.msra.mxu0 %v1943
          %1953 = vmatmul.bf16.gmra.mxu0 %v1940
          %v1954 = vpop.f32.mrf.mxu0
          %v1955 = vadd.f32 0.0, %v1954
          %v1956 = vpop.f32.mrf.mxu0
          %1957 = vdwg.mxu0
          %1958 = vrot.lane.b32.xlu0 %v1157, 64
          %v1959 = vpop.permute.xlu0 %1958
          %v1961 = vsel %vm1451, %v1841, 0
          %v1964 = vsel %vm1857, %v1959, 0
          %1966 = vmatpush.bf16.msra.mxu0 0
          %1967 = vmatpush.bf16.msra.mxu0 0
          %1968 = vmatpush.bf16.msra.mxu0 0
          %1969 = vmatpush.bf16.msra.mxu0 0
          %1970 = vmatpush.bf16.msra.mxu0 0
          %1971 = vmatpush.bf16.msra.mxu0 0
          %1972 = vmatpush.bf16.msra.mxu0 0
          %1973 = vmatpush.bf16.msra.mxu0 %v1964
          %1974 = vmatmul.bf16.gmra.mxu0 %v1961
          %v1975 = vpop.f32.mrf.mxu0
          %v1976 = vadd.f32 0.0, %v1975
          %v1977 = vpop.f32.mrf.mxu0
          %1978 = vdwg.mxu0
          %1979 = vrot.lane.b32.xlu0 %v1181, 64
          %v1980 = vpop.permute.xlu0 %1979
          %v1982 = vsel %vm1451, %v1842, 0
          %v1985 = vsel %vm1857, %v1980, 0
          %1987 = vmatpush.bf16.msra.mxu0 0
          %1988 = vmatpush.bf16.msra.mxu0 0
          %1989 = vmatpush.bf16.msra.mxu0 0
          %1990 = vmatpush.bf16.msra.mxu0 0
          %1991 = vmatpush.bf16.msra.mxu0 0
          %1992 = vmatpush.bf16.msra.mxu0 0
          %1993 = vmatpush.bf16.msra.mxu0 0
          %1994 = vmatpush.bf16.msra.mxu0 %v1985
          %1995 = vmatmul.bf16.gmra.mxu0 %v1982
          %v1996 = vpop.f32.mrf.mxu0
          %v1997 = vadd.f32 0.0, %v1996
          %v1998 = vpop.f32.mrf.mxu0
          %1999 = vdwg.mxu0
          %2000 = vrot.lane.b32.xlu0 %v1205, 64
          %v2001 = vpop.permute.xlu0 %2000
          %v2003 = vsel %vm1451, %v1843, 0
          %v2006 = vsel %vm1857, %v2001, 0
          %2008 = vmatpush.bf16.msra.mxu0 0
          %2009 = vmatpush.bf16.msra.mxu0 0
          %2010 = vmatpush.bf16.msra.mxu0 0
          %2011 = vmatpush.bf16.msra.mxu0 0
          %2012 = vmatpush.bf16.msra.mxu0 0
          %2013 = vmatpush.bf16.msra.mxu0 0
          %2014 = vmatpush.bf16.msra.mxu0 0
          %2015 = vmatpush.bf16.msra.mxu0 %v2006
          %2016 = vmatmul.bf16.gmra.mxu0 %v2003
          %v2017 = vpop.f32.mrf.mxu0
          %v2018 = vadd.f32 0.0, %v2017
          %v2019 = vpop.f32.mrf.mxu0
          %2020 = vdwg.mxu0
          %2021 = vrot.lane.b32.xlu0 %v1229, 64
          %v2022 = vpop.permute.xlu0 %2021
          %v2024 = vsel %vm1451, %v1844, 0
          %v2027 = vsel %vm1857, %v2022, 0
          %2029 = vmatpush.bf16.msra.mxu0 0
          %2030 = vmatpush.bf16.msra.mxu0 0
          %2031 = vmatpush.bf16.msra.mxu0 0
          %2032 = vmatpush.bf16.msra.mxu0 0
          %2033 = vmatpush.bf16.msra.mxu0 0
          %2034 = vmatpush.bf16.msra.mxu0 0
          %2035 = vmatpush.bf16.msra.mxu0 0
          %2036 = vmatpush.bf16.msra.mxu0 %v2027
          %2037 = vmatmul.bf16.gmra.mxu0 %v2024
          %v2038 = vpop.f32.mrf.mxu0
          %v2039 = vadd.f32 0.0, %v2038
          %v2040 = vpop.f32.mrf.mxu0
          %2041 = vdwg.mxu0
          %2042 = vrot.lane.b32.xlu0 %v1253, 64
          %v2043 = vpop.permute.xlu0 %2042
          %v2045 = vsel %vm1451, %v1845, 0
          %v2048 = vsel %vm1857, %v2043, 0
          %2050 = vmatpush.bf16.msra.mxu0 0
          %2051 = vmatpush.bf16.msra.mxu0 0
          %2052 = vmatpush.bf16.msra.mxu0 0
          %2053 = vmatpush.bf16.msra.mxu0 0
          %2054 = vmatpush.bf16.msra.mxu0 0
          %2055 = vmatpush.bf16.msra.mxu0 0
          %2056 = vmatpush.bf16.msra.mxu0 0
          %2057 = vmatpush.bf16.msra.mxu0 %v2048
          %2058 = vmatmul.bf16.gmra.mxu0 %v2045
          %v2059 = vpop.f32.mrf.mxu0
          %v2060 = vadd.f32 0.0, %v2059
          %v2061 = vpop.f32.mrf.mxu0
          %2062 = vdwg.mxu0
          %2063 = vrot.lane.b32.xlu0 %v1277, 64
          %v2064 = vpop.permute.xlu0 %2063
          %v2066 = vsel %vm1451, %v1846, 0
          %v2069 = vsel %vm1857, %v2064, 0
          %2071 = vmatpush.bf16.msra.mxu0 0
          %2072 = vmatpush.bf16.msra.mxu0 0
          %2073 = vmatpush.bf16.msra.mxu0 0
          %2074 = vmatpush.bf16.msra.mxu0 0
          %2075 = vmatpush.bf16.msra.mxu0 0
          %2076 = vmatpush.bf16.msra.mxu0 0
          %2077 = vmatpush.bf16.msra.mxu0 0
          %2078 = vmatpush.bf16.msra.mxu0 %v2069
          %2079 = vmatmul.bf16.gmra.mxu0 %v2066
          %v2080 = vpop.f32.mrf.mxu0
          %v2081 = vadd.f32 0.0, %v2080
          %v2082 = vpop.f32.mrf.mxu0
          %2083 = vdwg.mxu0
          %2084 = vrot.lane.b32.xlu0 %v1301, 64
          %v2085 = vpop.permute.xlu0 %2084
          %v2087 = vsel %vm1451, %v1847, 0
          %v2090 = vsel %vm1857, %v2085, 0
          %2092 = vmatpush.bf16.msra.mxu0 0
          %2093 = vmatpush.bf16.msra.mxu0 0
          %2094 = vmatpush.bf16.msra.mxu0 0
          %2095 = vmatpush.bf16.msra.mxu0 0
          %2096 = vmatpush.bf16.msra.mxu0 0
          %2097 = vmatpush.bf16.msra.mxu0 0
          %2098 = vmatpush.bf16.msra.mxu0 0
          %2099 = vmatpush.bf16.msra.mxu0 %v2090
          %2100 = vmatmul.bf16.gmra.mxu0 %v2087
          %v2101 = vpop.f32.mrf.mxu0
          %v2102 = vadd.f32 0.0, %v2101
          %v2103 = vpop.f32.mrf.mxu0
          %2104 = vdwg.mxu0
          %2105 = vrot.lane.b32.xlu0 %v1325, 64
          %v2106 = vpop.permute.xlu0 %2105
          %v2108 = vsel %vm1451, %v1848, 0
          %v2111 = vsel %vm1857, %v2106, 0
          %2113 = vmatpush.bf16.msra.mxu0 0
          %2114 = vmatpush.bf16.msra.mxu0 0
          %2115 = vmatpush.bf16.msra.mxu0 0
          %2116 = vmatpush.bf16.msra.mxu0 0
          %2117 = vmatpush.bf16.msra.mxu0 0
          %2118 = vmatpush.bf16.msra.mxu0 0
          %2119 = vmatpush.bf16.msra.mxu0 0
          %2120 = vmatpush.bf16.msra.mxu0 %v2111
          %2121 = vmatmul.bf16.gmra.mxu0 %v2108
          %v2122 = vpop.f32.mrf.mxu0
          %v2123 = vadd.f32 0.0, %v2122
          %v2124 = vpop.f32.mrf.mxu0
          %2125 = vdwg.mxu0
          %2126 = vrot.lane.b32.xlu0 %v1349, 64
          %v2127 = vpop.permute.xlu0 %2126
          %v2129 = vsel %vm1451, %v1849, 0
          %v2132 = vsel %vm1857, %v2127, 0
          %2134 = vmatpush.bf16.msra.mxu0 0
          %2135 = vmatpush.bf16.msra.mxu0 0
          %2136 = vmatpush.bf16.msra.mxu0 0
          %2137 = vmatpush.bf16.msra.mxu0 0
          %2138 = vmatpush.bf16.msra.mxu0 0
          %2139 = vmatpush.bf16.msra.mxu0 0
          %2140 = vmatpush.bf16.msra.mxu0 0
          %2141 = vmatpush.bf16.msra.mxu0 %v2132
          %2142 = vmatmul.bf16.gmra.mxu0 %v2129
          %v2143 = vpop.f32.mrf.mxu0
          %v2144 = vadd.f32 0.0, %v2143
          %v2145 = vpop.f32.mrf.mxu0
          %2146 = vdwg.mxu0
          %2147 = vrot.lane.b32.xlu0 %v1373, 64
          %v2148 = vpop.permute.xlu0 %2147
          %v2150 = vsel %vm1451, %v1850, 0
          %v2153 = vsel %vm1857, %v2148, 0
          %2155 = vmatpush.bf16.msra.mxu0 0
          %2156 = vmatpush.bf16.msra.mxu0 0
          %2157 = vmatpush.bf16.msra.mxu0 0
          %2158 = vmatpush.bf16.msra.mxu0 0
          %2159 = vmatpush.bf16.msra.mxu0 0
          %2160 = vmatpush.bf16.msra.mxu0 0
          %2161 = vmatpush.bf16.msra.mxu0 0
          %2162 = vmatpush.bf16.msra.mxu0 %v2153
          %2163 = vmatmul.bf16.gmra.mxu0 %v2150
          %v2164 = vpop.f32.mrf.mxu0
          %v2165 = vadd.f32 0.0, %v2164
          %v2166 = vpop.f32.mrf.mxu0
          %2167 = vdwg.mxu0
          %2168 = vrot.lane.b32.xlu0 %v1397, 64
          %v2169 = vpop.permute.xlu0 %2168
          %v2171 = vsel %vm1451, %v1851, 0
          %v2174 = vsel %vm1857, %v2169, 0
          %2176 = vmatpush.bf16.msra.mxu0 0
          %2177 = vmatpush.bf16.msra.mxu0 0
          %2178 = vmatpush.bf16.msra.mxu0 0
          %2179 = vmatpush.bf16.msra.mxu0 0
          %2180 = vmatpush.bf16.msra.mxu0 0
          %2181 = vmatpush.bf16.msra.mxu0 0
          %2182 = vmatpush.bf16.msra.mxu0 0
          %2183 = vmatpush.bf16.msra.mxu0 %v2174
          %2184 = vmatmul.bf16.gmra.mxu0 %v2171
          %v2185 = vpop.f32.mrf.mxu0
          %v2186 = vadd.f32 0.0, %v2185
          %v2187 = vpop.f32.mrf.mxu0
          %2188 = vdwg.mxu0
          %v2189 = vpack.c.bf16 %v1892, %v1871
          %v2190 = vpack.c.bf16 %v1934, %v1913
          %v2191 = vpack.c.bf16 %v1976, %v1955
          %v2192 = vpack.c.bf16 %v2018, %v1997
          %v2193 = vpack.c.bf16 %v2060, %v2039
          %v2194 = vpack.c.bf16 %v2102, %v2081
          %v2195 = vpack.c.bf16 %v2144, %v2123
          %v2196 = vpack.c.bf16 %v2186, %v2165
          %v2198 = vperm.slane %v694, 0
          %v2204 = vunpack.c.l.b16 %v682
          %v2205 = vunpack.c.l.b16 %v683
          %v2206 = vunpack.c.l.b16 %v684
          %v2207 = vunpack.c.l.b16 %v685
          %v2208 = vpack.c.b16 %v2205, %v2204
          %v2209 = vpack.c.b16 %v2207, %v2206
          %v2213 = vsel %vm945, %v2189, 0
          %v2216 = vsel %vm945, %v2190, 0
          %v2219 = vsel %vm945, %v2191, 0
          %v2222 = vsel %vm945, %v2192, 0
          %v2225 = vsel %vm945, %v2193, 0
          %v2228 = vsel %vm945, %v2194, 0
          %v2231 = vsel %vm945, %v2195, 0
          %v2234 = vsel %vm945, %v2196, 0
          %2236 = vmatpush.bf16.msra.mxu0 0
          %2237 = vmatpush.bf16.msra.mxu0 0
          %2238 = vmatpush.bf16.msra.mxu0 0
          %2239 = vmatpush.bf16.msra.mxu0 0
          %2240 = vmatpush.bf16.msra.mxu0 0
          %2241 = vmatpush.bf16.msra.mxu0 0
          %2242 = vmatpush.bf16.msra.mxu0 %v2209
          %2243 = vmatpush.bf16.msra.mxu0 %v2208
          %2244 = vmatmul.bf16.gmra.mxu0 %v2213
          %v2245 = vpop.f32.mrf.mxu0
          %v2246 = vadd.f32 %v2198, %v2245
          %v2247 = vpop.f32.mrf.mxu0
          %v2248 = vadd.f32 %v2198, %v2247
          %2249 = vmatmul.bf16.gmra.mxu0 %v2216
          %v2250 = vpop.f32.mrf.mxu0
          %v2251 = vadd.f32 %v2198, %v2250
          %v2252 = vpop.f32.mrf.mxu0
          %v2253 = vadd.f32 %v2198, %v2252
          %2254 = vmatmul.bf16.gmra.mxu0 %v2219
          %v2255 = vpop.f32.mrf.mxu0
          %v2256 = vadd.f32 %v2198, %v2255
          %v2257 = vpop.f32.mrf.mxu0
          %v2258 = vadd.f32 %v2198, %v2257
          %2259 = vmatmul.bf16.gmra.mxu0 %v2222
          %v2260 = vpop.f32.mrf.mxu0
          %v2261 = vadd.f32 %v2198, %v2260
          %v2262 = vpop.f32.mrf.mxu0
          %v2263 = vadd.f32 %v2198, %v2262
          %2264 = vmatmul.bf16.gmra.mxu0 %v2225
          %v2265 = vpop.f32.mrf.mxu0
          %v2266 = vadd.f32 %v2198, %v2265
          %v2267 = vpop.f32.mrf.mxu0
          %v2268 = vadd.f32 %v2198, %v2267
          %2269 = vmatmul.bf16.gmra.mxu0 %v2228
          %v2270 = vpop.f32.mrf.mxu0
          %v2271 = vadd.f32 %v2198, %v2270
          %v2272 = vpop.f32.mrf.mxu0
          %v2273 = vadd.f32 %v2198, %v2272
          %2274 = vmatmul.bf16.gmra.mxu0 %v2231
          %v2275 = vpop.f32.mrf.mxu0
          %v2276 = vadd.f32 %v2198, %v2275
          %v2277 = vpop.f32.mrf.mxu0
          %v2278 = vadd.f32 %v2198, %v2277
          %2279 = vmatmul.bf16.gmra.mxu0 %v2234
          %v2280 = vpop.f32.mrf.mxu0
          %v2281 = vadd.f32 %v2198, %v2280
          %v2282 = vpop.f32.mrf.mxu0
          %v2283 = vadd.f32 %v2198, %v2282
          %2284 = vdwg.mxu0
          %v2285 = vadd.f32 %v2246, %v795
          %v2286 = vadd.f32 %v2248, %v797
          %v2287 = vadd.f32 %v2251, %v799
          %v2288 = vadd.f32 %v2253, %v801
          %v2289 = vadd.f32 %v2256, %v803
          %v2290 = vadd.f32 %v2258, %v805
          %v2291 = vadd.f32 %v2261, %v807
          %v2292 = vadd.f32 %v2263, %v809
          %v2293 = vadd.f32 %v2266, %v907
          %v2294 = vadd.f32 %v2268, %v909
          %v2295 = vadd.f32 %v2271, %v911
          %v2296 = vadd.f32 %v2273, %v913
          %v2297 = vadd.f32 %v2276, %v915
          %v2298 = vadd.f32 %v2278, %v917
          %v2299 = vadd.f32 %v2281, %v919
          %v2300 = vadd.f32 %v2283, %v921
          %v2301 = vsel %vm945, %v2285, 0.0
          %2302 = vadd.xlane.f32.xlu0 %v2301
          %v2303 = vpop.xlane.xlu0 %2302
          %v2304 = vsel %vm945, %v2286, 0.0
          %2305 = vadd.xlane.f32.xlu0 %v2304
          %v2306 = vpop.xlane.xlu0 %2305
          %v2307 = vsel %vm945, %v2287, 0.0
          %2308 = vadd.xlane.f32.xlu0 %v2307
          %v2309 = vpop.xlane.xlu0 %2308
          %v2310 = vsel %vm945, %v2288, 0.0
          %2311 = vadd.xlane.f32.xlu0 %v2310
          %v2312 = vpop.xlane.xlu0 %2311
          %v2313 = vsel %vm945, %v2289, 0.0
          %2314 = vadd.xlane.f32.xlu0 %v2313
          %v2315 = vpop.xlane.xlu0 %2314
          %v2316 = vsel %vm945, %v2290, 0.0
          %2317 = vadd.xlane.f32.xlu0 %v2316
          %v2318 = vpop.xlane.xlu0 %2317
          %v2319 = vsel %vm945, %v2291, 0.0
          %2320 = vadd.xlane.f32.xlu0 %v2319
          %v2321 = vpop.xlane.xlu0 %2320
          %v2322 = vsel %vm945, %v2292, 0.0
          %2323 = vadd.xlane.f32.xlu0 %v2322
          %v2324 = vpop.xlane.xlu0 %2323
          %v2325 = vsel %vm945, %v2293, 0.0
          %2326 = vadd.xlane.f32.xlu0 %v2325
          %v2327 = vpop.xlane.xlu0 %2326
          %v2328 = vsel %vm945, %v2294, 0.0
          %2329 = vadd.xlane.f32.xlu0 %v2328
          %v2330 = vpop.xlane.xlu0 %2329
          %v2331 = vsel %vm945, %v2295, 0.0
          %2332 = vadd.xlane.f32.xlu0 %v2331
          %v2333 = vpop.xlane.xlu0 %2332
          %v2334 = vsel %vm945, %v2296, 0.0
          %2335 = vadd.xlane.f32.xlu0 %v2334
          %v2336 = vpop.xlane.xlu0 %2335
          %v2337 = vsel %vm945, %v2297, 0.0
          %2338 = vadd.xlane.f32.xlu0 %v2337
          %v2339 = vpop.xlane.xlu0 %2338
          %v2340 = vsel %vm945, %v2298, 0.0
          %2341 = vadd.xlane.f32.xlu0 %v2340
          %v2342 = vpop.xlane.xlu0 %2341
          %v2343 = vsel %vm945, %v2299, 0.0
          %2344 = vadd.xlane.f32.xlu0 %v2343
          %v2345 = vpop.xlane.xlu0 %2344
          %v2346 = vsel %vm945, %v2300, 0.0
          %2347 = vadd.xlane.f32.xlu0 %v2346
          %v2348 = vpop.xlane.xlu0 %2347
          %v2349 = vrcp.pop 32.0
          %v2350 = vmul.f32 32.0, %v2349
          %v2351 = vsub.f32 1.0, %v2350
          %v2352 = vmul.f32 %v2349, %v2351
          %v2353 = vadd.f32 %v2349, %v2352
          %vm2354 = vweird.f32 %v2349
          %v2355 = vsel %vm2354, %v2349, %v2353
          %v2356 = vmul.f32 %v2303, %v2355
          %v2357 = vmul.f32 %v2306, %v2355
          %v2358 = vmul.f32 %v2309, %v2355
          %v2359 = vmul.f32 %v2312, %v2355
          %v2360 = vmul.f32 %v2315, %v2355
          %v2361 = vmul.f32 %v2318, %v2355
          %v2362 = vmul.f32 %v2321, %v2355
          %v2363 = vmul.f32 %v2324, %v2355
          %v2364 = vmul.f32 %v2327, %v2355
          %v2365 = vmul.f32 %v2330, %v2355
          %v2366 = vmul.f32 %v2333, %v2355
          %v2367 = vmul.f32 %v2336, %v2355
          %v2368 = vmul.f32 %v2339, %v2355
          %v2369 = vmul.f32 %v2342, %v2355
          %v2370 = vmul.f32 %v2345, %v2355
          %v2371 = vmul.f32 %v2348, %v2355
          %v2372 = vsub.f32 %v2285, %v2356
          %v2373 = vsub.f32 %v2286, %v2357
          %v2374 = vsub.f32 %v2287, %v2358
          %v2375 = vsub.f32 %v2288, %v2359
          %v2376 = vsub.f32 %v2289, %v2360
          %v2377 = vsub.f32 %v2290, %v2361
          %v2378 = vsub.f32 %v2291, %v2362
          %v2379 = vsub.f32 %v2292, %v2363
          %v2380 = vsub.f32 %v2293, %v2364
          %v2381 = vsub.f32 %v2294, %v2365
          %v2382 = vsub.f32 %v2295, %v2366
          %v2383 = vsub.f32 %v2296, %v2367
          %v2384 = vsub.f32 %v2297, %v2368
          %v2385 = vsub.f32 %v2298, %v2369
          %v2386 = vsub.f32 %v2299, %v2370
          %v2387 = vsub.f32 %v2300, %v2371
          %v2388 = vmul.f32 %v2372, %v2372
          %v2389 = vmul.f32 %v2373, %v2373
          %v2390 = vmul.f32 %v2374, %v2374
          %v2391 = vmul.f32 %v2375, %v2375
          %v2392 = vmul.f32 %v2376, %v2376
          %v2393 = vmul.f32 %v2377, %v2377
          %v2394 = vmul.f32 %v2378, %v2378
          %v2395 = vmul.f32 %v2379, %v2379
          %v2396 = vmul.f32 %v2380, %v2380
          %v2397 = vmul.f32 %v2381, %v2381
          %v2398 = vmul.f32 %v2382, %v2382
          %v2399 = vmul.f32 %v2383, %v2383
          %v2400 = vmul.f32 %v2384, %v2384
          %v2401 = vmul.f32 %v2385, %v2385
          %v2402 = vmul.f32 %v2386, %v2386
          %v2403 = vmul.f32 %v2387, %v2387
          %v2404 = vsel %vm945, %v2388, 0.0
          %2405 = vadd.xlane.f32.xlu0 %v2404
          %v2406 = vpop.xlane.xlu0 %2405
          %v2407 = vsel %vm945, %v2389, 0.0
          %2408 = vadd.xlane.f32.xlu0 %v2407
          %v2409 = vpop.xlane.xlu0 %2408
          %v2410 = vsel %vm945, %v2390, 0.0
          %2411 = vadd.xlane.f32.xlu0 %v2410
          %v2412 = vpop.xlane.xlu0 %2411
          %v2413 = vsel %vm945, %v2391, 0.0
          %2414 = vadd.xlane.f32.xlu0 %v2413
          %v2415 = vpop.xlane.xlu0 %2414
          %v2416 = vsel %vm945, %v2392, 0.0
          %2417 = vadd.xlane.f32.xlu0 %v2416
          %v2418 = vpop.xlane.xlu0 %2417
          %v2419 = vsel %vm945, %v2393, 0.0
          %2420 = vadd.xlane.f32.xlu0 %v2419
          %v2421 = vpop.xlane.xlu0 %2420
          %v2422 = vsel %vm945, %v2394, 0.0
          %2423 = vadd.xlane.f32.xlu0 %v2422
          %v2424 = vpop.xlane.xlu0 %2423
          %v2425 = vsel %vm945, %v2395, 0.0
          %2426 = vadd.xlane.f32.xlu0 %v2425
          %v2427 = vpop.xlane.xlu0 %2426
          %v2428 = vsel %vm945, %v2396, 0.0
          %2429 = vadd.xlane.f32.xlu0 %v2428
          %v2430 = vpop.xlane.xlu0 %2429
          %v2431 = vsel %vm945, %v2397, 0.0
          %2432 = vadd.xlane.f32.xlu0 %v2431
          %v2433 = vpop.xlane.xlu0 %2432
          %v2434 = vsel %vm945, %v2398, 0.0
          %2435 = vadd.xlane.f32.xlu0 %v2434
          %v2436 = vpop.xlane.xlu0 %2435
          %v2437 = vsel %vm945, %v2399, 0.0
          %2438 = vadd.xlane.f32.xlu0 %v2437
          %v2439 = vpop.xlane.xlu0 %2438
          %v2440 = vsel %vm945, %v2400, 0.0
          %2441 = vadd.xlane.f32.xlu0 %v2440
          %v2442 = vpop.xlane.xlu0 %2441
          %v2443 = vsel %vm945, %v2401, 0.0
          %2444 = vadd.xlane.f32.xlu0 %v2443
          %v2445 = vpop.xlane.xlu0 %2444
          %v2446 = vsel %vm945, %v2402, 0.0
          %2447 = vadd.xlane.f32.xlu0 %v2446
          %v2448 = vpop.xlane.xlu0 %2447
          %v2449 = vsel %vm945, %v2403, 0.0
          %2450 = vadd.xlane.f32.xlu0 %v2449
          %v2451 = vpop.xlane.xlu0 %2450
          %v2452 = vmul.f32 %v2406, %v2355
          %v2453 = vmul.f32 %v2409, %v2355
          %v2454 = vmul.f32 %v2412, %v2355
          %v2455 = vmul.f32 %v2415, %v2355
          %v2456 = vmul.f32 %v2418, %v2355
          %v2457 = vmul.f32 %v2421, %v2355
          %v2458 = vmul.f32 %v2424, %v2355
          %v2459 = vmul.f32 %v2427, %v2355
          %v2460 = vmul.f32 %v2430, %v2355
          %v2461 = vmul.f32 %v2433, %v2355
          %v2462 = vmul.f32 %v2436, %v2355
          %v2463 = vmul.f32 %v2439, %v2355
          %v2464 = vmul.f32 %v2442, %v2355
          %v2465 = vmul.f32 %v2445, %v2355
          %v2466 = vmul.f32 %v2448, %v2355
          %v2467 = vmul.f32 %v2451, %v2355
          %v2468 = vadd.f32 %v2452, 1e-05
          %v2469 = vadd.f32 %v2453, 1e-05
          %v2470 = vadd.f32 %v2454, 1e-05
          %v2471 = vadd.f32 %v2455, 1e-05
          %v2472 = vadd.f32 %v2456, 1e-05
          %v2473 = vadd.f32 %v2457, 1e-05
          %v2474 = vadd.f32 %v2458, 1e-05
          %v2475 = vadd.f32 %v2459, 1e-05
          %v2476 = vadd.f32 %v2460, 1e-05
          %v2477 = vadd.f32 %v2461, 1e-05
          %v2478 = vadd.f32 %v2462, 1e-05
          %v2479 = vadd.f32 %v2463, 1e-05
          %v2480 = vadd.f32 %v2464, 1e-05
          %v2481 = vadd.f32 %v2465, 1e-05
          %v2482 = vadd.f32 %v2466, 1e-05
          %v2483 = vadd.f32 %v2467, 1e-05
          %v2484 = vrsqrt.pop %v2468
          %v2485 = vmul.f32 %v2484, %v2468
          %v2486 = vmul.f32 %v2485, %v2484
          %v2487 = vmul.f32 0.5, %v2486
          %v2488 = vsub.f32 1.5, %v2487
          %v2489 = vmul.f32 %v2484, %v2488
          %vm2490 = vweird.f32 %v2468
          %vm2491 = vweird.f32 %v2484
          %vm2492 = vmor %vm2490, %vm2491
          %v2493 = vsel %vm2492, %v2484, %v2489
          %v2494 = vrsqrt.pop %v2469
          %v2495 = vmul.f32 %v2494, %v2469
          %v2496 = vmul.f32 %v2495, %v2494
          %v2497 = vmul.f32 0.5, %v2496
          %v2498 = vsub.f32 1.5, %v2497
          %v2499 = vmul.f32 %v2494, %v2498
          %vm2500 = vweird.f32 %v2469
          %vm2501 = vweird.f32 %v2494
          %vm2502 = vmor %vm2500, %vm2501
          %v2503 = vsel %vm2502, %v2494, %v2499
          %v2504 = vrsqrt.pop %v2470
          %v2505 = vmul.f32 %v2504, %v2470
          %v2506 = vmul.f32 %v2505, %v2504
          %v2507 = vmul.f32 0.5, %v2506
          %v2508 = vsub.f32 1.5, %v2507
          %v2509 = vmul.f32 %v2504, %v2508
          %vm2510 = vweird.f32 %v2470
          %vm2511 = vweird.f32 %v2504
          %vm2512 = vmor %vm2510, %vm2511
          %v2513 = vsel %vm2512, %v2504, %v2509
          %v2514 = vrsqrt.pop %v2471
          %v2515 = vmul.f32 %v2514, %v2471
          %v2516 = vmul.f32 %v2515, %v2514
          %v2517 = vmul.f32 0.5, %v2516
          %v2518 = vsub.f32 1.5, %v2517
          %v2519 = vmul.f32 %v2514, %v2518
          %vm2520 = vweird.f32 %v2471
          %vm2521 = vweird.f32 %v2514
          %vm2522 = vmor %vm2520, %vm2521
          %v2523 = vsel %vm2522, %v2514, %v2519
          %v2524 = vrsqrt.pop %v2472
          %v2525 = vmul.f32 %v2524, %v2472
          %v2526 = vmul.f32 %v2525, %v2524
          %v2527 = vmul.f32 0.5, %v2526
          %v2528 = vsub.f32 1.5, %v2527
          %v2529 = vmul.f32 %v2524, %v2528
          %vm2530 = vweird.f32 %v2472
          %vm2531 = vweird.f32 %v2524
          %vm2532 = vmor %vm2530, %vm2531
          %v2533 = vsel %vm2532, %v2524, %v2529
          %v2534 = vrsqrt.pop %v2473
          %v2535 = vmul.f32 %v2534, %v2473
          %v2536 = vmul.f32 %v2535, %v2534
          %v2537 = vmul.f32 0.5, %v2536
          %v2538 = vsub.f32 1.5, %v2537
          %v2539 = vmul.f32 %v2534, %v2538
          %vm2540 = vweird.f32 %v2473
          %vm2541 = vweird.f32 %v2534
          %vm2542 = vmor %vm2540, %vm2541
          %v2543 = vsel %vm2542, %v2534, %v2539
          %v2544 = vrsqrt.pop %v2474
          %v2545 = vmul.f32 %v2544, %v2474
          %v2546 = vmul.f32 %v2545, %v2544
          %v2547 = vmul.f32 0.5, %v2546
          %v2548 = vsub.f32 1.5, %v2547
          %v2549 = vmul.f32 %v2544, %v2548
          %vm2550 = vweird.f32 %v2474
          %vm2551 = vweird.f32 %v2544
          %vm2552 = vmor %vm2550, %vm2551
          %v2553 = vsel %vm2552, %v2544, %v2549
          %v2554 = vrsqrt.pop %v2475
          %v2555 = vmul.f32 %v2554, %v2475
          %v2556 = vmul.f32 %v2555, %v2554
          %v2557 = vmul.f32 0.5, %v2556
          %v2558 = vsub.f32 1.5, %v2557
          %v2559 = vmul.f32 %v2554, %v2558
          %vm2560 = vweird.f32 %v2475
          %vm2561 = vweird.f32 %v2554
          %vm2562 = vmor %vm2560, %vm2561
          %v2563 = vsel %vm2562, %v2554, %v2559
          %v2564 = vrsqrt.pop %v2476
          %v2565 = vmul.f32 %v2564, %v2476
          %v2566 = vmul.f32 %v2565, %v2564
          %v2567 = vmul.f32 0.5, %v2566
          %v2568 = vsub.f32 1.5, %v2567
          %v2569 = vmul.f32 %v2564, %v2568
          %vm2570 = vweird.f32 %v2476
          %vm2571 = vweird.f32 %v2564
          %vm2572 = vmor %vm2570, %vm2571
          %v2573 = vsel %vm2572, %v2564, %v2569
          %v2574 = vrsqrt.pop %v2477
          %v2575 = vmul.f32 %v2574, %v2477
          %v2576 = vmul.f32 %v2575, %v2574
          %v2577 = vmul.f32 0.5, %v2576
          %v2578 = vsub.f32 1.5, %v2577
          %v2579 = vmul.f32 %v2574, %v2578
          %vm2580 = vweird.f32 %v2477
          %vm2581 = vweird.f32 %v2574
          %vm2582 = vmor %vm2580, %vm2581
          %v2583 = vsel %vm2582, %v2574, %v2579
          %v2584 = vrsqrt.pop %v2478
          %v2585 = vmul.f32 %v2584, %v2478
          %v2586 = vmul.f32 %v2585, %v2584
          %v2587 = vmul.f32 0.5, %v2586
          %v2588 = vsub.f32 1.5, %v2587
          %v2589 = vmul.f32 %v2584, %v2588
          %vm2590 = vweird.f32 %v2478
          %vm2591 = vweird.f32 %v2584
          %vm2592 = vmor %vm2590, %vm2591
          %v2593 = vsel %vm2592, %v2584, %v2589
          %v2594 = vrsqrt.pop %v2479
          %v2595 = vmul.f32 %v2594, %v2479
          %v2596 = vmul.f32 %v2595, %v2594
          %v2597 = vmul.f32 0.5, %v2596
          %v2598 = vsub.f32 1.5, %v2597
          %v2599 = vmul.f32 %v2594, %v2598
          %vm2600 = vweird.f32 %v2479
          %vm2601 = vweird.f32 %v2594
          %vm2602 = vmor %vm2600, %vm2601
          %v2603 = vsel %vm2602, %v2594, %v2599
          %v2604 = vrsqrt.pop %v2480
          %v2605 = vmul.f32 %v2604, %v2480
          %v2606 = vmul.f32 %v2605, %v2604
          %v2607 = vmul.f32 0.5, %v2606
          %v2608 = vsub.f32 1.5, %v2607
          %v2609 = vmul.f32 %v2604, %v2608
          %vm2610 = vweird.f32 %v2480
          %vm2611 = vweird.f32 %v2604
          %vm2612 = vmor %vm2610, %vm2611
          %v2613 = vsel %vm2612, %v2604, %v2609
          %v2614 = vrsqrt.pop %v2481
          %v2615 = vmul.f32 %v2614, %v2481
          %v2616 = vmul.f32 %v2615, %v2614
          %v2617 = vmul.f32 0.5, %v2616
          %v2618 = vsub.f32 1.5, %v2617
          %v2619 = vmul.f32 %v2614, %v2618
          %vm2620 = vweird.f32 %v2481
          %vm2621 = vweird.f32 %v2614
          %vm2622 = vmor %vm2620, %vm2621
          %v2623 = vsel %vm2622, %v2614, %v2619
          %v2624 = vrsqrt.pop %v2482
          %v2625 = vmul.f32 %v2624, %v2482
          %v2626 = vmul.f32 %v2625, %v2624
          %v2627 = vmul.f32 0.5, %v2626
          %v2628 = vsub.f32 1.5, %v2627
          %v2629 = vmul.f32 %v2624, %v2628
          %vm2630 = vweird.f32 %v2482
          %vm2631 = vweird.f32 %v2624
          %vm2632 = vmor %vm2630, %vm2631
          %v2633 = vsel %vm2632, %v2624, %v2629
          %v2634 = vrsqrt.pop %v2483
          %v2635 = vmul.f32 %v2634, %v2483
          %v2636 = vmul.f32 %v2635, %v2634
          %v2637 = vmul.f32 0.5, %v2636
          %v2638 = vsub.f32 1.5, %v2637
          %v2639 = vmul.f32 %v2634, %v2638
          %vm2640 = vweird.f32 %v2483
          %vm2641 = vweird.f32 %v2634
          %vm2642 = vmor %vm2640, %vm2641
          %v2643 = vsel %vm2642, %v2634, %v2639
          %v2644 = vmul.f32 %v2372, %v2493
          %v2645 = vmul.f32 %v2373, %v2503
          %v2646 = vmul.f32 %v2374, %v2513
          %v2647 = vmul.f32 %v2375, %v2523
          %v2648 = vmul.f32 %v2376, %v2533
          %v2649 = vmul.f32 %v2377, %v2543
          %v2650 = vmul.f32 %v2378, %v2553
          %v2651 = vmul.f32 %v2379, %v2563
          %v2652 = vmul.f32 %v2380, %v2573
          %v2653 = vmul.f32 %v2381, %v2583
          %v2654 = vmul.f32 %v2382, %v2593
          %v2655 = vmul.f32 %v2383, %v2603
          %v2656 = vmul.f32 %v2384, %v2613
          %v2657 = vmul.f32 %v2385, %v2623
          %v2658 = vmul.f32 %v2386, %v2633
          %v2659 = vmul.f32 %v2387, %v2643
          %v2660 = vpack.c.bf16 %v2645, %v2644
          %v2661 = vpack.c.bf16 %v2647, %v2646
          %v2662 = vpack.c.bf16 %v2649, %v2648
          %v2663 = vpack.c.bf16 %v2651, %v2650
          %v2664 = vpack.c.bf16 %v2653, %v2652
          %v2665 = vpack.c.bf16 %v2655, %v2654
          %v2666 = vpack.c.bf16 %v2657, %v2656
          %v2667 = vpack.c.bf16 %v2659, %v2658
          %v2669 = vperm.slane %v695, 0
          %v2675 = vunpack.c.l.b16 %v686
          %v2676 = vunpack.c.l.b16 %v687
          %v2677 = vunpack.c.l.b16 %v688
          %v2678 = vunpack.c.l.b16 %v689
          %v2679 = vpack.c.b16 %v2676, %v2675
          %v2680 = vpack.c.b16 %v2678, %v2677
          %v2684 = vsel %vm945, %v2660, 0
          %v2687 = vsel %vm945, %v2661, 0
          %v2690 = vsel %vm945, %v2662, 0
          %v2693 = vsel %vm945, %v2663, 0
          %v2696 = vsel %vm945, %v2664, 0
          %v2699 = vsel %vm945, %v2665, 0
          %v2702 = vsel %vm945, %v2666, 0
          %v2705 = vsel %vm945, %v2667, 0
          %2707 = vmatpush.bf16.msra.mxu0 0
          %2708 = vmatpush.bf16.msra.mxu0 0
          %2709 = vmatpush.bf16.msra.mxu0 0
          %2710 = vmatpush.bf16.msra.mxu0 0
          %2711 = vmatpush.bf16.msra.mxu0 0
          %2712 = vmatpush.bf16.msra.mxu0 0
          %2713 = vmatpush.bf16.msra.mxu0 %v2680
          %2714 = vmatpush.bf16.msra.mxu0 %v2679
          %2715 = vmatmul.bf16.gmra.mxu0 %v2684
          %v2716 = vpop.f32.mrf.mxu0
          %v2717 = vadd.f32 %v2669, %v2716
          %v2718 = vpop.f32.mrf.mxu0
          %v2719 = vadd.f32 %v2669, %v2718
          %2720 = vmatmul.bf16.gmra.mxu0 %v2687
          %v2721 = vpop.f32.mrf.mxu0
          %v2722 = vadd.f32 %v2669, %v2721
          %v2723 = vpop.f32.mrf.mxu0
          %v2724 = vadd.f32 %v2669, %v2723
          %2725 = vmatmul.bf16.gmra.mxu0 %v2690
          %v2726 = vpop.f32.mrf.mxu0
          %v2727 = vadd.f32 %v2669, %v2726
          %v2728 = vpop.f32.mrf.mxu0
          %v2729 = vadd.f32 %v2669, %v2728
          %2730 = vmatmul.bf16.gmra.mxu0 %v2693
          %v2731 = vpop.f32.mrf.mxu0
          %v2732 = vadd.f32 %v2669, %v2731
          %v2733 = vpop.f32.mrf.mxu0
          %v2734 = vadd.f32 %v2669, %v2733
          %2735 = vmatmul.bf16.gmra.mxu0 %v2696
          %v2736 = vpop.f32.mrf.mxu0
          %v2737 = vadd.f32 %v2669, %v2736
          %v2738 = vpop.f32.mrf.mxu0
          %v2739 = vadd.f32 %v2669, %v2738
          %2740 = vmatmul.bf16.gmra.mxu0 %v2699
          %v2741 = vpop.f32.mrf.mxu0
          %v2742 = vadd.f32 %v2669, %v2741
          %v2743 = vpop.f32.mrf.mxu0
          %v2744 = vadd.f32 %v2669, %v2743
          %2745 = vmatmul.bf16.gmra.mxu0 %v2702
          %v2746 = vpop.f32.mrf.mxu0
          %v2747 = vadd.f32 %v2669, %v2746
          %v2748 = vpop.f32.mrf.mxu0
          %v2749 = vadd.f32 %v2669, %v2748
          %2750 = vmatmul.bf16.gmra.mxu0 %v2705
          %v2751 = vpop.f32.mrf.mxu0
          %v2752 = vadd.f32 %v2669, %v2751
          %v2753 = vpop.f32.mrf.mxu0
          %v2754 = vadd.f32 %v2669, %v2753
          %2755 = vdwg.mxu0
          %v2756 = vmax.f32 %v2717, 0.0
          %v2757 = vmax.f32 %v2719, 0.0
          %v2758 = vmax.f32 %v2722, 0.0
          %v2759 = vmax.f32 %v2724, 0.0
          %v2760 = vmax.f32 %v2727, 0.0
          %v2761 = vmax.f32 %v2729, 0.0
          %v2762 = vmax.f32 %v2732, 0.0
          %v2763 = vmax.f32 %v2734, 0.0
          %v2764 = vmax.f32 %v2737, 0.0
          %v2765 = vmax.f32 %v2739, 0.0
          %v2766 = vmax.f32 %v2742, 0.0
          %v2767 = vmax.f32 %v2744, 0.0
          %v2768 = vmax.f32 %v2747, 0.0
          %v2769 = vmax.f32 %v2749, 0.0
          %v2770 = vmax.f32 %v2752, 0.0
          %v2771 = vmax.f32 %v2754, 0.0
          %v2772 = vpack.c.bf16 %v2757, %v2756
          %v2773 = vpack.c.bf16 %v2759, %v2758
          %v2774 = vpack.c.bf16 %v2761, %v2760
          %v2775 = vpack.c.bf16 %v2763, %v2762
          %v2776 = vpack.c.bf16 %v2765, %v2764
          %v2777 = vpack.c.bf16 %v2767, %v2766
          %v2778 = vpack.c.bf16 %v2769, %v2768
          %v2779 = vpack.c.bf16 %v2771, %v2770
          %v2781 = vperm.slane %v696, 0
          %v2787 = vunpack.c.l.b16 %v690
          %v2788 = vunpack.c.l.b16 %v691
          %v2789 = vunpack.c.l.b16 %v692
          %v2790 = vunpack.c.l.b16 %v693
          %v2791 = vpack.c.b16 %v2788, %v2787
          %v2792 = vpack.c.b16 %v2790, %v2789
          %v2796 = vsel %vm945, %v2772, 0
          %v2799 = vsel %vm945, %v2773, 0
          %v2802 = vsel %vm945, %v2774, 0
          %v2805 = vsel %vm945, %v2775, 0
          %v2808 = vsel %vm945, %v2776, 0
          %v2811 = vsel %vm945, %v2777, 0
          %v2814 = vsel %vm945, %v2778, 0
          %v2817 = vsel %vm945, %v2779, 0
          %2819 = vmatpush.bf16.msra.mxu0 0
          %2820 = vmatpush.bf16.msra.mxu0 0
          %2821 = vmatpush.bf16.msra.mxu0 0
          %2822 = vmatpush.bf16.msra.mxu0 0
          %2823 = vmatpush.bf16.msra.mxu0 0
          %2824 = vmatpush.bf16.msra.mxu0 0
          %2825 = vmatpush.bf16.msra.mxu0 %v2792
          %2826 = vmatpush.bf16.msra.mxu0 %v2791
          %2827 = vmatmul.bf16.gmra.mxu0 %v2796
          %v2828 = vpop.f32.mrf.mxu0
          %v2829 = vadd.f32 %v2781, %v2828
          %v2830 = vpop.f32.mrf.mxu0
          %v2831 = vadd.f32 %v2781, %v2830
          %2832 = vmatmul.bf16.gmra.mxu0 %v2799
          %v2833 = vpop.f32.mrf.mxu0
          %v2834 = vadd.f32 %v2781, %v2833
          %v2835 = vpop.f32.mrf.mxu0
          %v2836 = vadd.f32 %v2781, %v2835
          %2837 = vmatmul.bf16.gmra.mxu0 %v2802
          %v2838 = vpop.f32.mrf.mxu0
          %v2839 = vadd.f32 %v2781, %v2838
          %v2840 = vpop.f32.mrf.mxu0
          %v2841 = vadd.f32 %v2781, %v2840
          %2842 = vmatmul.bf16.gmra.mxu0 %v2805
          %v2843 = vpop.f32.mrf.mxu0
          %v2844 = vadd.f32 %v2781, %v2843
          %v2845 = vpop.f32.mrf.mxu0
          %v2846 = vadd.f32 %v2781, %v2845
          %2847 = vmatmul.bf16.gmra.mxu0 %v2808
          %v2848 = vpop.f32.mrf.mxu0
          %v2849 = vadd.f32 %v2781, %v2848
          %v2850 = vpop.f32.mrf.mxu0
          %v2851 = vadd.f32 %v2781, %v2850
          %2852 = vmatmul.bf16.gmra.mxu0 %v2811
          %v2853 = vpop.f32.mrf.mxu0
          %v2854 = vadd.f32 %v2781, %v2853
          %v2855 = vpop.f32.mrf.mxu0
          %v2856 = vadd.f32 %v2781, %v2855
          %2857 = vmatmul.bf16.gmra.mxu0 %v2814
          %v2858 = vpop.f32.mrf.mxu0
          %v2859 = vadd.f32 %v2781, %v2858
          %v2860 = vpop.f32.mrf.mxu0
          %v2861 = vadd.f32 %v2781, %v2860
          %2862 = vmatmul.bf16.gmra.mxu0 %v2817
          %v2863 = vpop.f32.mrf.mxu0
          %v2864 = vadd.f32 %v2781, %v2863
          %v2865 = vpop.f32.mrf.mxu0
          %v2866 = vadd.f32 %v2781, %v2865
          %2867 = vdwg.mxu0
          %v2868 = vadd.f32 %v2829, %v2644
          %v2869 = vadd.f32 %v2831, %v2645
          %v2870 = vadd.f32 %v2834, %v2646
          %v2871 = vadd.f32 %v2836, %v2647
          %v2872 = vadd.f32 %v2839, %v2648
          %v2873 = vadd.f32 %v2841, %v2649
          %v2874 = vadd.f32 %v2844, %v2650
          %v2875 = vadd.f32 %v2846, %v2651
          %v2876 = vadd.f32 %v2849, %v2652
          %v2877 = vadd.f32 %v2851, %v2653
          %v2878 = vadd.f32 %v2854, %v2654
          %v2879 = vadd.f32 %v2856, %v2655
          %v2880 = vadd.f32 %v2859, %v2656
          %v2881 = vadd.f32 %v2861, %v2657
          %v2882 = vadd.f32 %v2864, %v2658
          %v2883 = vadd.f32 %v2866, %v2659
          %v2884 = vsel %vm945, %v2868, 0.0
          %2885 = vadd.xlane.f32.xlu0 %v2884
          %v2886 = vpop.xlane.xlu0 %2885
          %v2887 = vsel %vm945, %v2869, 0.0
          %2888 = vadd.xlane.f32.xlu0 %v2887
          %v2889 = vpop.xlane.xlu0 %2888
          %v2890 = vsel %vm945, %v2870, 0.0
          %2891 = vadd.xlane.f32.xlu0 %v2890
          %v2892 = vpop.xlane.xlu0 %2891
          %v2893 = vsel %vm945, %v2871, 0.0
          %2894 = vadd.xlane.f32.xlu0 %v2893
          %v2895 = vpop.xlane.xlu0 %2894
          %v2896 = vsel %vm945, %v2872, 0.0
          %2897 = vadd.xlane.f32.xlu0 %v2896
          %v2898 = vpop.xlane.xlu0 %2897
          %v2899 = vsel %vm945, %v2873, 0.0
          %2900 = vadd.xlane.f32.xlu0 %v2899
          %v2901 = vpop.xlane.xlu0 %2900
          %v2902 = vsel %vm945, %v2874, 0.0
          %2903 = vadd.xlane.f32.xlu0 %v2902
          %v2904 = vpop.xlane.xlu0 %2903
          %v2905 = vsel %vm945, %v2875, 0.0
          %2906 = vadd.xlane.f32.xlu0 %v2905
          %v2907 = vpop.xlane.xlu0 %2906
          %v2908 = vsel %vm945, %v2876, 0.0
          %2909 = vadd.xlane.f32.xlu0 %v2908
          %v2910 = vpop.xlane.xlu0 %2909
          %v2911 = vsel %vm945, %v2877, 0.0
          %2912 = vadd.xlane.f32.xlu0 %v2911
          %v2913 = vpop.xlane.xlu0 %2912
          %v2914 = vsel %vm945, %v2878, 0.0
          %2915 = vadd.xlane.f32.xlu0 %v2914
          %v2916 = vpop.xlane.xlu0 %2915
          %v2917 = vsel %vm945, %v2879, 0.0
          %2918 = vadd.xlane.f32.xlu0 %v2917
          %v2919 = vpop.xlane.xlu0 %2918
          %v2920 = vsel %vm945, %v2880, 0.0
          %2921 = vadd.xlane.f32.xlu0 %v2920
          %v2922 = vpop.xlane.xlu0 %2921
          %v2923 = vsel %vm945, %v2881, 0.0
          %2924 = vadd.xlane.f32.xlu0 %v2923
          %v2925 = vpop.xlane.xlu0 %2924
          %v2926 = vsel %vm945, %v2882, 0.0
          %2927 = vadd.xlane.f32.xlu0 %v2926
          %v2928 = vpop.xlane.xlu0 %2927
          %v2929 = vsel %vm945, %v2883, 0.0
          %2930 = vadd.xlane.f32.xlu0 %v2929
          %v2931 = vpop.xlane.xlu0 %2930
          %v2932 = vmul.f32 %v2886, %v2355
          %v2933 = vmul.f32 %v2889, %v2355
          %v2934 = vmul.f32 %v2892, %v2355
          %v2935 = vmul.f32 %v2895, %v2355
          %v2936 = vmul.f32 %v2898, %v2355
          %v2937 = vmul.f32 %v2901, %v2355
          %v2938 = vmul.f32 %v2904, %v2355
          %v2939 = vmul.f32 %v2907, %v2355
          %v2940 = vmul.f32 %v2910, %v2355
          %v2941 = vmul.f32 %v2913, %v2355
          %v2942 = vmul.f32 %v2916, %v2355
          %v2943 = vmul.f32 %v2919, %v2355
          %v2944 = vmul.f32 %v2922, %v2355
          %v2945 = vmul.f32 %v2925, %v2355
          %v2946 = vmul.f32 %v2928, %v2355
          %v2947 = vmul.f32 %v2931, %v2355
          %v2948 = vsub.f32 %v2868, %v2932
          %v2949 = vsub.f32 %v2869, %v2933
          %v2950 = vsub.f32 %v2870, %v2934
          %v2951 = vsub.f32 %v2871, %v2935
          %v2952 = vsub.f32 %v2872, %v2936
          %v2953 = vsub.f32 %v2873, %v2937
          %v2954 = vsub.f32 %v2874, %v2938
          %v2955 = vsub.f32 %v2875, %v2939
          %v2956 = vsub.f32 %v2876, %v2940
          %v2957 = vsub.f32 %v2877, %v2941
          %v2958 = vsub.f32 %v2878, %v2942
          %v2959 = vsub.f32 %v2879, %v2943
          %v2960 = vsub.f32 %v2880, %v2944
          %v2961 = vsub.f32 %v2881, %v2945
          %v2962 = vsub.f32 %v2882, %v2946
          %v2963 = vsub.f32 %v2883, %v2947
          %v2964 = vmul.f32 %v2948, %v2948
          %v2965 = vmul.f32 %v2949, %v2949
          %v2966 = vmul.f32 %v2950, %v2950
          %v2967 = vmul.f32 %v2951, %v2951
          %v2968 = vmul.f32 %v2952, %v2952
          %v2969 = vmul.f32 %v2953, %v2953
          %v2970 = vmul.f32 %v2954, %v2954
          %v2971 = vmul.f32 %v2955, %v2955
          %v2972 = vmul.f32 %v2956, %v2956
          %v2973 = vmul.f32 %v2957, %v2957
          %v2974 = vmul.f32 %v2958, %v2958
          %v2975 = vmul.f32 %v2959, %v2959
          %v2976 = vmul.f32 %v2960, %v2960
          %v2977 = vmul.f32 %v2961, %v2961
          %v2978 = vmul.f32 %v2962, %v2962
          %v2979 = vmul.f32 %v2963, %v2963
          %v2980 = vsel %vm945, %v2964, 0.0
          %2981 = vadd.xlane.f32.xlu0 %v2980
          %v2982 = vpop.xlane.xlu0 %2981
          %v2983 = vsel %vm945, %v2965, 0.0
          %2984 = vadd.xlane.f32.xlu0 %v2983
          %v2985 = vpop.xlane.xlu0 %2984
          %v2986 = vsel %vm945, %v2966, 0.0
          %2987 = vadd.xlane.f32.xlu0 %v2986
          %v2988 = vpop.xlane.xlu0 %2987
          %v2989 = vsel %vm945, %v2967, 0.0
          %2990 = vadd.xlane.f32.xlu0 %v2989
          %v2991 = vpop.xlane.xlu0 %2990
          %v2992 = vsel %vm945, %v2968, 0.0
          %2993 = vadd.xlane.f32.xlu0 %v2992
          %v2994 = vpop.xlane.xlu0 %2993
          %v2995 = vsel %vm945, %v2969, 0.0
          %2996 = vadd.xlane.f32.xlu0 %v2995
          %v2997 = vpop.xlane.xlu0 %2996
          %v2998 = vsel %vm945, %v2970, 0.0
          %2999 = vadd.xlane.f32.xlu0 %v2998
          %v3000 = vpop.xlane.xlu0 %2999
          %v3001 = vsel %vm945, %v2971, 0.0
          %3002 = vadd.xlane.f32.xlu0 %v3001
          %v3003 = vpop.xlane.xlu0 %3002
          %v3004 = vsel %vm945, %v2972, 0.0
          %3005 = vadd.xlane.f32.xlu0 %v3004
          %v3006 = vpop.xlane.xlu0 %3005
          %v3007 = vsel %vm945, %v2973, 0.0
          %3008 = vadd.xlane.f32.xlu0 %v3007
          %v3009 = vpop.xlane.xlu0 %3008
          %v3010 = vsel %vm945, %v2974, 0.0
          %3011 = vadd.xlane.f32.xlu0 %v3010
          %v3012 = vpop.xlane.xlu0 %3011
          %v3013 = vsel %vm945, %v2975, 0.0
          %3014 = vadd.xlane.f32.xlu0 %v3013
          %v3015 = vpop.xlane.xlu0 %3014
          %v3016 = vsel %vm945, %v2976, 0.0
          %3017 = vadd.xlane.f32.xlu0 %v3016
          %v3018 = vpop.xlane.xlu0 %3017
          %v3019 = vsel %vm945, %v2977, 0.0
          %3020 = vadd.xlane.f32.xlu0 %v3019
          %v3021 = vpop.xlane.xlu0 %3020
          %v3022 = vsel %vm945, %v2978, 0.0
          %3023 = vadd.xlane.f32.xlu0 %v3022
          %v3024 = vpop.xlane.xlu0 %3023
          %v3025 = vsel %vm945, %v2979, 0.0
          %3026 = vadd.xlane.f32.xlu0 %v3025
          %v3027 = vpop.xlane.xlu0 %3026
          %v3028 = vmul.f32 %v2982, %v2355
          %v3029 = vmul.f32 %v2985, %v2355
          %v3030 = vmul.f32 %v2988, %v2355
          %v3031 = vmul.f32 %v2991, %v2355
          %v3032 = vmul.f32 %v2994, %v2355
          %v3033 = vmul.f32 %v2997, %v2355
          %v3034 = vmul.f32 %v3000, %v2355
          %v3035 = vmul.f32 %v3003, %v2355
          %v3036 = vmul.f32 %v3006, %v2355
          %v3037 = vmul.f32 %v3009, %v2355
          %v3038 = vmul.f32 %v3012, %v2355
          %v3039 = vmul.f32 %v3015, %v2355
          %v3040 = vmul.f32 %v3018, %v2355
          %v3041 = vmul.f32 %v3021, %v2355
          %v3042 = vmul.f32 %v3024, %v2355
          %v3043 = vmul.f32 %v3027, %v2355
          %v3044 = vadd.f32 %v3028, 1e-05
          %v3045 = vadd.f32 %v3029, 1e-05
          %v3046 = vadd.f32 %v3030, 1e-05
          %v3047 = vadd.f32 %v3031, 1e-05
          %v3048 = vadd.f32 %v3032, 1e-05
          %v3049 = vadd.f32 %v3033, 1e-05
          %v3050 = vadd.f32 %v3034, 1e-05
          %v3051 = vadd.f32 %v3035, 1e-05
          %v3052 = vadd.f32 %v3036, 1e-05
          %v3053 = vadd.f32 %v3037, 1e-05
          %v3054 = vadd.f32 %v3038, 1e-05
          %v3055 = vadd.f32 %v3039, 1e-05
          %v3056 = vadd.f32 %v3040, 1e-05
          %v3057 = vadd.f32 %v3041, 1e-05
          %v3058 = vadd.f32 %v3042, 1e-05
          %v3059 = vadd.f32 %v3043, 1e-05
          %v3060 = vrsqrt.pop %v3044
          %v3061 = vmul.f32 %v3060, %v3044
          %v3062 = vmul.f32 %v3061, %v3060
          %v3063 = vmul.f32 0.5, %v3062
          %v3064 = vsub.f32 1.5, %v3063
          %v3065 = vmul.f32 %v3060, %v3064
          %vm3066 = vweird.f32 %v3044
          %vm3067 = vweird.f32 %v3060
          %vm3068 = vmor %vm3066, %vm3067
          %v3069 = vsel %vm3068, %v3060, %v3065
          %v3070 = vrsqrt.pop %v3045
          %v3071 = vmul.f32 %v3070, %v3045
          %v3072 = vmul.f32 %v3071, %v3070
          %v3073 = vmul.f32 0.5, %v3072
          %v3074 = vsub.f32 1.5, %v3073
          %v3075 = vmul.f32 %v3070, %v3074
          %vm3076 = vweird.f32 %v3045
          %vm3077 = vweird.f32 %v3070
          %vm3078 = vmor %vm3076, %vm3077
          %v3079 = vsel %vm3078, %v3070, %v3075
          %v3080 = vrsqrt.pop %v3046
          %v3081 = vmul.f32 %v3080, %v3046
          %v3082 = vmul.f32 %v3081, %v3080
          %v3083 = vmul.f32 0.5, %v3082
          %v3084 = vsub.f32 1.5, %v3083
          %v3085 = vmul.f32 %v3080, %v3084
          %vm3086 = vweird.f32 %v3046
          %vm3087 = vweird.f32 %v3080
          %vm3088 = vmor %vm3086, %vm3087
          %v3089 = vsel %vm3088, %v3080, %v3085
          %v3090 = vrsqrt.pop %v3047
          %v3091 = vmul.f32 %v3090, %v3047
          %v3092 = vmul.f32 %v3091, %v3090
          %v3093 = vmul.f32 0.5, %v3092
          %v3094 = vsub.f32 1.5, %v3093
          %v3095 = vmul.f32 %v3090, %v3094
          %vm3096 = vweird.f32 %v3047
          %vm3097 = vweird.f32 %v3090
          %vm3098 = vmor %vm3096, %vm3097
          %v3099 = vsel %vm3098, %v3090, %v3095
          %v3100 = vrsqrt.pop %v3048
          %v3101 = vmul.f32 %v3100, %v3048
          %v3102 = vmul.f32 %v3101, %v3100
          %v3103 = vmul.f32 0.5, %v3102
          %v3104 = vsub.f32 1.5, %v3103
          %v3105 = vmul.f32 %v3100, %v3104
          %vm3106 = vweird.f32 %v3048
          %vm3107 = vweird.f32 %v3100
          %vm3108 = vmor %vm3106, %vm3107
          %v3109 = vsel %vm3108, %v3100, %v3105
          %v3110 = vrsqrt.pop %v3049
          %v3111 = vmul.f32 %v3110, %v3049
          %v3112 = vmul.f32 %v3111, %v3110
          %v3113 = vmul.f32 0.5, %v3112
          %v3114 = vsub.f32 1.5, %v3113
          %v3115 = vmul.f32 %v3110, %v3114
          %vm3116 = vweird.f32 %v3049
          %vm3117 = vweird.f32 %v3110
          %vm3118 = vmor %vm3116, %vm3117
          %v3119 = vsel %vm3118, %v3110, %v3115
          %v3120 = vrsqrt.pop %v3050
          %v3121 = vmul.f32 %v3120, %v3050
          %v3122 = vmul.f32 %v3121, %v3120
          %v3123 = vmul.f32 0.5, %v3122
          %v3124 = vsub.f32 1.5, %v3123
          %v3125 = vmul.f32 %v3120, %v3124
          %vm3126 = vweird.f32 %v3050
          %vm3127 = vweird.f32 %v3120
          %vm3128 = vmor %vm3126, %vm3127
          %v3129 = vsel %vm3128, %v3120, %v3125
          %v3130 = vrsqrt.pop %v3051
          %v3131 = vmul.f32 %v3130, %v3051
          %v3132 = vmul.f32 %v3131, %v3130
          %v3133 = vmul.f32 0.5, %v3132
          %v3134 = vsub.f32 1.5, %v3133
          %v3135 = vmul.f32 %v3130, %v3134
          %vm3136 = vweird.f32 %v3051
          %vm3137 = vweird.f32 %v3130
          %vm3138 = vmor %vm3136, %vm3137
          %v3139 = vsel %vm3138, %v3130, %v3135
          %v3140 = vrsqrt.pop %v3052
          %v3141 = vmul.f32 %v3140, %v3052
          %v3142 = vmul.f32 %v3141, %v3140
          %v3143 = vmul.f32 0.5, %v3142
          %v3144 = vsub.f32 1.5, %v3143
          %v3145 = vmul.f32 %v3140, %v3144
          %vm3146 = vweird.f32 %v3052
          %vm3147 = vweird.f32 %v3140
          %vm3148 = vmor %vm3146, %vm3147
          %v3149 = vsel %vm3148, %v3140, %v3145
          %v3150 = vrsqrt.pop %v3053
          %v3151 = vmul.f32 %v3150, %v3053
          %v3152 = vmul.f32 %v3151, %v3150
          %v3153 = vmul.f32 0.5, %v3152
          %v3154 = vsub.f32 1.5, %v3153
          %v3155 = vmul.f32 %v3150, %v3154
          %vm3156 = vweird.f32 %v3053
          %vm3157 = vweird.f32 %v3150
          %vm3158 = vmor %vm3156, %vm3157
          %v3159 = vsel %vm3158, %v3150, %v3155
          %v3160 = vrsqrt.pop %v3054
          %v3161 = vmul.f32 %v3160, %v3054
          %v3162 = vmul.f32 %v3161, %v3160
          %v3163 = vmul.f32 0.5, %v3162
          %v3164 = vsub.f32 1.5, %v3163
          %v3165 = vmul.f32 %v3160, %v3164
          %vm3166 = vweird.f32 %v3054
          %vm3167 = vweird.f32 %v3160
          %vm3168 = vmor %vm3166, %vm3167
          %v3169 = vsel %vm3168, %v3160, %v3165
          %v3170 = vrsqrt.pop %v3055
          %v3171 = vmul.f32 %v3170, %v3055
          %v3172 = vmul.f32 %v3171, %v3170
          %v3173 = vmul.f32 0.5, %v3172
          %v3174 = vsub.f32 1.5, %v3173
          %v3175 = vmul.f32 %v3170, %v3174
          %vm3176 = vweird.f32 %v3055
          %vm3177 = vweird.f32 %v3170
          %vm3178 = vmor %vm3176, %vm3177
          %v3179 = vsel %vm3178, %v3170, %v3175
          %v3180 = vrsqrt.pop %v3056
          %v3181 = vmul.f32 %v3180, %v3056
          %v3182 = vmul.f32 %v3181, %v3180
          %v3183 = vmul.f32 0.5, %v3182
          %v3184 = vsub.f32 1.5, %v3183
          %v3185 = vmul.f32 %v3180, %v3184
          %vm3186 = vweird.f32 %v3056
          %vm3187 = vweird.f32 %v3180
          %vm3188 = vmor %vm3186, %vm3187
          %v3189 = vsel %vm3188, %v3180, %v3185
          %v3190 = vrsqrt.pop %v3057
          %v3191 = vmul.f32 %v3190, %v3057
          %v3192 = vmul.f32 %v3191, %v3190
          %v3193 = vmul.f32 0.5, %v3192
          %v3194 = vsub.f32 1.5, %v3193
          %v3195 = vmul.f32 %v3190, %v3194
          %vm3196 = vweird.f32 %v3057
          %vm3197 = vweird.f32 %v3190
          %vm3198 = vmor %vm3196, %vm3197
          %v3199 = vsel %vm3198, %v3190, %v3195
          %v3200 = vrsqrt.pop %v3058
          %v3201 = vmul.f32 %v3200, %v3058
          %v3202 = vmul.f32 %v3201, %v3200
          %v3203 = vmul.f32 0.5, %v3202
          %v3204 = vsub.f32 1.5, %v3203
          %v3205 = vmul.f32 %v3200, %v3204
          %vm3206 = vweird.f32 %v3058
          %vm3207 = vweird.f32 %v3200
          %vm3208 = vmor %vm3206, %vm3207
          %v3209 = vsel %vm3208, %v3200, %v3205
          %v3210 = vrsqrt.pop %v3059
          %v3211 = vmul.f32 %v3210, %v3059
          %v3212 = vmul.f32 %v3211, %v3210
          %v3213 = vmul.f32 0.5, %v3212
          %v3214 = vsub.f32 1.5, %v3213
          %v3215 = vmul.f32 %v3210, %v3214
          %vm3216 = vweird.f32 %v3059
          %vm3217 = vweird.f32 %v3210
          %vm3218 = vmor %vm3216, %vm3217
          %v3219 = vsel %vm3218, %v3210, %v3215
          %v3220 = vmul.f32 %v2948, %v3069
          %v3221 = vmul.f32 %v2949, %v3079
          %v3222 = vmul.f32 %v2950, %v3089
          %v3223 = vmul.f32 %v2951, %v3099
          %v3224 = vmul.f32 %v2952, %v3109
          %v3225 = vmul.f32 %v2953, %v3119
          %v3226 = vmul.f32 %v2954, %v3129
          %v3227 = vmul.f32 %v2955, %v3139
          %v3228 = vmul.f32 %v2956, %v3149
          %v3229 = vmul.f32 %v2957, %v3159
          %v3230 = vmul.f32 %v2958, %v3169
          %v3231 = vmul.f32 %v2959, %v3179
          %v3232 = vmul.f32 %v2960, %v3189
          %v3233 = vmul.f32 %v2961, %v3199
          %v3234 = vmul.f32 %v2962, %v3209
          %v3235 = vmul.f32 %v2963, %v3219
          %v3236 = vrot.slane %v3222, 4
          %v3237 = vsel %vm698, %v3236, %v3220
          %v3238 = vrot.slane %v3220, 4
          %v3239 = vsel %vm698, %v3222, %v3238
          %v3241 = vunpack.c.l.s4 1983009808
          %v3242 = vunpack.c.0.s8 %v3241
          %v3243 = vperm.slane %v3237, %v3242
          %v3245 = vunpack.c.l.s4 1983009808
          %v3246 = vunpack.c.0.s8 %v3245
          %v3247 = vperm.slane %v3239, %v3246
          %v3248 = vrot.slane %v3223, 4
          %v3249 = vsel %vm698, %v3248, %v3221
          %v3250 = vrot.slane %v3221, 4
          %v3251 = vsel %vm698, %v3223, %v3250
          %v3253 = vunpack.c.l.s4 1983009808
          %v3254 = vunpack.c.0.s8 %v3253
          %v3255 = vperm.slane %v3249, %v3254
          %v3257 = vunpack.c.l.s4 1983009808
          %v3258 = vunpack.c.0.s8 %v3257
          %v3259 = vperm.slane %v3251, %v3258
          %v3260 = vrot.slane %v3226, 4
          %v3261 = vsel %vm698, %v3260, %v3224
          %v3262 = vrot.slane %v3224, 4
          %v3263 = vsel %vm698, %v3226, %v3262
          %v3265 = vunpack.c.l.s4 1983009808
          %v3266 = vunpack.c.0.s8 %v3265
          %v3267 = vperm.slane %v3261, %v3266
          %v3269 = vunpack.c.l.s4 1983009808
          %v3270 = vunpack.c.0.s8 %v3269
          %v3271 = vperm.slane %v3263, %v3270
          %v3272 = vrot.slane %v3227, 4
          %v3273 = vsel %vm698, %v3272, %v3225
          %v3274 = vrot.slane %v3225, 4
          %v3275 = vsel %vm698, %v3227, %v3274
          %v3277 = vunpack.c.l.s4 1983009808
          %v3278 = vunpack.c.0.s8 %v3277
          %v3279 = vperm.slane %v3273, %v3278
          %v3281 = vunpack.c.l.s4 1983009808
          %v3282 = vunpack.c.0.s8 %v3281
          %v3283 = vperm.slane %v3275, %v3282
          %v3284 = vrot.slane %v3255, 4
          %v3285 = vsel %vm698, %v3284, %v3243
          %v3286 = vrot.slane %v3243, 4
          %v3287 = vsel %vm698, %v3255, %v3286
          %v3289 = vunpack.c.l.s4 1934713408
          %v3290 = vunpack.c.0.s8 %v3289
          %v3291 = vperm.slane %v3285, %v3290
          %v3293 = vunpack.c.l.s4 1934713408
          %v3294 = vunpack.c.0.s8 %v3293
          %v3295 = vperm.slane %v3287, %v3294
          %v3296 = vrot.slane %v3259, 4
          %v3297 = vsel %vm698, %v3296, %v3247
          %v3298 = vrot.slane %v3247, 4
          %v3299 = vsel %vm698, %v3259, %v3298
          %v3301 = vunpack.c.l.s4 1934713408
          %v3302 = vunpack.c.0.s8 %v3301
          %v3303 = vperm.slane %v3297, %v3302
          %v3305 = vunpack.c.l.s4 1934713408
          %v3306 = vunpack.c.0.s8 %v3305
          %v3307 = vperm.slane %v3299, %v3306
          %v3308 = vrot.slane %v3279, 4
          %v3309 = vsel %vm698, %v3308, %v3267
          %v3310 = vrot.slane %v3267, 4
          %v3311 = vsel %vm698, %v3279, %v3310
          %v3313 = vunpack.c.l.s4 1934713408
          %v3314 = vunpack.c.0.s8 %v3313
          %v3315 = vperm.slane %v3309, %v3314
          %v3317 = vunpack.c.l.s4 1934713408
          %v3318 = vunpack.c.0.s8 %v3317
          %v3319 = vperm.slane %v3311, %v3318
          %v3320 = vrot.slane %v3283, 4
          %v3321 = vsel %vm698, %v3320, %v3271
          %v3322 = vrot.slane %v3271, 4
          %v3323 = vsel %vm698, %v3283, %v3322
          %v3325 = vunpack.c.l.s4 1934713408
          %v3326 = vunpack.c.0.s8 %v3325
          %v3327 = vperm.slane %v3321, %v3326
          %v3329 = vunpack.c.l.s4 1934713408
          %v3330 = vunpack.c.0.s8 %v3329
          %v3331 = vperm.slane %v3323, %v3330
          %v3332 = vrot.slane %v3315, 4
          %v3333 = vsel %vm698, %v3332, %v3291
          %v3334 = vrot.slane %v3291, 4
          %v3335 = vsel %vm698, %v3315, %v3334
          %v3336 = vrot.slane %v3319, 4
          %v3337 = vsel %vm698, %v3336, %v3295
          %v3338 = vrot.slane %v3295, 4
          %v3339 = vsel %vm698, %v3319, %v3338
          %v3340 = vrot.slane %v3327, 4
          %v3341 = vsel %vm698, %v3340, %v3303
          %v3342 = vrot.slane %v3303, 4
          %v3343 = vsel %vm698, %v3327, %v3342
          %v3344 = vrot.slane %v3331, 4
          %v3345 = vsel %vm698, %v3344, %v3307
          %v3346 = vrot.slane %v3307, 4
          %v3347 = vsel %vm698, %v3331, %v3346
          %v3348 = vrot.slane %v3230, 4
          %v3349 = vsel %vm698, %v3348, %v3228
          %v3350 = vrot.slane %v3228, 4
          %v3351 = vsel %vm698, %v3230, %v3350
          %v3353 = vunpack.c.l.s4 1983009808
          %v3354 = vunpack.c.0.s8 %v3353
          %v3355 = vperm.slane %v3349, %v3354
          %v3357 = vunpack.c.l.s4 1983009808
          %v3358 = vunpack.c.0.s8 %v3357
          %v3359 = vperm.slane %v3351, %v3358
          %v3360 = vrot.slane %v3231, 4
          %v3361 = vsel %vm698, %v3360, %v3229
          %v3362 = vrot.slane %v3229, 4
          %v3363 = vsel %vm698, %v3231, %v3362
          %v3365 = vunpack.c.l.s4 1983009808
          %v3366 = vunpack.c.0.s8 %v3365
          %v3367 = vperm.slane %v3361, %v3366
          %v3369 = vunpack.c.l.s4 1983009808
          %v3370 = vunpack.c.0.s8 %v3369
          %v3371 = vperm.slane %v3363, %v3370
          %v3372 = vrot.slane %v3234, 4
          %v3373 = vsel %vm698, %v3372, %v3232
          %v3374 = vrot.slane %v3232, 4
          %v3375 = vsel %vm698, %v3234, %v3374
          %v3377 = vunpack.c.l.s4 1983009808
          %v3378 = vunpack.c.0.s8 %v3377
          %v3379 = vperm.slane %v3373, %v3378
          %v3381 = vunpack.c.l.s4 1983009808
          %v3382 = vunpack.c.0.s8 %v3381
          %v3383 = vperm.slane %v3375, %v3382
          %v3384 = vrot.slane %v3235, 4
          %v3385 = vsel %vm698, %v3384, %v3233
          %v3386 = vrot.slane %v3233, 4
          %v3387 = vsel %vm698, %v3235, %v3386
          %v3389 = vunpack.c.l.s4 1983009808
          %v3390 = vunpack.c.0.s8 %v3389
          %v3391 = vperm.slane %v3385, %v3390
          %v3393 = vunpack.c.l.s4 1983009808
          %v3394 = vunpack.c.0.s8 %v3393
          %v3395 = vperm.slane %v3387, %v3394
          %v3396 = vrot.slane %v3367, 4
          %v3397 = vsel %vm698, %v3396, %v3355
          %v3398 = vrot.slane %v3355, 4
          %v3399 = vsel %vm698, %v3367, %v3398
          %v3401 = vunpack.c.l.s4 1934713408
          %v3402 = vunpack.c.0.s8 %v3401
          %v3403 = vperm.slane %v3397, %v3402
          %v3405 = vunpack.c.l.s4 1934713408
          %v3406 = vunpack.c.0.s8 %v3405
          %v3407 = vperm.slane %v3399, %v3406
          %v3408 = vrot.slane %v3371, 4
          %v3409 = vsel %vm698, %v3408, %v3359
          %v3410 = vrot.slane %v3359, 4
          %v3411 = vsel %vm698, %v3371, %v3410
          %v3413 = vunpack.c.l.s4 1934713408
          %v3414 = vunpack.c.0.s8 %v3413
          %v3415 = vperm.slane %v3409, %v3414
          %v3417 = vunpack.c.l.s4 1934713408
          %v3418 = vunpack.c.0.s8 %v3417
          %v3419 = vperm.slane %v3411, %v3418
          %v3420 = vrot.slane %v3391, 4
          %v3421 = vsel %vm698, %v3420, %v3379
          %v3422 = vrot.slane %v3379, 4
          %v3423 = vsel %vm698, %v3391, %v3422
          %v3425 = vunpack.c.l.s4 1934713408
          %v3426 = vunpack.c.0.s8 %v3425
          %v3427 = vperm.slane %v3421, %v3426
          %v3429 = vunpack.c.l.s4 1934713408
          %v3430 = vunpack.c.0.s8 %v3429
          %v3431 = vperm.slane %v3423, %v3430
          %v3432 = vrot.slane %v3395, 4
          %v3433 = vsel %vm698, %v3432, %v3383
          %v3434 = vrot.slane %v3383, 4
          %v3435 = vsel %vm698, %v3395, %v3434
          %v3437 = vunpack.c.l.s4 1934713408
          %v3438 = vunpack.c.0.s8 %v3437
          %v3439 = vperm.slane %v3433, %v3438
          %v3441 = vunpack.c.l.s4 1934713408
          %v3442 = vunpack.c.0.s8 %v3441
          %v3443 = vperm.slane %v3435, %v3442
          %v3444 = vrot.slane %v3427, 4
          %v3445 = vsel %vm698, %v3444, %v3403
          %v3446 = vrot.slane %v3403, 4
          %v3447 = vsel %vm698, %v3427, %v3446
          %v3448 = vrot.slane %v3431, 4
          %v3449 = vsel %vm698, %v3448, %v3407
          %v3450 = vrot.slane %v3407, 4
          %v3451 = vsel %vm698, %v3431, %v3450
          %v3452 = vrot.slane %v3439, 4
          %v3453 = vsel %vm698, %v3452, %v3415
          %v3454 = vrot.slane %v3415, 4
          %v3455 = vsel %vm698, %v3439, %v3454
          %v3456 = vrot.slane %v3443, 4
          %v3457 = vsel %vm698, %v3456, %v3419
          %v3458 = vrot.slane %v3419, 4
          %v3459 = vsel %vm698, %v3443, %v3458
          %3460 = vst.msk [vmem:[#allocation2] sm:$0xff] %vm945, %v3333
          %3461 = vst.msk [vmem:[#allocation2 + $0x8] sm:$0xff] %vm945, %v3445
          %3462 = vst.msk [vmem:[#allocation2 + $0x10] sm:$0xff] %vm945, %v3335
          %3463 = vst.msk [vmem:[#allocation2 + $0x18] sm:$0xff] %vm945, %v3447
          %3464 = vst.msk [vmem:[#allocation2 + $0x20] sm:$0xff] %vm945, %v3337
          %3465 = vst.msk [vmem:[#allocation2 + $0x28] sm:$0xff] %vm945, %v3449
          %3466 = vst.msk [vmem:[#allocation2 + $0x30] sm:$0xff] %vm945, %v3339
          %3467 = vst.msk [vmem:[#allocation2 + $0x38] sm:$0xff] %vm945, %v3451
          %3468 = vst.msk [vmem:[#allocation2 + $0x40] sm:$0xff] %vm945, %v3341
          %3469 = vst.msk [vmem:[#allocation2 + $0x48] sm:$0xff] %vm945, %v3453
          %3470 = vst.msk [vmem:[#allocation2 + $0x50] sm:$0xff] %vm945, %v3343
          %3471 = vst.msk [vmem:[#allocation2 + $0x58] sm:$0xff] %vm945, %v3455
          %3472 = vst.msk [vmem:[#allocation2 + $0x60] sm:$0xff] %vm945, %v3345
          %3473 = vst.msk [vmem:[#allocation2 + $0x68] sm:$0xff] %vm945, %v3457
          %3474 = vst.msk [vmem:[#allocation2 + $0x70] sm:$0xff] %vm945, %v3347
          %3475 = vst.msk [vmem:[#allocation2 + $0x78] sm:$0xff] %vm945, %v3459
        $region100: #{dual_encoder_forward.1} parent=63 // pred_fallthru
          _
        %p3476 = scmp.eq.s32.totalorder %s44, 1
        // Predicated region
        $region101: #{dual_encoder_forward.1} parent=63 // pred_check
          %p3477 = pneg %p3476
        $region102: #{dual_encoder_forward.1} parent=63 // pred_check_branch
          %3479 = sbr.rel (%p3477) target = $region104
        $region103: #{dual_encoder_forward.1} parent=63 // pred_region
          %v3480 = vld [vmem:[%s529] sm:$0xff]
          %v3481 = vld [vmem:[%s529 + $0x8] sm:$0xff]
          %v3482 = vld [vmem:[%s529 + $0x10] sm:$0xff]
          %v3483 = vld [vmem:[%s529 + $0x18] sm:$0xff]
          %v3484 = vld [vmem:[%s529 + $0x20] sm:$0xff]
          %v3485 = vld [vmem:[%s529 + $0x28] sm:$0xff]
          %v3486 = vld [vmem:[%s529 + $0x30] sm:$0xff]
          %v3487 = vld [vmem:[%s529 + $0x38] sm:$0xff]
          %v3488 = vld [vmem:[%s529 + $0x40] sm:$0xff]
          %v3489 = vld [vmem:[%s529 + $0x48] sm:$0xff]
          %v3490 = vld [vmem:[%s529 + $0x50] sm:$0xff]
          %v3491 = vld [vmem:[%s529 + $0x58] sm:$0xff]
          %v3492 = vld [vmem:[%s529 + $0x60] sm:$0xff]
          %v3493 = vld [vmem:[%s529 + $0x68] sm:$0xff]
          %v3494 = vld [vmem:[%s529 + $0x70] sm:$0xff]
          %v3495 = vld [vmem:[%s529 + $0x78] sm:$0xff]
          %s3496 = scalar_lea.vmem [#allocation18], 16
          %v3497 = vld [vmem:[%s3496] sm:$0xf]
          %v3498 = vld [vmem:[%s3496 + $0x4] sm:$0xf]
          %v3499 = vld [vmem:[%s3496 + $0x8] sm:$0xf]
          %v3500 = vld [vmem:[%s3496 + $0xc] sm:$0xf]
          %v3501 = vpack.c.bf16 %v3481, %v3480
          %v3502 = vpack.c.bf16 %v3483, %v3482
          %v3503 = vpack.c.bf16 %v3485, %v3484
          %v3504 = vpack.c.bf16 %v3487, %v3486
          %v3505 = vpack.c.bf16 %v3489, %v3488
          %v3506 = vpack.c.bf16 %v3491, %v3490
          %v3507 = vpack.c.bf16 %v3493, %v3492
          %v3508 = vpack.c.bf16 %v3495, %v3494
          %v3509 = vld [vmem:[#allocation18] sm:$0xf]
          %v3510 = vld [vmem:[#allocation18 + $0x4] sm:$0xf]
          %v3511 = vld [vmem:[#allocation18 + $0x8] sm:$0xf]
          %v3512 = vld [vmem:[#allocation18 + $0xc] sm:$0xf]
          %v3513 = vpack.c.bf16 0.0, 0.0
          %v3518 = vunpack.c.l.b16 %v3509
          %v3519 = vunpack.c.l.b16 %v3510
          %v3520 = vunpack.c.l.b16 %v3511
          %v3521 = vunpack.c.l.b16 %v3512
          %v3522 = vpack.c.b16 %v3519, %v3518
          %v3523 = vpack.c.b16 %v3521, %v3520
          %vm3526 = vcmask 261120
          %v3528 = vsel %vm3526, %v3513, 0
          %v3531 = vsel %vm3526, %v3501, 0
          %v3534 = vsel %vm3526, %v3502, 0
          %v3537 = vsel %vm3526, %v3503, 0
          %v3540 = vsel %vm3526, %v3504, 0
          %v3543 = vsel %vm3526, %v3505, 0
          %v3546 = vsel %vm3526, %v3506, 0
          %v3549 = vsel %vm3526, %v3507, 0
          %3551 = vmatpush.bf16.msra.mxu0 0
          %3552 = vmatpush.bf16.msra.mxu0 0
          %3553 = vmatpush.bf16.msra.mxu0 0
          %3554 = vmatpush.bf16.msra.mxu0 0
          %3555 = vmatpush.bf16.msra.mxu0 0
          %3556 = vmatpush.bf16.msra.mxu0 0
          %3557 = vmatpush.bf16.msra.mxu0 %v3523
          %3558 = vmatpush.bf16.msra.mxu0 %v3522
          %3559 = vmatmul.bf16.gmra.mxu0 %v3528
          %v3560 = vpop.f32.mrf.mxu0
          %v3561 = vadd.f32 0.0, %v3560
          %v3562 = vpop.f32.mrf.mxu0
          %v3563 = vadd.f32 0.0, %v3562
          %3564 = vmatmul.bf16.gmra.mxu0 %v3531
          %v3565 = vpop.f32.mrf.mxu0
          %v3566 = vadd.f32 0.0, %v3565
          %v3567 = vpop.f32.mrf.mxu0
          %v3568 = vadd.f32 0.0, %v3567
          %3569 = vmatmul.bf16.gmra.mxu0 %v3534
          %v3570 = vpop.f32.mrf.mxu0
          %v3571 = vadd.f32 0.0, %v3570
          %v3572 = vpop.f32.mrf.mxu0
          %v3573 = vadd.f32 0.0, %v3572
          %3574 = vmatmul.bf16.gmra.mxu0 %v3537
          %v3575 = vpop.f32.mrf.mxu0
          %v3576 = vadd.f32 0.0, %v3575
          %v3577 = vpop.f32.mrf.mxu0
          %v3578 = vadd.f32 0.0, %v3577
          %3579 = vmatmul.bf16.gmra.mxu0 %v3540
          %v3580 = vpop.f32.mrf.mxu0
          %v3581 = vadd.f32 0.0, %v3580
          %v3582 = vpop.f32.mrf.mxu0
          %v3583 = vadd.f32 0.0, %v3582
          %3584 = vmatmul.bf16.gmra.mxu0 %v3543
          %v3585 = vpop.f32.mrf.mxu0
          %v3586 = vadd.f32 0.0, %v3585
          %v3587 = vpop.f32.mrf.mxu0
          %v3588 = vadd.f32 0.0, %v3587
          %3589 = vmatmul.bf16.gmra.mxu0 %v3546
          %v3590 = vpop.f32.mrf.mxu0
          %v3591 = vadd.f32 0.0, %v3590
          %v3592 = vpop.f32.mrf.mxu0
          %v3593 = vadd.f32 0.0, %v3592
          %3594 = vmatmul.bf16.gmra.mxu0 %v3549
          %v3595 = vpop.f32.mrf.mxu0
          %v3596 = vadd.f32 0.0, %v3595
          %v3597 = vpop.f32.mrf.mxu0
          %v3598 = vadd.f32 0.0, %v3597
          %3599 = vdwg.mxu0
          %v3604 = vunpack.c.l.b16 %v3497
          %v3605 = vunpack.c.l.b16 %v3498
          %v3606 = vunpack.c.l.b16 %v3499
          %v3607 = vunpack.c.l.b16 %v3500
          %v3608 = vpack.c.b16 %v3605, %v3604
          %v3609 = vpack.c.b16 %v3607, %v3606
          %v3613 = vsel %vm3526, %v3508, 0
          %3615 = vmatpush.bf16.msra.mxu0 0
          %3616 = vmatpush.bf16.msra.mxu0 0
          %3617 = vmatpush.bf16.msra.mxu0 0
          %3618 = vmatpush.bf16.msra.mxu0 0
          %3619 = vmatpush.bf16.msra.mxu0 0
          %3620 = vmatpush.bf16.msra.mxu0 0
          %3621 = vmatpush.bf16.msra.mxu0 %v3609
          %3622 = vmatpush.bf16.msra.mxu0 %v3608
          %3623 = vmatmul.bf16.gmra.mxu0 %v3531
          %v3624 = vpop.f32.mrf.mxu0
          %v3625 = vadd.f32 %v3561, %v3624
          %v3626 = vpop.f32.mrf.mxu0
          %v3627 = vadd.f32 %v3563, %v3626
          %3628 = vmatmul.bf16.gmra.mxu0 %v3534
          %v3629 = vpop.f32.mrf.mxu0
          %v3630 = vadd.f32 %v3566, %v3629
          %v3631 = vpop.f32.mrf.mxu0
          %v3632 = vadd.f32 %v3568, %v3631
          %3633 = vmatmul.bf16.gmra.mxu0 %v3537
          %v3634 = vpop.f32.mrf.mxu0
          %v3635 = vadd.f32 %v3571, %v3634
          %v3636 = vpop.f32.mrf.mxu0
          %v3637 = vadd.f32 %v3573, %v3636
          %3638 = vmatmul.bf16.gmra.mxu0 %v3540
          %v3639 = vpop.f32.mrf.mxu0
          %v3640 = vadd.f32 %v3576, %v3639
          %v3641 = vpop.f32.mrf.mxu0
          %v3642 = vadd.f32 %v3578, %v3641
          %3643 = vmatmul.bf16.gmra.mxu0 %v3543
          %v3644 = vpop.f32.mrf.mxu0
          %v3645 = vadd.f32 %v3581, %v3644
          %v3646 = vpop.f32.mrf.mxu0
          %v3647 = vadd.f32 %v3583, %v3646
          %3648 = vmatmul.bf16.gmra.mxu0 %v3546
          %v3649 = vpop.f32.mrf.mxu0
          %v3650 = vadd.f32 %v3586, %v3649
          %v3651 = vpop.f32.mrf.mxu0
          %v3652 = vadd.f32 %v3588, %v3651
          %3653 = vmatmul.bf16.gmra.mxu0 %v3549
          %v3654 = vpop.f32.mrf.mxu0
          %v3655 = vadd.f32 %v3591, %v3654
          %v3656 = vpop.f32.mrf.mxu0
          %v3657 = vadd.f32 %v3593, %v3656
          %3658 = vmatmul.bf16.gmra.mxu0 %v3613
          %v3659 = vpop.f32.mrf.mxu0
          %v3660 = vadd.f32 %v3596, %v3659
          %v3661 = vpop.f32.mrf.mxu0
          %v3662 = vadd.f32 %v3598, %v3661
          %3663 = vdwg.mxu0
          %v3664 = vld [vmem:[%s10] sm:$0x1]
          %v3666 = vperm.slane %v3664, 0
          %v3668 = vadd.f32 %v3625, %v3666
          %v3669 = vadd.f32 %v3627, %v3666
          %v3670 = vadd.f32 %v3630, %v3666
          %v3671 = vadd.f32 %v3632, %v3666
          %v3672 = vadd.f32 %v3635, %v3666
          %v3673 = vadd.f32 %v3637, %v3666
          %v3674 = vadd.f32 %v3640, %v3666
          %v3675 = vadd.f32 %v3642, %v3666
          %v3676 = vadd.f32 %v3645, %v3666
          %v3677 = vadd.f32 %v3647, %v3666
          %v3678 = vadd.f32 %v3650, %v3666
          %v3679 = vadd.f32 %v3652, %v3666
          %v3680 = vadd.f32 %v3655, %v3666
          %v3681 = vadd.f32 %v3657, %v3666
          %v3682 = vadd.f32 %v3660, %v3666
          %v3683 = vadd.f32 %v3662, %v3666
          %v3684 = vmax.f32 %v3668, 0.0
          %v3685 = vmax.f32 %v3669, 0.0
          %v3686 = vmax.f32 %v3670, 0.0
          %v3687 = vmax.f32 %v3671, 0.0
          %v3688 = vmax.f32 %v3672, 0.0
          %v3689 = vmax.f32 %v3673, 0.0
          %v3690 = vmax.f32 %v3674, 0.0
          %v3691 = vmax.f32 %v3675, 0.0
          %v3692 = vmax.f32 %v3676, 0.0
          %v3693 = vmax.f32 %v3677, 0.0
          %v3694 = vmax.f32 %v3678, 0.0
          %v3695 = vmax.f32 %v3679, 0.0
          %v3696 = vmax.f32 %v3680, 0.0
          %v3697 = vmax.f32 %v3681, 0.0
          %v3698 = vmax.f32 %v3682, 0.0
          %v3699 = vmax.f32 %v3683, 0.0
          %3700 = vst.msk [vmem:[#allocation2] sm:$0xff] %vm3526, %v3684
          %3701 = vst.msk [vmem:[#allocation2 + $0x8] sm:$0xff] %vm3526, %v3685
          %3702 = vst.msk [vmem:[#allocation2 + $0x10] sm:$0xff] %vm3526, %v3686
          %3703 = vst.msk [vmem:[#allocation2 + $0x18] sm:$0xff] %vm3526, %v3687
          %3704 = vst.msk [vmem:[#allocation2 + $0x20] sm:$0xff] %vm3526, %v3688
          %3705 = vst.msk [vmem:[#allocation2 + $0x28] sm:$0xff] %vm3526, %v3689
          %3706 = vst.msk [vmem:[#allocation2 + $0x30] sm:$0xff] %vm3526, %v3690
          %3707 = vst.msk [vmem:[#allocation2 + $0x38] sm:$0xff] %vm3526, %v3691
          %3708 = vst.msk [vmem:[#allocation2 + $0x40] sm:$0xff] %vm3526, %v3692
          %3709 = vst.msk [vmem:[#allocation2 + $0x48] sm:$0xff] %vm3526, %v3693
          %3710 = vst.msk [vmem:[#allocation2 + $0x50] sm:$0xff] %vm3526, %v3694
          %3711 = vst.msk [vmem:[#allocation2 + $0x58] sm:$0xff] %vm3526, %v3695
          %3712 = vst.msk [vmem:[#allocation2 + $0x60] sm:$0xff] %vm3526, %v3696
          %3713 = vst.msk [vmem:[#allocation2 + $0x68] sm:$0xff] %vm3526, %v3697
          %3714 = vst.msk [vmem:[#allocation2 + $0x70] sm:$0xff] %vm3526, %v3698
          %3715 = vst.msk [vmem:[#allocation2 + $0x78] sm:$0xff] %vm3526, %v3699
        $region104: #{dual_encoder_forward.1} parent=63 // pred_fallthru
          _
        %s3716 = sadd.s32 %s44, 1
        %s3717 = smul.u32 %s3716, 4
        %s3718 = smul.addr %s3717, 4
        %s3719 = scalar_lea.vmem [#allocation14], %s3718
        %v3720 = vld [vmem:[%s3719] sm:$0xf]
        %v3721 = vld [vmem:[%s3719 + $0x4] sm:$0xf]
        %v3722 = vld [vmem:[%s3719 + $0x8] sm:$0xf]
        %v3723 = vld [vmem:[%s3719 + $0xc] sm:$0xf]
        %s3724 = scalar_lea.vmem [#allocation15], %s3716
        %v3725 = vld [vmem:[%s3724] sm:$0x1]
        %s3726 = smul.u32 %s3716, 12
        %s3727 = smul.addr %s3726, 4
        %s3728 = scalar_lea.vmem [#allocation17], %s3727
        %v3729 = vld [vmem:[%s3728] sm:$0xf]
        %v3730 = vld [vmem:[%s3728 + $0x4] sm:$0xf]
        %v3731 = vld [vmem:[%s3728 + $0x8] sm:$0xf]
        %v3732 = vld [vmem:[%s3728 + $0xc] sm:$0xf]
        %v3733 = vld [vmem:[%s3728 + $0x10] sm:$0xf]
        %v3734 = vld [vmem:[%s3728 + $0x14] sm:$0xf]
        %v3735 = vld [vmem:[%s3728 + $0x18] sm:$0xf]
        %v3736 = vld [vmem:[%s3728 + $0x1c] sm:$0xf]
        %v3737 = vld [vmem:[%s3728 + $0x20] sm:$0xf]
        %v3738 = vld [vmem:[%s3728 + $0x24] sm:$0xf]
        %v3739 = vld [vmem:[%s3728 + $0x28] sm:$0xf]
        %v3740 = vld [vmem:[%s3728 + $0x2c] sm:$0xf]
        %s3741 = smul.u32 %s3716, 3
        %s3742 = scalar_lea.vmem %s8, %s3741
        %v3743 = vld [vmem:[%s3742] sm:$0x1]
        %v3744 = vld [vmem:[%s3742 + $0x1] sm:$0x1]
        %v3745 = vld [vmem:[%s3742 + $0x2] sm:$0x1]
        %v3746 = vld [vmem:[#allocation2] sm:$0xff]
        %v3747 = vld [vmem:[#allocation2 + $0x8] sm:$0xff]
        %v3748 = vld [vmem:[#allocation2 + $0x10] sm:$0xff]
        %v3749 = vld [vmem:[#allocation2 + $0x18] sm:$0xff]
        %v3750 = vld [vmem:[#allocation2 + $0x20] sm:$0xff]
        %v3751 = vld [vmem:[#allocation2 + $0x28] sm:$0xff]
        %v3752 = vld [vmem:[#allocation2 + $0x30] sm:$0xff]
        %v3753 = vld [vmem:[#allocation2 + $0x38] sm:$0xff]
        %v3754 = vld [vmem:[#allocation2 + $0x40] sm:$0xff]
        %v3755 = vld [vmem:[#allocation2 + $0x48] sm:$0xff]
        %v3756 = vld [vmem:[#allocation2 + $0x50] sm:$0xff]
        %v3757 = vld [vmem:[#allocation2 + $0x58] sm:$0xff]
        %v3758 = vld [vmem:[#allocation2 + $0x60] sm:$0xff]
        %v3759 = vld [vmem:[#allocation2 + $0x68] sm:$0xff]
        %v3760 = vld [vmem:[#allocation2 + $0x70] sm:$0xff]
        %v3761 = vld [vmem:[#allocation2 + $0x78] sm:$0xff]
        %v3762 = vadd.f32 %v3746, %v622
        %v3763 = vadd.f32 %v3747, %v623
        %v3764 = vadd.f32 %v3748, %v622
        %v3765 = vadd.f32 %v3749, %v623
        %v3766 = vadd.f32 %v3750, %v622
        %v3767 = vadd.f32 %v3751, %v623
        %v3768 = vadd.f32 %v3752, %v622
        %v3769 = vadd.f32 %v3753, %v623
        %v3770 = vadd.f32 %v3754, %v622
        %v3771 = vadd.f32 %v3755, %v623
        %v3772 = vadd.f32 %v3756, %v622
        %v3773 = vadd.f32 %v3757, %v623
        %v3774 = vadd.f32 %v3758, %v622
        %v3775 = vadd.f32 %v3759, %v623
        %v3776 = vadd.f32 %v3760, %v622
        %v3777 = vadd.f32 %v3761, %v623
        %v3778 = vpack.c.bf16 %v3763, %v3762
        %v3779 = vpack.c.bf16 %v3765, %v3764
        %v3780 = vpack.c.bf16 %v3767, %v3766
        %v3781 = vpack.c.bf16 %v3769, %v3768
        %v3782 = vpack.c.bf16 %v3771, %v3770
        %v3783 = vpack.c.bf16 %v3773, %v3772
        %v3784 = vpack.c.bf16 %v3775, %v3774
        %v3785 = vpack.c.bf16 %v3777, %v3776
        %v3787 = vperm.slane %v3725, 0
        %v3793 = vunpack.c.l.b16 %v3720
        %v3794 = vunpack.c.l.b16 %v3721
        %v3795 = vunpack.c.l.b16 %v3722
        %v3796 = vunpack.c.l.b16 %v3723
        %v3797 = vpack.c.b16 %v3794, %v3793
        %v3798 = vpack.c.b16 %v3796, %v3795
        %vm3801 = vcmask 261120
        %v3803 = vsel %vm3801, %v3778, 0
        %v3806 = vsel %vm3801, %v3779, 0
        %v3809 = vsel %vm3801, %v3780, 0
        %v3812 = vsel %vm3801, %v3781, 0
        %v3815 = vsel %vm3801, %v3782, 0
        %v3818 = vsel %vm3801, %v3783, 0
        %v3821 = vsel %vm3801, %v3784, 0
        %v3824 = vsel %vm3801, %v3785, 0
        %3826 = vmatpush.bf16.msra.mxu0 0
        %3827 = vmatpush.bf16.msra.mxu0 0
        %3828 = vmatpush.bf16.msra.mxu0 0
        %3829 = vmatpush.bf16.msra.mxu0 0
        %3830 = vmatpush.bf16.msra.mxu0 0
        %3831 = vmatpush.bf16.msra.mxu0 0
        %3832 = vmatpush.bf16.msra.mxu0 %v3798
        %3833 = vmatpush.bf16.msra.mxu0 %v3797
        %3834 = vmatmul.bf16.gmra.mxu0 %v3803
        %v3835 = vpop.f32.mrf.mxu0
        %v3836 = vadd.f32 %v3787, %v3835
        %v3837 = vpop.f32.mrf.mxu0
        %v3838 = vadd.f32 %v3787, %v3837
        %3839 = vmatmul.bf16.gmra.mxu0 %v3806
        %v3840 = vpop.f32.mrf.mxu0
        %v3841 = vadd.f32 %v3787, %v3840
        %v3842 = vpop.f32.mrf.mxu0
        %v3843 = vadd.f32 %v3787, %v3842
        %3844 = vmatmul.bf16.gmra.mxu0 %v3809
        %v3845 = vpop.f32.mrf.mxu0
        %v3846 = vadd.f32 %v3787, %v3845
        %v3847 = vpop.f32.mrf.mxu0
        %v3848 = vadd.f32 %v3787, %v3847
        %3849 = vmatmul.bf16.gmra.mxu0 %v3812
        %v3850 = vpop.f32.mrf.mxu0
        %v3851 = vadd.f32 %v3787, %v3850
        %v3852 = vpop.f32.mrf.mxu0
        %v3853 = vadd.f32 %v3787, %v3852
        %3854 = vmatmul.bf16.gmra.mxu0 %v3815
        %v3855 = vpop.f32.mrf.mxu0
        %v3856 = vadd.f32 %v3787, %v3855
        %v3857 = vpop.f32.mrf.mxu0
        %v3858 = vadd.f32 %v3787, %v3857
        %3859 = vmatmul.bf16.gmra.mxu0 %v3818
        %v3860 = vpop.f32.mrf.mxu0
        %v3861 = vadd.f32 %v3787, %v3860
        %v3862 = vpop.f32.mrf.mxu0
        %v3863 = vadd.f32 %v3787, %v3862
        %3864 = vmatmul.bf16.gmra.mxu0 %v3821
        %v3865 = vpop.f32.mrf.mxu0
        %v3866 = vadd.f32 %v3787, %v3865
        %v3867 = vpop.f32.mrf.mxu0
        %v3868 = vadd.f32 %v3787, %v3867
        %3869 = vmatmul.bf16.gmra.mxu0 %v3824
        %v3870 = vpop.f32.mrf.mxu0
        %v3871 = vadd.f32 %v3787, %v3870
        %v3872 = vpop.f32.mrf.mxu0
        %v3873 = vadd.f32 %v3787, %v3872
        %3874 = vdwg.mxu0
        %v3875 = vpack.c.bf16 %v3836, %v3836
        %v3876 = vpack.c.bf16 %v3838, %v3838
        %v3877 = vpack.c.bf16 %v3841, %v3841
        %v3878 = vpack.c.bf16 %v3843, %v3843
        %v3879 = vpack.c.bf16 %v3846, %v3846
        %v3880 = vpack.c.bf16 %v3848, %v3848
        %v3881 = vpack.c.bf16 %v3851, %v3851
        %v3882 = vpack.c.bf16 %v3853, %v3853
        %v3883 = vpack.c.bf16 %v3856, %v3856
        %v3884 = vpack.c.bf16 %v3858, %v3858
        %v3885 = vpack.c.bf16 %v3861, %v3861
        %v3886 = vpack.c.bf16 %v3863, %v3863
        %v3887 = vpack.c.bf16 %v3866, %v3866
        %v3888 = vpack.c.bf16 %v3868, %v3868
        %v3889 = vpack.c.bf16 %v3871, %v3871
        %v3890 = vpack.c.bf16 %v3873, %v3873
        %vm3891 = vcmask 257024
        %3892 = vst.msk [vmem:[#allocation3] sm:$0xf] %vm3891, %v3875
        %3893 = vst.msk [vmem:[#allocation3 + $0x4] sm:$0xf] %vm3891, %v3876
        %3894 = vst.msk [vmem:[#allocation3 + $0x8] sm:$0xf] %vm3891, %v3877
        %3895 = vst.msk [vmem:[#allocation3 + $0xc] sm:$0xf] %vm3891, %v3878
        %3896 = vst.msk [vmem:[#allocation3 + $0x10] sm:$0xf] %vm3891, %v3879
        %3897 = vst.msk [vmem:[#allocation3 + $0x14] sm:$0xf] %vm3891, %v3880
        %3898 = vst.msk [vmem:[#allocation3 + $0x18] sm:$0xf] %vm3891, %v3881
        %3899 = vst.msk [vmem:[#allocation3 + $0x1c] sm:$0xf] %vm3891, %v3882
        %3900 = vst.msk [vmem:[#allocation3 + $0x20] sm:$0xf] %vm3891, %v3883
        %3901 = vst.msk [vmem:[#allocation3 + $0x24] sm:$0xf] %vm3891, %v3884
        %3902 = vst.msk [vmem:[#allocation3 + $0x28] sm:$0xf] %vm3891, %v3885
        %3903 = vst.msk [vmem:[#allocation3 + $0x2c] sm:$0xf] %vm3891, %v3886
        %3904 = vst.msk [vmem:[#allocation3 + $0x30] sm:$0xf] %vm3891, %v3887
        %3905 = vst.msk [vmem:[#allocation3 + $0x34] sm:$0xf] %vm3891, %v3888
        %3906 = vst.msk [vmem:[#allocation3 + $0x38] sm:$0xf] %vm3891, %v3889
        %3907 = vst.msk [vmem:[#allocation3 + $0x3c] sm:$0xf] %vm3891, %v3890
        %3924 = vrot.lane.b32.xlu0 %v3875, 96
        %v3925 = vpop.permute.xlu0 %3924
        %3926 = vrot.lane.b32.xlu0 %v3876, 96
        %v3927 = vpop.permute.xlu0 %3926
        %3928 = vrot.lane.b32.xlu0 %v3877, 96
        %v3929 = vpop.permute.xlu0 %3928
        %3930 = vrot.lane.b32.xlu0 %v3878, 96
        %v3931 = vpop.permute.xlu0 %3930
        %3932 = vrot.lane.b32.xlu0 %v3879, 96
        %v3933 = vpop.permute.xlu0 %3932
        %3934 = vrot.lane.b32.xlu0 %v3880, 96
        %v3935 = vpop.permute.xlu0 %3934
        %3936 = vrot.lane.b32.xlu0 %v3881, 96
        %v3937 = vpop.permute.xlu0 %3936
        %3938 = vrot.lane.b32.xlu0 %v3882, 96
        %v3939 = vpop.permute.xlu0 %3938
        %3940 = vrot.lane.b32.xlu0 %v3883, 96
        %v3941 = vpop.permute.xlu0 %3940
        %3942 = vrot.lane.b32.xlu0 %v3884, 96
        %v3943 = vpop.permute.xlu0 %3942
        %3944 = vrot.lane.b32.xlu0 %v3885, 96
        %v3945 = vpop.permute.xlu0 %3944
        %3946 = vrot.lane.b32.xlu0 %v3886, 96
        %v3947 = vpop.permute.xlu0 %3946
        %3948 = vrot.lane.b32.xlu0 %v3887, 96
        %v3949 = vpop.permute.xlu0 %3948
        %3950 = vrot.lane.b32.xlu0 %v3888, 96
        %v3951 = vpop.permute.xlu0 %3950
        %3952 = vrot.lane.b32.xlu0 %v3889, 96
        %v3953 = vpop.permute.xlu0 %3952
        %3954 = vrot.lane.b32.xlu0 %v3890, 96
        %v3955 = vpop.permute.xlu0 %3954
        %3972 = vst.msk [vmem:[#allocation4] sm:$0xf] %vm3891, %v3925
        %3973 = vst.msk [vmem:[#allocation4 + $0x4] sm:$0xf] %vm3891, %v3927
        %3974 = vst.msk [vmem:[#allocation4 + $0x8] sm:$0xf] %vm3891, %v3929
        %3975 = vst.msk [vmem:[#allocation4 + $0xc] sm:$0xf] %vm3891, %v3931
        %3976 = vst.msk [vmem:[#allocation4 + $0x10] sm:$0xf] %vm3891, %v3933
        %3977 = vst.msk [vmem:[#allocation4 + $0x14] sm:$0xf] %vm3891, %v3935
        %3978 = vst.msk [vmem:[#allocation4 + $0x18] sm:$0xf] %vm3891, %v3937
        %3979 = vst.msk [vmem:[#allocation4 + $0x1c] sm:$0xf] %vm3891, %v3939
        %3980 = vst.msk [vmem:[#allocation4 + $0x20] sm:$0xf] %vm3891, %v3941
        %3981 = vst.msk [vmem:[#allocation4 + $0x24] sm:$0xf] %vm3891, %v3943
        %3982 = vst.msk [vmem:[#allocation4 + $0x28] sm:$0xf] %vm3891, %v3945
        %3983 = vst.msk [vmem:[#allocation4 + $0x2c] sm:$0xf] %vm3891, %v3947
        %3984 = vst.msk [vmem:[#allocation4 + $0x30] sm:$0xf] %vm3891, %v3949
        %3985 = vst.msk [vmem:[#allocation4 + $0x34] sm:$0xf] %vm3891, %v3951
        %3986 = vst.msk [vmem:[#allocation4 + $0x38] sm:$0xf] %vm3891, %v3953
        %3987 = vst.msk [vmem:[#allocation4 + $0x3c] sm:$0xf] %vm3891, %v3955
        %3988 = vrot.lane.b32.xlu0 %v3875, 64
        %v3989 = vpop.permute.xlu0 %3988
        %3990 = vrot.lane.b32.xlu0 %v3876, 64
        %v3991 = vpop.permute.xlu0 %3990
        %3992 = vrot.lane.b32.xlu0 %v3877, 64
        %v3993 = vpop.permute.xlu0 %3992
        %3994 = vrot.lane.b32.xlu0 %v3878, 64
        %v3995 = vpop.permute.xlu0 %3994
        %3996 = vrot.lane.b32.xlu0 %v3879, 64
        %v3997 = vpop.permute.xlu0 %3996
        %3998 = vrot.lane.b32.xlu0 %v3880, 64
        %v3999 = vpop.permute.xlu0 %3998
        %4000 = vrot.lane.b32.xlu0 %v3881, 64
        %v4001 = vpop.permute.xlu0 %4000
        %4002 = vrot.lane.b32.xlu0 %v3882, 64
        %v4003 = vpop.permute.xlu0 %4002
        %4004 = vrot.lane.b32.xlu0 %v3883, 64
        %v4005 = vpop.permute.xlu0 %4004
        %4006 = vrot.lane.b32.xlu0 %v3884, 64
        %v4007 = vpop.permute.xlu0 %4006
        %4008 = vrot.lane.b32.xlu0 %v3885, 64
        %v4009 = vpop.permute.xlu0 %4008
        %4010 = vrot.lane.b32.xlu0 %v3886, 64
        %v4011 = vpop.permute.xlu0 %4010
        %4012 = vrot.lane.b32.xlu0 %v3887, 64
        %v4013 = vpop.permute.xlu0 %4012
        %4014 = vrot.lane.b32.xlu0 %v3888, 64
        %v4015 = vpop.permute.xlu0 %4014
        %4016 = vrot.lane.b32.xlu0 %v3889, 64
        %v4017 = vpop.permute.xlu0 %4016
        %4018 = vrot.lane.b32.xlu0 %v3890, 64
        %v4019 = vpop.permute.xlu0 %4018
        %4036 = vst.msk [vmem:[#allocation5] sm:$0xf] %vm3891, %v3989
        %4037 = vst.msk [vmem:[#allocation5 + $0x4] sm:$0xf] %vm3891, %v3991
        %4038 = vst.msk [vmem:[#allocation5 + $0x8] sm:$0xf] %vm3891, %v3993
        %4039 = vst.msk [vmem:[#allocation5 + $0xc] sm:$0xf] %vm3891, %v3995
        %4040 = vst.msk [vmem:[#allocation5 + $0x10] sm:$0xf] %vm3891, %v3997
        %4041 = vst.msk [vmem:[#allocation5 + $0x14] sm:$0xf] %vm3891, %v3999
        %4042 = vst.msk [vmem:[#allocation5 + $0x18] sm:$0xf] %vm3891, %v4001
        %4043 = vst.msk [vmem:[#allocation5 + $0x1c] sm:$0xf] %vm3891, %v4003
        %4044 = vst.msk [vmem:[#allocation5 + $0x20] sm:$0xf] %vm3891, %v4005
        %4045 = vst.msk [vmem:[#allocation5 + $0x24] sm:$0xf] %vm3891, %v4007
        %4046 = vst.msk [vmem:[#allocation5 + $0x28] sm:$0xf] %vm3891, %v4009
        %4047 = vst.msk [vmem:[#allocation5 + $0x2c] sm:$0xf] %vm3891, %v4011
        %4048 = vst.msk [vmem:[#allocation5 + $0x30] sm:$0xf] %vm3891, %v4013
        %4049 = vst.msk [vmem:[#allocation5 + $0x34] sm:$0xf] %vm3891, %v4015
        %4050 = vst.msk [vmem:[#allocation5 + $0x38] sm:$0xf] %vm3891, %v4017
        %4051 = vst.msk [vmem:[#allocation5 + $0x3c] sm:$0xf] %vm3891, %v4019
        loop: start=0, step=1, limit=8
        $region105: #{dual_encoder_forward.1} parent=63 // loop_pre_header
          _
        $region106: #{dual_encoder_forward.1} parent=63 // loop_header
          %s4053 = sphi 0, %s4057
          %p4054 = scmp.ge.s32.totalorder %s4053, 8
        $region107: #{dual_encoder_forward.1} parent=63 // loop_header_branch
          %4056 = sbr.rel (%p4054) target = $region111
        $region108: #{dual_encoder_forward.1} parent=63 // loop_body
          %s4058 = smul.u32 %s4053, 16
          %s4059 = scalar_lea.vmem [#allocation2], %s4058
          %v4060 = vld [vmem:[%s4059] sm:$0xff]
          %v4061 = vld [vmem:[%s4059 + $0x8] sm:$0xff]
          %v4062 = vadd.f32 %v4060, %v622
          %v4063 = vadd.f32 %v4061, %v623
          %s4064 = smul.u32 %s4053, 2
          %s4065 = smul.addr %s4064, 4
          %s4066 = scalar_lea.vmem [#allocation3], %s4065
          %v4067 = vld [vmem:[%s4066] sm:$0xf]
          %v4068 = vld [vmem:[%s4066 + $0x4] sm:$0xf]
          %s4069 = smul.addr %s4064, 4
          %s4070 = scalar_lea.vmem [#allocation4], %s4069
          %v4071 = vld [vmem:[%s4070] sm:$0xf]
          %v4072 = vld [vmem:[%s4070 + $0x4] sm:$0xf]
          %s4073 = smul.addr %s4064, 4
          %s4074 = scalar_lea.vmem [#allocation5], %s4073
          %v4075 = vld [vmem:[%s4074] sm:$0xf]
          %v4076 = vld [vmem:[%s4074 + $0x4] sm:$0xf]
          %v4079 = vunpack.c.l.b16 %v4067
          %v4080 = vunpack.c.l.b16 %v4068
          %v4081 = vpack.c.b16 %v4080, %v4079
          %v4084 = vunpack.c.l.b16 %v4071
          %v4085 = vunpack.c.l.b16 %v4072
          %v4086 = vpack.c.b16 %v4085, %v4084
          %v4088 = vsel %vm3801, %v4081, 0
          %v4091 = vsel %vm3801, %v4086, 0
          %4093 = vmatpush.bf16.xpose.msra.mxu0 0
          %4094 = vmatpush.bf16.xpose.msra.mxu0 0
          %4095 = vmatpush.bf16.xpose.msra.mxu0 0
          %4096 = vmatpush.bf16.xpose.msra.mxu0 0
          %4097 = vmatpush.bf16.xpose.msra.mxu0 0
          %4098 = vmatpush.bf16.xpose.msra.mxu0 0
          %4099 = vmatpush.bf16.xpose.msra.mxu0 0
          %4100 = vmatpush.bf16.xpose.msra.mxu0 %v4091
          %4101 = vmatmul.bf16.gmra.mxu0 %v4088
          %v4102 = vpop.f32.mrf.mxu0
          %v4103 = vadd.f32 0.0, %v4102
          %v4104 = vpop.f32.mrf.mxu0
          %v4105 = vadd.f32 0.0, %v4104
          %4106 = vdwg.mxu0
          %v4107 = vmul.f32 %v4103, 0.17677669
          %v4108 = vmul.f32 %v4105, 0.17677669
          %vm4109 = vcmask 130048
          %v4110 = vsel %vm4109, %v4107, -inf
          %4111 = vmax.xlane.f32.xlu0 %v4110
          %v4112 = vpop.xlane.xlu0 %4111
          %v4113 = vsel %vm4109, %v4108, -inf
          %4114 = vmax.xlane.f32.xlu0 %v4113
          %v4115 = vpop.xlane.xlu0 %4114
          %v4116 = vsub.f32 %v4107, %v4112
          %v4117 = vsub.f32 %v4108, %v4115
          %v4118 = vmul.f32 %v4116, 1.442695
          %v4119 = vpow.pop %v4118
          %v4120 = vmul.f32 %v4117, 1.442695
          %v4121 = vpow.pop %v4120
          %v4122 = vsel %vm4109, %v4119, 0.0
          %4123 = vadd.xlane.f32.xlu0 %v4122
          %v4124 = vpop.xlane.xlu0 %4123
          %v4125 = vsel %vm4109, %v4121, 0.0
          %4126 = vadd.xlane.f32.xlu0 %v4125
          %v4127 = vpop.xlane.xlu0 %4126
          %v4128 = vrcp.pop %v4124
          %v4129 = vmul.f32 %v4124, %v4128
          %v4130 = vsub.f32 1.0, %v4129
          %v4131 = vmul.f32 %v4128, %v4130
          %v4132 = vadd.f32 %v4128, %v4131
          %vm4133 = vweird.f32 %v4124
          %vm4134 = vweird.f32 %v4128
          %vm4135 = vmor %vm4133, %vm4134
          %v4136 = vsel %vm4135, %v4128, %v4132
          %v4137 = vand.u32 2147483647, %v4124
          %vm4138 = vcmp.eq.f32.partialorder %v4137, 8.507059e+37
          %v4139 = vand.u32 %v4124, 2147483648
          %v4140 = vor.u32 1.1754944e-38, %v4139
          %v4141 = vsel %vm4138, %v4140, %v4136
          %v4142 = vrcp.pop %v4127
          %v4143 = vmul.f32 %v4127, %v4142
          %v4144 = vsub.f32 1.0, %v4143
          %v4145 = vmul.f32 %v4142, %v4144
          %v4146 = vadd.f32 %v4142, %v4145
          %vm4147 = vweird.f32 %v4127
          %vm4148 = vweird.f32 %v4142
          %vm4149 = vmor %vm4147, %vm4148
          %v4150 = vsel %vm4149, %v4142, %v4146
          %v4151 = vand.u32 2147483647, %v4127
          %vm4152 = vcmp.eq.f32.partialorder %v4151, 8.507059e+37
          %v4153 = vand.u32 %v4127, 2147483648
          %v4154 = vor.u32 1.1754944e-38, %v4153
          %v4155 = vsel %vm4152, %v4154, %v4150
          %v4156 = vmul.f32 %v4119, %v4141
          %v4157 = vmul.f32 %v4121, %v4155
          %v4158 = vpack.c.bf16 %v4157, %v4156
          %v4161 = vunpack.c.l.b16 %v4075
          %v4162 = vunpack.c.l.b16 %v4076
          %v4163 = vpack.c.b16 %v4162, %v4161
          %v4166 = vsel %vm4109, %v4158, 0
          %4168 = vmatpush.bf16.msra.mxu0 0
          %4169 = vmatpush.bf16.msra.mxu0 0
          %4170 = vmatpush.bf16.msra.mxu0 0
          %4171 = vmatpush.bf16.msra.mxu0 0
          %4172 = vmatpush.bf16.msra.mxu0 0
          %4173 = vmatpush.bf16.msra.mxu0 0
          %4174 = vmatpush.bf16.msra.mxu0 0
          %4175 = vmatpush.bf16.msra.mxu0 %v4163
          %4176 = vmatmul.bf16.gmra.mxu0 %v4166
          %v4177 = vpop.f32.mrf.mxu0
          %v4178 = vadd.f32 0.0, %v4177
          %v4179 = vpop.f32.mrf.mxu0
          %v4180 = vadd.f32 0.0, %v4179
          %4181 = vdwg.mxu0
          %v4182 = vpack.c.bf16 %v4180, %v4178
          %v4184 = vperm.slane %v3743, 0
          %v4190 = vunpack.c.l.b16 %v3729
          %v4191 = vunpack.c.l.b16 %v3730
          %v4192 = vunpack.c.l.b16 %v3731
          %v4193 = vunpack.c.l.b16 %v3732
          %v4194 = vpack.c.b16 %v4191, %v4190
          %v4195 = vpack.c.b16 %v4193, %v4192
          %v4199 = vsel %vm3801, %v4182, 0
          %4201 = vmatpush.bf16.msra.mxu0 0
          %4202 = vmatpush.bf16.msra.mxu0 0
          %4203 = vmatpush.bf16.msra.mxu0 0
          %4204 = vmatpush.bf16.msra.mxu0 0
          %4205 = vmatpush.bf16.msra.mxu0 0
          %4206 = vmatpush.bf16.msra.mxu0 0
          %4207 = vmatpush.bf16.msra.mxu0 %v4195
          %4208 = vmatpush.bf16.msra.mxu0 %v4194
          %4209 = vmatmul.bf16.gmra.mxu0 %v4199
          %v4210 = vpop.f32.mrf.mxu0
          %v4211 = vadd.f32 %v4184, %v4210
          %v4212 = vpop.f32.mrf.mxu0
          %v4213 = vadd.f32 %v4184, %v4212
          %4214 = vdwg.mxu0
          %v4215 = vadd.f32 %v4211, %v4062
          %v4216 = vadd.f32 %v4213, %v4063
          %v4217 = vsel %vm3801, %v4215, 0.0
          %4218 = vadd.xlane.f32.xlu0 %v4217
          %v4219 = vpop.xlane.xlu0 %4218
          %v4220 = vsel %vm3801, %v4216, 0.0
          %4221 = vadd.xlane.f32.xlu0 %v4220
          %v4222 = vpop.xlane.xlu0 %4221
          %v4223 = vrcp.pop 32.0
          %v4224 = vmul.f32 32.0, %v4223
          %v4225 = vsub.f32 1.0, %v4224
          %v4226 = vmul.f32 %v4223, %v4225
          %v4227 = vadd.f32 %v4223, %v4226
          %vm4228 = vweird.f32 %v4223
          %v4229 = vsel %vm4228, %v4223, %v4227
          %v4230 = vmul.f32 %v4219, %v4229
          %v4231 = vmul.f32 %v4222, %v4229
          %v4232 = vsub.f32 %v4215, %v4230
          %v4233 = vsub.f32 %v4216, %v4231
          %v4234 = vmul.f32 %v4232, %v4232
          %v4235 = vmul.f32 %v4233, %v4233
          %v4236 = vsel %vm3801, %v4234, 0.0
          %4237 = vadd.xlane.f32.xlu0 %v4236
          %v4238 = vpop.xlane.xlu0 %4237
          %v4239 = vsel %vm3801, %v4235, 0.0
          %4240 = vadd.xlane.f32.xlu0 %v4239
          %v4241 = vpop.xlane.xlu0 %4240
          %v4242 = vmul.f32 %v4238, %v4229
          %v4243 = vmul.f32 %v4241, %v4229
          %v4244 = vadd.f32 %v4242, 1e-05
          %v4245 = vadd.f32 %v4243, 1e-05
          %v4246 = vrsqrt.pop %v4244
          %v4247 = vmul.f32 %v4246, %v4244
          %v4248 = vmul.f32 %v4247, %v4246
          %v4249 = vmul.f32 0.5, %v4248
          %v4250 = vsub.f32 1.5, %v4249
          %v4251 = vmul.f32 %v4246, %v4250
          %vm4252 = vweird.f32 %v4244
          %vm4253 = vweird.f32 %v4246
          %vm4254 = vmor %vm4252, %vm4253
          %v4255 = vsel %vm4254, %v4246, %v4251
          %v4256 = vrsqrt.pop %v4245
          %v4257 = vmul.f32 %v4256, %v4245
          %v4258 = vmul.f32 %v4257, %v4256
          %v4259 = vmul.f32 0.5, %v4258
          %v4260 = vsub.f32 1.5, %v4259
          %v4261 = vmul.f32 %v4256, %v4260
          %vm4262 = vweird.f32 %v4245
          %vm4263 = vweird.f32 %v4256
          %vm4264 = vmor %vm4262, %vm4263
          %v4265 = vsel %vm4264, %v4256, %v4261
          %v4266 = vmul.f32 %v4232, %v4255
          %v4267 = vmul.f32 %v4233, %v4265
          %v4268 = vpack.c.bf16 %v4267, %v4266
          %v4270 = vperm.slane %v3744, 0
          %v4276 = vunpack.c.l.b16 %v3733
          %v4277 = vunpack.c.l.b16 %v3734
          %v4278 = vunpack.c.l.b16 %v3735
          %v4279 = vunpack.c.l.b16 %v3736
          %v4280 = vpack.c.b16 %v4277, %v4276
          %v4281 = vpack.c.b16 %v4279, %v4278
          %v4285 = vsel %vm3801, %v4268, 0
          %4287 = vmatpush.bf16.msra.mxu0 0
          %4288 = vmatpush.bf16.msra.mxu0 0
          %4289 = vmatpush.bf16.msra.mxu0 0
          %4290 = vmatpush.bf16.msra.mxu0 0
          %4291 = vmatpush.bf16.msra.mxu0 0
          %4292 = vmatpush.bf16.msra.mxu0 0
          %4293 = vmatpush.bf16.msra.mxu0 %v4281
          %4294 = vmatpush.bf16.msra.mxu0 %v4280
          %4295 = vmatmul.bf16.gmra.mxu0 %v4285
          %v4296 = vpop.f32.mrf.mxu0
          %v4297 = vadd.f32 %v4270, %v4296
          %v4298 = vpop.f32.mrf.mxu0
          %v4299 = vadd.f32 %v4270, %v4298
          %4300 = vdwg.mxu0
          %v4301 = vmax.f32 %v4297, 0.0
          %v4302 = vmax.f32 %v4299, 0.0
          %v4303 = vpack.c.bf16 %v4302, %v4301
          %v4305 = vperm.slane %v3745, 0
          %v4311 = vunpack.c.l.b16 %v3737
          %v4312 = vunpack.c.l.b16 %v3738
          %v4313 = vunpack.c.l.b16 %v3739
          %v4314 = vunpack.c.l.b16 %v3740
          %v4315 = vpack.c.b16 %v4312, %v4311
          %v4316 = vpack.c.b16 %v4314, %v4313
          %v4320 = vsel %vm3801, %v4303, 0
          %4322 = vmatpush.bf16.msra.mxu0 0
          %4323 = vmatpush.bf16.msra.mxu0 0
          %4324 = vmatpush.bf16.msra.mxu0 0
          %4325 = vmatpush.bf16.msra.mxu0 0
          %4326 = vmatpush.bf16.msra.mxu0 0
          %4327 = vmatpush.bf16.msra.mxu0 0
          %4328 = vmatpush.bf16.msra.mxu0 %v4316
          %4329 = vmatpush.bf16.msra.mxu0 %v4315
          %4330 = vmatmul.bf16.gmra.mxu0 %v4320
          %v4331 = vpop.f32.mrf.mxu0
          %v4332 = vadd.f32 %v4305, %v4331
          %v4333 = vpop.f32.mrf.mxu0
          %v4334 = vadd.f32 %v4305, %v4333
          %4335 = vdwg.mxu0
          %v4336 = vadd.f32 %v4332, %v4266
          %v4337 = vadd.f32 %v4334, %v4267
          %v4338 = vsel %vm3801, %v4336, 0.0
          %4339 = vadd.xlane.f32.xlu0 %v4338
          %v4340 = vpop.xlane.xlu0 %4339
          %v4341 = vsel %vm3801, %v4337, 0.0
          %4342 = vadd.xlane.f32.xlu0 %v4341
          %v4343 = vpop.xlane.xlu0 %4342
          %v4344 = vmul.f32 %v4340, %v4229
          %v4345 = vmul.f32 %v4343, %v4229
          %v4346 = vsub.f32 %v4336, %v4344
          %v4347 = vsub.f32 %v4337, %v4345
          %v4348 = vmul.f32 %v4346, %v4346
          %v4349 = vmul.f32 %v4347, %v4347
          %v4350 = vsel %vm3801, %v4348, 0.0
          %4351 = vadd.xlane.f32.xlu0 %v4350
          %v4352 = vpop.xlane.xlu0 %4351
          %v4353 = vsel %vm3801, %v4349, 0.0
          %4354 = vadd.xlane.f32.xlu0 %v4353
          %v4355 = vpop.xlane.xlu0 %4354
          %v4356 = vmul.f32 %v4352, %v4229
          %v4357 = vmul.f32 %v4355, %v4229
          %v4358 = vadd.f32 %v4356, 1e-05
          %v4359 = vadd.f32 %v4357, 1e-05
          %v4360 = vrsqrt.pop %v4358
          %v4361 = vmul.f32 %v4360, %v4358
          %v4362 = vmul.f32 %v4361, %v4360
          %v4363 = vmul.f32 0.5, %v4362
          %v4364 = vsub.f32 1.5, %v4363
          %v4365 = vmul.f32 %v4360, %v4364
          %vm4366 = vweird.f32 %v4358
          %vm4367 = vweird.f32 %v4360
          %vm4368 = vmor %vm4366, %vm4367
          %v4369 = vsel %vm4368, %v4360, %v4365
          %v4370 = vrsqrt.pop %v4359
          %v4371 = vmul.f32 %v4370, %v4359
          %v4372 = vmul.f32 %v4371, %v4370
          %v4373 = vmul.f32 0.5, %v4372
          %v4374 = vsub.f32 1.5, %v4373
          %v4375 = vmul.f32 %v4370, %v4374
          %vm4376 = vweird.f32 %v4359
          %vm4377 = vweird.f32 %v4370
          %vm4378 = vmor %vm4376, %vm4377
          %v4379 = vsel %vm4378, %v4370, %v4375
          %v4380 = vmul.f32 %v4346, %v4369
          %v4381 = vmul.f32 %v4347, %v4379
          %v4382 = vadd.f32 %v4380, %v4060
          %v4383 = vadd.f32 %v4381, %v4061
          %4384 = vst.msk [vmem:[%s4059] sm:$0xff] %vm3801, %v4382
          %4385 = vst.msk [vmem:[%s4059 + $0x8] sm:$0xff] %vm3801, %v4383
        $region109: #{dual_encoder_forward.1} parent=63 // loop_footer
          %s4057 = sadd.s32 1, %s4053
        $region110: #{dual_encoder_forward.1} parent=63 // loop_footer_branch
          %4052 = sbr.rel target = $region106
        $region111: #{dual_encoder_forward.1} parent=63 // loop_exit
          _
        // Predicated region
        $region112: #{dual_encoder_forward.1} parent=63 // pred_check
          %p4386 = pneg %p624
        $region113: #{dual_encoder_forward.1} parent=63 // pred_check_branch
          %4388 = sbr.rel (%p4386) target = $region115
        $region114: #{dual_encoder_forward.1} parent=63 // pred_region
          %v4389 = vld [vmem:[#allocation2] sm:$0xff]
          %v4390 = vld [vmem:[#allocation2 + $0x8] sm:$0xff]
          %v4391 = vld [vmem:[#allocation2 + $0x10] sm:$0xff]
          %v4392 = vld [vmem:[#allocation2 + $0x18] sm:$0xff]
          %v4393 = vld [vmem:[#allocation2 + $0x20] sm:$0xff]
          %v4394 = vld [vmem:[#allocation2 + $0x28] sm:$0xff]
          %v4395 = vld [vmem:[#allocation2 + $0x30] sm:$0xff]
          %v4396 = vld [vmem:[#allocation2 + $0x38] sm:$0xff]
          %v4397 = vld [vmem:[#allocation2 + $0x40] sm:$0xff]
          %v4398 = vld [vmem:[#allocation2 + $0x48] sm:$0xff]
          %v4399 = vld [vmem:[#allocation2 + $0x50] sm:$0xff]
          %v4400 = vld [vmem:[#allocation2 + $0x58] sm:$0xff]
          %v4401 = vld [vmem:[#allocation2 + $0x60] sm:$0xff]
          %v4402 = vld [vmem:[#allocation2 + $0x68] sm:$0xff]
          %v4403 = vld [vmem:[#allocation2 + $0x70] sm:$0xff]
          %v4404 = vld [vmem:[#allocation2 + $0x78] sm:$0xff]
          %4405 = vst.msk [vmem:[%s613] sm:$0xff] %vm3801, %v4389
          %4406 = vst.msk [vmem:[%s613 + $0x8] sm:$0xff] %vm3801, %v4390
          %4407 = vst.msk [vmem:[%s613 + $0x10] sm:$0xff] %vm3801, %v4391
          %4408 = vst.msk [vmem:[%s613 + $0x18] sm:$0xff] %vm3801, %v4392
          %4409 = vst.msk [vmem:[%s613 + $0x20] sm:$0xff] %vm3801, %v4393
          %4410 = vst.msk [vmem:[%s613 + $0x28] sm:$0xff] %vm3801, %v4394
          %4411 = vst.msk [vmem:[%s613 + $0x30] sm:$0xff] %vm3801, %v4395
          %4412 = vst.msk [vmem:[%s613 + $0x38] sm:$0xff] %vm3801, %v4396
          %4413 = vst.msk [vmem:[%s613 + $0x40] sm:$0xff] %vm3801, %v4397
          %4414 = vst.msk [vmem:[%s613 + $0x48] sm:$0xff] %vm3801, %v4398
          %4415 = vst.msk [vmem:[%s613 + $0x50] sm:$0xff] %vm3801, %v4399
          %4416 = vst.msk [vmem:[%s613 + $0x58] sm:$0xff] %vm3801, %v4400
          %4417 = vst.msk [vmem:[%s613 + $0x60] sm:$0xff] %vm3801, %v4401
          %4418 = vst.msk [vmem:[%s613 + $0x68] sm:$0xff] %vm3801, %v4402
          %4419 = vst.msk [vmem:[%s613 + $0x70] sm:$0xff] %vm3801, %v4403
          %4420 = vst.msk [vmem:[%s613 + $0x78] sm:$0xff] %vm3801, %v4404
        $region115: #{dual_encoder_forward.1} parent=63 // pred_fallthru
          _
        // Predicated region
        $region116: #{dual_encoder_forward.1} parent=63 // pred_check
          %p4421 = pneg %p3476
        $region117: #{dual_encoder_forward.1} parent=63 // pred_check_branch
          %4423 = sbr.rel (%p4421) target = $region119
        $region118: #{dual_encoder_forward.1} parent=63 // pred_region
          %v4424 = vld [vmem:[#allocation2] sm:$0xff]
          %v4425 = vld [vmem:[#allocation2 + $0x8] sm:$0xff]
          %v4426 = vld [vmem:[#allocation2 + $0x10] sm:$0xff]
          %v4427 = vld [vmem:[#allocation2 + $0x18] sm:$0xff]
          %v4428 = vld [vmem:[#allocation2 + $0x20] sm:$0xff]
          %v4429 = vld [vmem:[#allocation2 + $0x28] sm:$0xff]
          %v4430 = vld [vmem:[#allocation2 + $0x30] sm:$0xff]
          %v4431 = vld [vmem:[#allocation2 + $0x38] sm:$0xff]
          %v4432 = vld [vmem:[#allocation2 + $0x40] sm:$0xff]
          %v4433 = vld [vmem:[#allocation2 + $0x48] sm:$0xff]
          %v4434 = vld [vmem:[#allocation2 + $0x50] sm:$0xff]
          %v4435 = vld [vmem:[#allocation2 + $0x58] sm:$0xff]
          %v4436 = vld [vmem:[#allocation2 + $0x60] sm:$0xff]
          %v4437 = vld [vmem:[#allocation2 + $0x68] sm:$0xff]
          %v4438 = vld [vmem:[#allocation2 + $0x70] sm:$0xff]
          %v4439 = vld [vmem:[#allocation2 + $0x78] sm:$0xff]
          %4440 = vst.msk [vmem:[%s620] sm:$0xff] %vm3801, %v4424
          %4441 = vst.msk [vmem:[%s620 + $0x8] sm:$0xff] %vm3801, %v4425
          %4442 = vst.msk [vmem:[%s620 + $0x10] sm:$0xff] %vm3801, %v4426
          %4443 = vst.msk [vmem:[%s620 + $0x18] sm:$0xff] %vm3801, %v4427
          %4444 = vst.msk [vmem:[%s620 + $0x20] sm:$0xff] %vm3801, %v4428
          %4445 = vst.msk [vmem:[%s620 + $0x28] sm:$0xff] %vm3801, %v4429
          %4446 = vst.msk [vmem:[%s620 + $0x30] sm:$0xff] %vm3801, %v4430
          %4447 = vst.msk [vmem:[%s620 + $0x38] sm:$0xff] %vm3801, %v4431
          %4448 = vst.msk [vmem:[%s620 + $0x40] sm:$0xff] %vm3801, %v4432
          %4449 = vst.msk [vmem:[%s620 + $0x48] sm:$0xff] %vm3801, %v4433
          %4450 = vst.msk [vmem:[%s620 + $0x50] sm:$0xff] %vm3801, %v4434
          %4451 = vst.msk [vmem:[%s620 + $0x58] sm:$0xff] %vm3801, %v4435
          %4452 = vst.msk [vmem:[%s620 + $0x60] sm:$0xff] %vm3801, %v4436
          %4453 = vst.msk [vmem:[%s620 + $0x68] sm:$0xff] %vm3801, %v4437
          %4454 = vst.msk [vmem:[%s620 + $0x70] sm:$0xff] %vm3801, %v4438
          %4455 = vst.msk [vmem:[%s620 + $0x78] sm:$0xff] %vm3801, %v4439
        $region119: #{dual_encoder_forward.1} parent=63 // pred_fallthru
          _
        %s4456 = sand.u32 %s305, 1
        %s4457 = scalar_lea.sflag [#allocation8], %s4456
        %s4458 = sand.u32 %s305, 1
        %s4459 = smul.addr %s4458, 128
        %s4460 = scalar_lea.vmem [#allocation20], %s4459
        %s4461 = sand.u32 %s331, 1
        %s4462 = scalar_lea.sflag [#allocation22], %s4461
        %s4463 = sand.u32 %s331, 1
        %s4464 = smul.addr %s4463, 128
        %s4465 = scalar_lea.vmem [#allocation21], %s4464
        // Predicated region
        $region120: #{dual_encoder_forward.1} parent=63 // pred_check
          %p4466 = pneg %p315
        $region121: #{dual_encoder_forward.1} parent=63 // pred_check_branch
          %4468 = sbr.rel (%p4466) target = $region123
        $region122: #{dual_encoder_forward.1} parent=63 // pred_region
          %4470 = vsyncadd %s4457, 0
          %s4471 = smul.addr %s43, 16
          %s4472 = smul.addr %s4471, 8
          %s4473 = scalar_lea.hbm %s11, %s4472
          %s4474 = sshll.u32 %s4460, 4
          %s4475 = int_to_ptr.vmem [resolvable:$true] %s4474
          %s4476 = sshll.u32 %s4473, 4
          %s4477 = int_to_ptr.hbm [resolvable:$true] %s4476
          %4482 = dma.vmem_to_hbm [thread:$0]  %s4475, 2048, %s4477, %s4457, 128, 128, 8
        $region123: #{dual_encoder_forward.1} parent=63 // pred_fallthru
          _
        // Predicated region
        $region124: #{dual_encoder_forward.1} parent=63 // pred_check
          %p4483 = pneg %p341
        $region125: #{dual_encoder_forward.1} parent=63 // pred_check_branch
          %4485 = sbr.rel (%p4483) target = $region127
        $region126: #{dual_encoder_forward.1} parent=63 // pred_region
          %4487 = vsyncadd %s4462, 0
          %s4488 = smul.addr %s43, 16
          %s4489 = smul.addr %s4488, 8
          %s4490 = scalar_lea.hbm %s12, %s4489
          %s4491 = sshll.u32 %s4465, 4
          %s4492 = int_to_ptr.vmem [resolvable:$true] %s4491
          %s4493 = sshll.u32 %s4490, 4
          %s4494 = int_to_ptr.hbm [resolvable:$true] %s4493
          %4499 = dma.vmem_to_hbm [thread:$0]  %s4492, 2048, %s4494, %s4462, 128, 128, 8
        $region127: #{dual_encoder_forward.1} parent=63 // pred_fallthru
          _
      $region64: #{dual_encoder_forward.1} parent=5 // pred_fallthru
        _
      %p4500 = scmp.le.s32.totalorder 2, %s34
      // Predicated region
      $region128: #{dual_encoder_forward.1} parent=5 // pred_check
        %p4501 = pneg %p4500
      $region129: #{dual_encoder_forward.1} parent=5 // pred_check_branch
        %4503 = sbr.rel (%p4501) target = $region131
      $region130: #{dual_encoder_forward.1} parent=5 // pred_region
        %s4504 = ssub.s32 %s34, 2
        // Predicated region
        $region132: #{dual_encoder_forward.1} parent=130 // pred_check
          %p4505 = pneg %p321
        $region133: #{dual_encoder_forward.1} parent=130 // pred_check_branch
          %4507 = sbr.rel (%p4505) target = $region135
        $region134: #{dual_encoder_forward.1} parent=130 // pred_region
          %s4508 = sand.u32 %s306, 1
          %s4509 = scalar_lea.sflag [#allocation8], %s4508
          %s4510 = sand.u32 %s306, 1
          %s4511 = smul.addr %s4510, 128
          %s4512 = scalar_lea.vmem [#allocation20], %s4511
          %4514 = dma.done %s4509, 2048
        $region135: #{dual_encoder_forward.1} parent=130 // pred_fallthru
          _
        // Predicated region
        $region136: #{dual_encoder_forward.1} parent=130 // pred_check
          %p4515 = pneg %p347
        $region137: #{dual_encoder_forward.1} parent=130 // pred_check_branch
          %4517 = sbr.rel (%p4515) target = $region139
        $region138: #{dual_encoder_forward.1} parent=130 // pred_region
          %s4518 = sand.u32 %s332, 1
          %s4519 = scalar_lea.sflag [#allocation22], %s4518
          %s4520 = sand.u32 %s332, 1
          %s4521 = smul.addr %s4520, 128
          %s4522 = scalar_lea.vmem [#allocation21], %s4521
          %4524 = dma.done %s4519, 2048
        $region139: #{dual_encoder_forward.1} parent=130 // pred_fallthru
          _
      $region131: #{dual_encoder_forward.1} parent=5 // pred_fallthru
        _
    $region6: #{dual_encoder_forward.1} parent=1 // loop_footer
      %s38 = sadd.s32 1, %s34
    $region7: #{dual_encoder_forward.1} parent=1 // loop_footer_branch
      %33 = sbr.rel target = $region3
    $region8: #{dual_encoder_forward.1} parent=1 // loop_exit
      _
    %4525 = vsyncpa [#allocation7], 1
    %s4526 = scalar_lea.sflag [#allocation7], 1
    %4527 = vsyncpa %s4526, 1
    %4528 = vsyncpa [#allocation10], 1
    %s4529 = scalar_lea.sflag [#allocation10], 1
    %4530 = vsyncpa %s4529, 1
    %4531 = vsyncpa [#allocation13], 1
    %4532 = vsyncpa [#allocation16], 1
    %4533 = vsyncpa [#allocation19], 1
    %4534 = vsyncpa [#allocation8], 1
    %s4535 = scalar_lea.sflag [#allocation8], 1
    %4536 = vsyncpa %s4535, 1
    %4537 = vsyncpa [#allocation22], 1
    %s4538 = scalar_lea.sflag [#allocation22], 1
    %4539 = vsyncpa %s4538, 1

</llo_original>
